<compile_context>
chip_gen: v6e
topology: v6e:2x2x1
jax: 0.10.0
libtpu: 0.0.40
codegen_flags: <defaults>
</compile_context>

<pallas_src>
import jax
import jax.numpy as jnp
from jax import lax
from jax.experimental import pallas as pl
from jax.experimental.pallas import tpu as pltpu

KH, KW = 3, 3  # Conv2d kernel_size=3


def conv2d_3x3_kernel(x_ref, w_ref, b_ref, o_ref):
    """Direct valid 3x3 conv on an NCHW batch block.

    x_ref: (NB, C_in, H, W)             VMEM
    w_ref: (C_out_total*C_in*KH*KW,)    SMEM  (flattened OIHW weights, full)
    b_ref: (C_out_total,)               SMEM  (full bias)
    o_ref: (NB, CO_BLK, H_out, W_out)   VMEM  (c_out block for this grid step)
    """
    nb = x_ref.shape[0]
    c_in = x_ref.shape[1]
    co_blk = o_ref.shape[1]
    h_out = o_ref.shape[2]
    w_out = o_ref.shape[3]
    c_out_total = w_ref.shape[0] // (c_in * KH * KW)

    # Static 0 when c_out is not split (keeps SMEM weight indices static).
    if co_blk == c_out_total:
        co0 = 0
    else:
        co0 = pl.program_id(1) * co_blk

    # Process one image at a time so only co_blk accumulator planes are live
    # (plus one patch vreg); taps are outermost within an image so each
    # shifted patch is sliced exactly once and reused by every out-channel.
    for b in range(nb):
        # Bias folded into the accumulator initialization.
        accs = [jnp.full((h_out, w_out), b_ref[co0 + co], dtype=jnp.float32)
                for co in range(co_blk)]
        for ci in range(c_in):
            for kh in range(KH):
                for kw in range(KW):
                    patch = x_ref[b, ci, kh:kh + h_out, kw:kw + w_out]
                    patch = patch.astype(jnp.float32)
                    for co in range(co_blk):
                        widx = (((co0 + co) * c_in + ci) * KH + kh) * KW + kw
                        accs[co] = accs[co] + patch * w_ref[widx]
        for co in range(co_blk):
            res = accs[co]
            if res.dtype != o_ref.dtype:
                res = res.astype(o_ref.dtype)
            o_ref[b, co, :, :] = res


def tudui_forward(x, weight, bias):
    """x: (N, C_in, H, W) f32; weight: (C_out, C_in, 3, 3) OIHW; bias: (C_out,)."""
    n, c_in, h, w = x.shape
    c_out = weight.shape[0]
    assert weight.shape == (c_out, c_in, KH, KW), "kernel assumes 3x3 OIHW weights"
    assert h >= KH and w >= KW, "valid conv needs H,W >= kernel size"
    h_out, w_out = h - KH + 1, w - KW + 1

    itemsize = jnp.dtype(x.dtype).itemsize
    in_img_bytes = c_in * h * w * itemsize
    out_img_bytes = c_out * h_out * w_out * itemsize

    # --- detect v7x (2 TensorCores/chip); harmless fallback elsewhere ---
    is_v7x = False
    try:
        is_v7x = "v7" in jax.devices()[0].device_kind.lower()
    except Exception:
        pass

    # --- batch blocking: largest block within a conservative VMEM budget ---
    vmem_budget = 24 * 1024 * 1024            # per-block budget incl. double-buffer
    nb = max(1, min(n, vmem_budget // max(1, 2 * (in_img_bytes + out_img_bytes))))
    g_batch = -(-n // nb)
    if is_v7x and g_batch == 1 and n >= 2:
        # Give v7x's second TensorCore a parallel batch block.
        nb = -(-n // 2)
        g_batch = 2
    n_pad = g_batch * nb

    # --- c_out split: vreg-pressure guard, or 2nd parallel step on v7x ---
    acc_vregs = c_out * (-(-h_out // 8)) * (-(-w_out // 128))
    co_blk = c_out
    if c_out % 2 == 0 and (acc_vregs > 28 or (is_v7x and g_batch == 1)):
        co_blk = c_out // 2
    g_co = c_out // co_blk

    # --- wrapper-side work is just an (optional) batch pad; no transposes ---
    xp = x
    if n_pad != n:
        xp = jnp.pad(xp, ((0, n_pad - n), (0, 0), (0, 0), (0, 0)))

    # --- VMEM limit from the double-buffered block working set, <= 48 MiB ---
    in_block_bytes = nb * in_img_bytes
    out_block_bytes = nb * co_blk * h_out * w_out * itemsize
    vmem_limit = min(48 * 1024 * 1024,
                     max(32 * 1024 * 1024,
                         4 * (in_block_bytes + out_block_bytes)))

    y = pl.pallas_call(
        conv2d_3x3_kernel,
        out_shape=jax.ShapeDtypeStruct((n_pad, c_out, h_out, w_out), x.dtype),
        grid=(g_batch, g_co),
        in_specs=[
            pl.BlockSpec((nb, c_in, h, w), lambda i, j: (i, 0, 0, 0)),
            pl.BlockSpec(memory_space=pltpu.MemorySpace.SMEM),
            pl.BlockSpec(memory_space=pltpu.MemorySpace.SMEM),
        ],
        out_specs=pl.BlockSpec((nb, co_blk, h_out, w_out),
                               lambda i, j: (i, j, 0, 0)),
        compiler_params=pltpu.CompilerParams(
            dimension_semantics=("parallel", "parallel"),
            vmem_limit_bytes=int(vmem_limit),
        ),
    )(xp, weight.reshape(-1), bias)

    return y[:n] if n_pad != n else y


if __name__ == "__main__":
    # Deterministic parameter init, mimicking PyTorch Conv2d defaults:
    # U(-1/sqrt(fan_in), 1/sqrt(fan_in)) with fan_in = 3*3*3 = 27.
    key = jax.random.PRNGKey(0)
    kx, kw_, kb = jax.random.split(key, 3)

    c_in, c_out = 3, 6
    fan_in = c_in * KH * KW
    bound = float(fan_in) ** -0.5

    weight = jax.random.uniform(kw_, (c_out, c_in, KH, KW), jnp.float32,
                                minval=-bound, maxval=bound)
    bias = jax.random.uniform(kb, (c_out,), jnp.float32,
                              minval=-bound, maxval=bound)

    # Small NCHW input consistent with the module: (batch=2, C=3, 16, 16).
    x = jax.random.normal(kx, (2, c_in, 16, 16), jnp.float32)

    y = tudui_forward(x, weight, bias)
    y = jax.block_until_ready(y)

    # Cross-check against XLA's conv (same semantics as torch Conv2d, VALID pad).
    y_ref = lax.conv_general_dilated(
        x, weight, window_strides=(1, 1), padding="VALID",
        dimension_numbers=("NCHW", "OIHW", "NCHW"),
    ) + bias[None, :, None, None]

    assert y.shape == (2, c_out, 14, 14), y.shape
    assert jnp.allclose(y, y_ref, atol=1e-5, rtol=1e-5), "mismatch vs reference conv"

    print("KERNEL_OK")
</pallas_src>

<mosaic_0001>
module attributes {stable_mosaic.version = 11 : i64} {
  func.func @conv2d_3x3_kernel(%arg0: i32, %arg1: i32, %arg2: memref<2x3x16x16xf32, #tpu.memory_space<vmem>>, %arg3: memref<162xf32, #tpu.memory_space<smem>>, %arg4: memref<6xf32, #tpu.memory_space<smem>>, %arg5: memref<2x6x14x14xf32, #tpu.memory_space<vmem>>) attributes {dimension_semantics = [#tpu.dimension_semantics<parallel>, #tpu.dimension_semantics<parallel>], iteration_bounds = array<i64: 1, 1>, scalar_prefetch = 0 : i64, scratch_operands = 0 : i64, tpu.core_type = #tpu.core_type<tc>, window_params = [{transform_indices = @transform_0, window_bounds = array<i64: 2, 3, 16, 16>}, {transform_indices = @transform_1, window_bounds = array<i64: 162>}, {transform_indices = @transform_2, window_bounds = array<i64: 6>}, {transform_indices = @transform_3, window_bounds = array<i64: 2, 6, 14, 14>}]} {
    %c0 = arith.constant 0 : index
    %0 = memref.load %arg4[%c0] : memref<6xf32, #tpu.memory_space<smem>>
    %1 = vector.broadcast %0 : f32 to vector<14x14xf32>
    %c1 = arith.constant 1 : index
    %2 = memref.load %arg4[%c1] : memref<6xf32, #tpu.memory_space<smem>>
    %3 = vector.broadcast %2 : f32 to vector<14x14xf32>
    %c2 = arith.constant 2 : index
    %4 = memref.load %arg4[%c2] : memref<6xf32, #tpu.memory_space<smem>>
    %5 = vector.broadcast %4 : f32 to vector<14x14xf32>
    %c3 = arith.constant 3 : index
    %6 = memref.load %arg4[%c3] : memref<6xf32, #tpu.memory_space<smem>>
    %7 = vector.broadcast %6 : f32 to vector<14x14xf32>
    %c4 = arith.constant 4 : index
    %8 = memref.load %arg4[%c4] : memref<6xf32, #tpu.memory_space<smem>>
    %9 = vector.broadcast %8 : f32 to vector<14x14xf32>
    %c5 = arith.constant 5 : index
    %10 = memref.load %arg4[%c5] : memref<6xf32, #tpu.memory_space<smem>>
    %11 = vector.broadcast %10 : f32 to vector<14x14xf32>
    %c0_0 = arith.constant 0 : index
    %c0_1 = arith.constant 0 : index
    %c0_2 = arith.constant 0 : index
    %c0_3 = arith.constant 0 : index
    %12 = vector.load %arg2[%c0_0, %c0_1, %c0_2, %c0_3] : memref<2x3x16x16xf32, #tpu.memory_space<vmem>>, vector<1x1x14x14xf32>
    %13 = vector.shape_cast %12 : vector<1x1x14x14xf32> to vector<14x14xf32>
    %c0_4 = arith.constant 0 : index
    %14 = memref.load %arg3[%c0_4] : memref<162xf32, #tpu.memory_space<smem>>
    %15 = vector.broadcast %14 : f32 to vector<14x14xf32>
    %16 = arith.mulf %13, %15 : vector<14x14xf32>
    %17 = arith.addf %1, %16 : vector<14x14xf32>
    %c27 = arith.constant 27 : index
    %18 = memref.load %arg3[%c27] : memref<162xf32, #tpu.memory_space<smem>>
    %19 = vector.broadcast %18 : f32 to vector<14x14xf32>
    %20 = arith.mulf %13, %19 : vector<14x14xf32>
    %21 = arith.addf %3, %20 : vector<14x14xf32>
    %c54 = arith.constant 54 : index
    %22 = memref.load %arg3[%c54] : memref<162xf32, #tpu.memory_space<smem>>
    %23 = vector.broadcast %22 : f32 to vector<14x14xf32>
    %24 = arith.mulf %13, %23 : vector<14x14xf32>
    %25 = arith.addf %5, %24 : vector<14x14xf32>
    %c81 = arith.constant 81 : index
    %26 = memref.load %arg3[%c81] : memref<162xf32, #tpu.memory_space<smem>>
    %27 = vector.broadcast %26 : f32 to vector<14x14xf32>
    %28 = arith.mulf %13, %27 : vector<14x14xf32>
    %29 = arith.addf %7, %28 : vector<14x14xf32>
    %c108 = arith.constant 108 : index
    %30 = memref.load %arg3[%c108] : memref<162xf32, #tpu.memory_space<smem>>
    %31 = vector.broadcast %30 : f32 to vector<14x14xf32>
    %32 = arith.mulf %13, %31 : vector<14x14xf32>
    %33 = arith.addf %9, %32 : vector<14x14xf32>
    %c135 = arith.constant 135 : index
    %34 = memref.load %arg3[%c135] : memref<162xf32, #tpu.memory_space<smem>>
    %35 = vector.broadcast %34 : f32 to vector<14x14xf32>
    %36 = arith.mulf %13, %35 : vector<14x14xf32>
    %37 = arith.addf %11, %36 : vector<14x14xf32>
    %c0_5 = arith.constant 0 : index
    %c0_6 = arith.constant 0 : index
    %c0_7 = arith.constant 0 : index
    %c1_8 = arith.constant 1 : index
    %38 = vector.load %arg2[%c0_5, %c0_6, %c0_7, %c1_8] : memref<2x3x16x16xf32, #tpu.memory_space<vmem>>, vector<1x1x14x14xf32>
    %39 = vector.shape_cast %38 : vector<1x1x14x14xf32> to vector<14x14xf32>
    %c1_9 = arith.constant 1 : index
    %40 = memref.load %arg3[%c1_9] : memref<162xf32, #tpu.memory_space<smem>>
    %41 = vector.broadcast %40 : f32 to vector<14x14xf32>
    %42 = arith.mulf %39, %41 : vector<14x14xf32>
    %43 = arith.addf %17, %42 : vector<14x14xf32>
    %c28 = arith.constant 28 : index
    %44 = memref.load %arg3[%c28] : memref<162xf32, #tpu.memory_space<smem>>
    %45 = vector.broadcast %44 : f32 to vector<14x14xf32>
    %46 = arith.mulf %39, %45 : vector<14x14xf32>
    %47 = arith.addf %21, %46 : vector<14x14xf32>
    %c55 = arith.constant 55 : index
    %48 = memref.load %arg3[%c55] : memref<162xf32, #tpu.memory_space<smem>>
    %49 = vector.broadcast %48 : f32 to vector<14x14xf32>
    %50 = arith.mulf %39, %49 : vector<14x14xf32>
    %51 = arith.addf %25, %50 : vector<14x14xf32>
    %c82 = arith.constant 82 : index
    %52 = memref.load %arg3[%c82] : memref<162xf32, #tpu.memory_space<smem>>
    %53 = vector.broadcast %52 : f32 to vector<14x14xf32>
    %54 = arith.mulf %39, %53 : vector<14x14xf32>
    %55 = arith.addf %29, %54 : vector<14x14xf32>
    %c109 = arith.constant 109 : index
    %56 = memref.load %arg3[%c109] : memref<162xf32, #tpu.memory_space<smem>>
    %57 = vector.broadcast %56 : f32 to vector<14x14xf32>
    %58 = arith.mulf %39, %57 : vector<14x14xf32>
    %59 = arith.addf %33, %58 : vector<14x14xf32>
    %c136 = arith.constant 136 : index
    %60 = memref.load %arg3[%c136] : memref<162xf32, #tpu.memory_space<smem>>
    %61 = vector.broadcast %60 : f32 to vector<14x14xf32>
    %62 = arith.mulf %39, %61 : vector<14x14xf32>
    %63 = arith.addf %37, %62 : vector<14x14xf32>
    %c0_10 = arith.constant 0 : index
    %c0_11 = arith.constant 0 : index
    %c0_12 = arith.constant 0 : index
    %c2_13 = arith.constant 2 : index
    %64 = vector.load %arg2[%c0_10, %c0_11, %c0_12, %c2_13] : memref<2x3x16x16xf32, #tpu.memory_space<vmem>>, vector<1x1x14x14xf32>
    %65 = vector.shape_cast %64 : vector<1x1x14x14xf32> to vector<14x14xf32>
    %c2_14 = arith.constant 2 : index
    %66 = memref.load %arg3[%c2_14] : memref<162xf32, #tpu.memory_space<smem>>
    %67 = vector.broadcast %66 : f32 to vector<14x14xf32>
    %68 = arith.mulf %65, %67 : vector<14x14xf32>
    %69 = arith.addf %43, %68 : vector<14x14xf32>
    %c29 = arith.constant 29 : index
    %70 = memref.load %arg3[%c29] : memref<162xf32, #tpu.memory_space<smem>>
    %71 = vector.broadcast %70 : f32 to vector<14x14xf32>
    %72 = arith.mulf %65, %71 : vector<14x14xf32>
    %73 = arith.addf %47, %72 : vector<14x14xf32>
    %c56 = arith.constant 56 : index
    %74 = memref.load %arg3[%c56] : memref<162xf32, #tpu.memory_space<smem>>
    %75 = vector.broadcast %74 : f32 to vector<14x14xf32>
    %76 = arith.mulf %65, %75 : vector<14x14xf32>
    %77 = arith.addf %51, %76 : vector<14x14xf32>
    %c83 = arith.constant 83 : index
    %78 = memref.load %arg3[%c83] : memref<162xf32, #tpu.memory_space<smem>>
    %79 = vector.broadcast %78 : f32 to vector<14x14xf32>
    %80 = arith.mulf %65, %79 : vector<14x14xf32>
    %81 = arith.addf %55, %80 : vector<14x14xf32>
    %c110 = arith.constant 110 : index
    %82 = memref.load %arg3[%c110] : memref<162xf32, #tpu.memory_space<smem>>
    %83 = vector.broadcast %82 : f32 to vector<14x14xf32>
    %84 = arith.mulf %65, %83 : vector<14x14xf32>
    %85 = arith.addf %59, %84 : vector<14x14xf32>
    %c137 = arith.constant 137 : index
    %86 = memref.load %arg3[%c137] : memref<162xf32, #tpu.memory_space<smem>>
    %87 = vector.broadcast %86 : f32 to vector<14x14xf32>
    %88 = arith.mulf %65, %87 : vector<14x14xf32>
    %89 = arith.addf %63, %88 : vector<14x14xf32>
    %c0_15 = arith.constant 0 : index
    %c0_16 = arith.constant 0 : index
    %c1_17 = arith.constant 1 : index
    %c0_18 = arith.constant 0 : index
    %90 = vector.load %arg2[%c0_15, %c0_16, %c1_17, %c0_18] : memref<2x3x16x16xf32, #tpu.memory_space<vmem>>, vector<1x1x14x14xf32>
    %91 = vector.shape_cast %90 : vector<1x1x14x14xf32> to vector<14x14xf32>
    %c3_19 = arith.constant 3 : index
    %92 = memref.load %arg3[%c3_19] : memref<162xf32, #tpu.memory_space<smem>>
    %93 = vector.broadcast %92 : f32 to vector<14x14xf32>
    %94 = arith.mulf %91, %93 : vector<14x14xf32>
    %95 = arith.addf %69, %94 : vector<14x14xf32>
    %c30 = arith.constant 30 : index
    %96 = memref.load %arg3[%c30] : memref<162xf32, #tpu.memory_space<smem>>
    %97 = vector.broadcast %96 : f32 to vector<14x14xf32>
    %98 = arith.mulf %91, %97 : vector<14x14xf32>
    %99 = arith.addf %73, %98 : vector<14x14xf32>
    %c57 = arith.constant 57 : index
    %100 = memref.load %arg3[%c57] : memref<162xf32, #tpu.memory_space<smem>>
    %101 = vector.broadcast %100 : f32 to vector<14x14xf32>
    %102 = arith.mulf %91, %101 : vector<14x14xf32>
    %103 = arith.addf %77, %102 : vector<14x14xf32>
    %c84 = arith.constant 84 : index
    %104 = memref.load %arg3[%c84] : memref<162xf32, #tpu.memory_space<smem>>
    %105 = vector.broadcast %104 : f32 to vector<14x14xf32>
    %106 = arith.mulf %91, %105 : vector<14x14xf32>
    %107 = arith.addf %81, %106 : vector<14x14xf32>
    %c111 = arith.constant 111 : index
    %108 = memref.load %arg3[%c111] : memref<162xf32, #tpu.memory_space<smem>>
    %109 = vector.broadcast %108 : f32 to vector<14x14xf32>
    %110 = arith.mulf %91, %109 : vector<14x14xf32>
    %111 = arith.addf %85, %110 : vector<14x14xf32>
    %c138 = arith.constant 138 : index
    %112 = memref.load %arg3[%c138] : memref<162xf32, #tpu.memory_space<smem>>
    %113 = vector.broadcast %112 : f32 to vector<14x14xf32>
    %114 = arith.mulf %91, %113 : vector<14x14xf32>
    %115 = arith.addf %89, %114 : vector<14x14xf32>
    %c0_20 = arith.constant 0 : index
    %c0_21 = arith.constant 0 : index
    %c1_22 = arith.constant 1 : index
    %c1_23 = arith.constant 1 : index
    %116 = vector.load %arg2[%c0_20, %c0_21, %c1_22, %c1_23] : memref<2x3x16x16xf32, #tpu.memory_space<vmem>>, vector<1x1x14x14xf32>
    %117 = vector.shape_cast %116 : vector<1x1x14x14xf32> to vector<14x14xf32>
    %c4_24 = arith.constant 4 : index
    %118 = memref.load %arg3[%c4_24] : memref<162xf32, #tpu.memory_space<smem>>
    %119 = vector.broadcast %118 : f32 to vector<14x14xf32>
    %120 = arith.mulf %117, %119 : vector<14x14xf32>
    %121 = arith.addf %95, %120 : vector<14x14xf32>
    %c31 = arith.constant 31 : index
    %122 = memref.load %arg3[%c31] : memref<162xf32, #tpu.memory_space<smem>>
    %123 = vector.broadcast %122 : f32 to vector<14x14xf32>
    %124 = arith.mulf %117, %123 : vector<14x14xf32>
    %125 = arith.addf %99, %124 : vector<14x14xf32>
    %c58 = arith.constant 58 : index
    %126 = memref.load %arg3[%c58] : memref<162xf32, #tpu.memory_space<smem>>
    %127 = vector.broadcast %126 : f32 to vector<14x14xf32>
    %128 = arith.mulf %117, %127 : vector<14x14xf32>
    %129 = arith.addf %103, %128 : vector<14x14xf32>
    %c85 = arith.constant 85 : index
    %130 = memref.load %arg3[%c85] : memref<162xf32, #tpu.memory_space<smem>>
    %131 = vector.broadcast %130 : f32 to vector<14x14xf32>
    %132 = arith.mulf %117, %131 : vector<14x14xf32>
    %133 = arith.addf %107, %132 : vector<14x14xf32>
    %c112 = arith.constant 112 : index
    %134 = memref.load %arg3[%c112] : memref<162xf32, #tpu.memory_space<smem>>
    %135 = vector.broadcast %134 : f32 to vector<14x14xf32>
    %136 = arith.mulf %117, %135 : vector<14x14xf32>
    %137 = arith.addf %111, %136 : vector<14x14xf32>
    %c139 = arith.constant 139 : index
    %138 = memref.load %arg3[%c139] : memref<162xf32, #tpu.memory_space<smem>>
    %139 = vector.broadcast %138 : f32 to vector<14x14xf32>
    %140 = arith.mulf %117, %139 : vector<14x14xf32>
    %141 = arith.addf %115, %140 : vector<14x14xf32>
    %c0_25 = arith.constant 0 : index
    %c0_26 = arith.constant 0 : index
    %c1_27 = arith.constant 1 : index
    %c2_28 = arith.constant 2 : index
    %142 = vector.load %arg2[%c0_25, %c0_26, %c1_27, %c2_28] : memref<2x3x16x16xf32, #tpu.memory_space<vmem>>, vector<1x1x14x14xf32>
    %143 = vector.shape_cast %142 : vector<1x1x14x14xf32> to vector<14x14xf32>
    %c5_29 = arith.constant 5 : index
    %144 = memref.load %arg3[%c5_29] : memref<162xf32, #tpu.memory_space<smem>>
    %145 = vector.broadcast %144 : f32 to vector<14x14xf32>
    %146 = arith.mulf %143, %145 : vector<14x14xf32>
    %147 = arith.addf %121, %146 : vector<14x14xf32>
    %c32 = arith.constant 32 : index
    %148 = memref.load %arg3[%c32] : memref<162xf32, #tpu.memory_space<smem>>
    %149 = vector.broadcast %148 : f32 to vector<14x14xf32>
    %150 = arith.mulf %143, %149 : vector<14x14xf32>
    %151 = arith.addf %125, %150 : vector<14x14xf32>
    %c59 = arith.constant 59 : index
    %152 = memref.load %arg3[%c59] : memref<162xf32, #tpu.memory_space<smem>>
    %153 = vector.broadcast %152 : f32 to vector<14x14xf32>
    %154 = arith.mulf %143, %153 : vector<14x14xf32>
    %155 = arith.addf %129, %154 : vector<14x14xf32>
    %c86 = arith.constant 86 : index
    %156 = memref.load %arg3[%c86] : memref<162xf32, #tpu.memory_space<smem>>
    %157 = vector.broadcast %156 : f32 to vector<14x14xf32>
    %158 = arith.mulf %143, %157 : vector<14x14xf32>
    %159 = arith.addf %133, %158 : vector<14x14xf32>
    %c113 = arith.constant 113 : index
    %160 = memref.load %arg3[%c113] : memref<162xf32, #tpu.memory_space<smem>>
    %161 = vector.broadcast %160 : f32 to vector<14x14xf32>
    %162 = arith.mulf %143, %161 : vector<14x14xf32>
    %163 = arith.addf %137, %162 : vector<14x14xf32>
    %c140 = arith.constant 140 : index
    %164 = memref.load %arg3[%c140] : memref<162xf32, #tpu.memory_space<smem>>
    %165 = vector.broadcast %164 : f32 to vector<14x14xf32>
    %166 = arith.mulf %143, %165 : vector<14x14xf32>
    %167 = arith.addf %141, %166 : vector<14x14xf32>
    %c0_30 = arith.constant 0 : index
    %c0_31 = arith.constant 0 : index
    %c2_32 = arith.constant 2 : index
    %c0_33 = arith.constant 0 : index
    %168 = vector.load %arg2[%c0_30, %c0_31, %c2_32, %c0_33] : memref<2x3x16x16xf32, #tpu.memory_space<vmem>>, vector<1x1x14x14xf32>
    %169 = vector.shape_cast %168 : vector<1x1x14x14xf32> to vector<14x14xf32>
    %c6 = arith.constant 6 : index
    %170 = memref.load %arg3[%c6] : memref<162xf32, #tpu.memory_space<smem>>
    %171 = vector.broadcast %170 : f32 to vector<14x14xf32>
    %172 = arith.mulf %169, %171 : vector<14x14xf32>
    %173 = arith.addf %147, %172 : vector<14x14xf32>
    %c33 = arith.constant 33 : index
    %174 = memref.load %arg3[%c33] : memref<162xf32, #tpu.memory_space<smem>>
    %175 = vector.broadcast %174 : f32 to vector<14x14xf32>
    %176 = arith.mulf %169, %175 : vector<14x14xf32>
    %177 = arith.addf %151, %176 : vector<14x14xf32>
    %c60 = arith.constant 60 : index
    %178 = memref.load %arg3[%c60] : memref<162xf32, #tpu.memory_space<smem>>
    %179 = vector.broadcast %178 : f32 to vector<14x14xf32>
    %180 = arith.mulf %169, %179 : vector<14x14xf32>
    %181 = arith.addf %155, %180 : vector<14x14xf32>
    %c87 = arith.constant 87 : index
    %182 = memref.load %arg3[%c87] : memref<162xf32, #tpu.memory_space<smem>>
    %183 = vector.broadcast %182 : f32 to vector<14x14xf32>
    %184 = arith.mulf %169, %183 : vector<14x14xf32>
    %185 = arith.addf %159, %184 : vector<14x14xf32>
    %c114 = arith.constant 114 : index
    %186 = memref.load %arg3[%c114] : memref<162xf32, #tpu.memory_space<smem>>
    %187 = vector.broadcast %186 : f32 to vector<14x14xf32>
    %188 = arith.mulf %169, %187 : vector<14x14xf32>
    %189 = arith.addf %163, %188 : vector<14x14xf32>
    %c141 = arith.constant 141 : index
    %190 = memref.load %arg3[%c141] : memref<162xf32, #tpu.memory_space<smem>>
    %191 = vector.broadcast %190 : f32 to vector<14x14xf32>
    %192 = arith.mulf %169, %191 : vector<14x14xf32>
    %193 = arith.addf %167, %192 : vector<14x14xf32>
    %c0_34 = arith.constant 0 : index
    %c0_35 = arith.constant 0 : index
    %c2_36 = arith.constant 2 : index
    %c1_37 = arith.constant 1 : index
    %194 = vector.load %arg2[%c0_34, %c0_35, %c2_36, %c1_37] : memref<2x3x16x16xf32, #tpu.memory_space<vmem>>, vector<1x1x14x14xf32>
    %195 = vector.shape_cast %194 : vector<1x1x14x14xf32> to vector<14x14xf32>
    %c7 = arith.constant 7 : index
    %196 = memref.load %arg3[%c7] : memref<162xf32, #tpu.memory_space<smem>>
    %197 = vector.broadcast %196 : f32 to vector<14x14xf32>
    %198 = arith.mulf %195, %197 : vector<14x14xf32>
    %199 = arith.addf %173, %198 : vector<14x14xf32>
    %c34 = arith.constant 34 : index
    %200 = memref.load %arg3[%c34] : memref<162xf32, #tpu.memory_space<smem>>
    %201 = vector.broadcast %200 : f32 to vector<14x14xf32>
    %202 = arith.mulf %195, %201 : vector<14x14xf32>
    %203 = arith.addf %177, %202 : vector<14x14xf32>
    %c61 = arith.constant 61 : index
    %204 = memref.load %arg3[%c61] : memref<162xf32, #tpu.memory_space<smem>>
    %205 = vector.broadcast %204 : f32 to vector<14x14xf32>
    %206 = arith.mulf %195, %205 : vector<14x14xf32>
    %207 = arith.addf %181, %206 : vector<14x14xf32>
    %c88 = arith.constant 88 : index
    %208 = memref.load %arg3[%c88] : memref<162xf32, #tpu.memory_space<smem>>
    %209 = vector.broadcast %208 : f32 to vector<14x14xf32>
    %210 = arith.mulf %195, %209 : vector<14x14xf32>
    %211 = arith.addf %185, %210 : vector<14x14xf32>
    %c115 = arith.constant 115 : index
    %212 = memref.load %arg3[%c115] : memref<162xf32, #tpu.memory_space<smem>>
    %213 = vector.broadcast %212 : f32 to vector<14x14xf32>
    %214 = arith.mulf %195, %213 : vector<14x14xf32>
    %215 = arith.addf %189, %214 : vector<14x14xf32>
    %c142 = arith.constant 142 : index
    %216 = memref.load %arg3[%c142] : memref<162xf32, #tpu.memory_space<smem>>
    %217 = vector.broadcast %216 : f32 to vector<14x14xf32>
    %218 = arith.mulf %195, %217 : vector<14x14xf32>
    %219 = arith.addf %193, %218 : vector<14x14xf32>
    %c0_38 = arith.constant 0 : index
    %c0_39 = arith.constant 0 : index
    %c2_40 = arith.constant 2 : index
    %c2_41 = arith.constant 2 : index
    %220 = vector.load %arg2[%c0_38, %c0_39, %c2_40, %c2_41] : memref<2x3x16x16xf32, #tpu.memory_space<vmem>>, vector<1x1x14x14xf32>
    %221 = vector.shape_cast %220 : vector<1x1x14x14xf32> to vector<14x14xf32>
    %c8 = arith.constant 8 : index
    %222 = memref.load %arg3[%c8] : memref<162xf32, #tpu.memory_space<smem>>
    %223 = vector.broadcast %222 : f32 to vector<14x14xf32>
    %224 = arith.mulf %221, %223 : vector<14x14xf32>
    %225 = arith.addf %199, %224 : vector<14x14xf32>
    %c35 = arith.constant 35 : index
    %226 = memref.load %arg3[%c35] : memref<162xf32, #tpu.memory_space<smem>>
    %227 = vector.broadcast %226 : f32 to vector<14x14xf32>
    %228 = arith.mulf %221, %227 : vector<14x14xf32>
    %229 = arith.addf %203, %228 : vector<14x14xf32>
    %c62 = arith.constant 62 : index
    %230 = memref.load %arg3[%c62] : memref<162xf32, #tpu.memory_space<smem>>
    %231 = vector.broadcast %230 : f32 to vector<14x14xf32>
    %232 = arith.mulf %221, %231 : vector<14x14xf32>
    %233 = arith.addf %207, %232 : vector<14x14xf32>
    %c89 = arith.constant 89 : index
    %234 = memref.load %arg3[%c89] : memref<162xf32, #tpu.memory_space<smem>>
    %235 = vector.broadcast %234 : f32 to vector<14x14xf32>
    %236 = arith.mulf %221, %235 : vector<14x14xf32>
    %237 = arith.addf %211, %236 : vector<14x14xf32>
    %c116 = arith.constant 116 : index
    %238 = memref.load %arg3[%c116] : memref<162xf32, #tpu.memory_space<smem>>
    %239 = vector.broadcast %238 : f32 to vector<14x14xf32>
    %240 = arith.mulf %221, %239 : vector<14x14xf32>
    %241 = arith.addf %215, %240 : vector<14x14xf32>
    %c143 = arith.constant 143 : index
    %242 = memref.load %arg3[%c143] : memref<162xf32, #tpu.memory_space<smem>>
    %243 = vector.broadcast %242 : f32 to vector<14x14xf32>
    %244 = arith.mulf %221, %243 : vector<14x14xf32>
    %245 = arith.addf %219, %244 : vector<14x14xf32>
    %c0_42 = arith.constant 0 : index
    %c1_43 = arith.constant 1 : index
    %c0_44 = arith.constant 0 : index
    %c0_45 = arith.constant 0 : index
    %246 = vector.load %arg2[%c0_42, %c1_43, %c0_44, %c0_45] : memref<2x3x16x16xf32, #tpu.memory_space<vmem>>, vector<1x1x14x14xf32>
    %247 = vector.shape_cast %246 : vector<1x1x14x14xf32> to vector<14x14xf32>
    %c9 = arith.constant 9 : index
    %248 = memref.load %arg3[%c9] : memref<162xf32, #tpu.memory_space<smem>>
    %249 = vector.broadcast %248 : f32 to vector<14x14xf32>
    %250 = arith.mulf %247, %249 : vector<14x14xf32>
    %251 = arith.addf %225, %250 : vector<14x14xf32>
    %c36 = arith.constant 36 : index
    %252 = memref.load %arg3[%c36] : memref<162xf32, #tpu.memory_space<smem>>
    %253 = vector.broadcast %252 : f32 to vector<14x14xf32>
    %254 = arith.mulf %247, %253 : vector<14x14xf32>
    %255 = arith.addf %229, %254 : vector<14x14xf32>
    %c63 = arith.constant 63 : index
    %256 = memref.load %arg3[%c63] : memref<162xf32, #tpu.memory_space<smem>>
    %257 = vector.broadcast %256 : f32 to vector<14x14xf32>
    %258 = arith.mulf %247, %257 : vector<14x14xf32>
    %259 = arith.addf %233, %258 : vector<14x14xf32>
    %c90 = arith.constant 90 : index
    %260 = memref.load %arg3[%c90] : memref<162xf32, #tpu.memory_space<smem>>
    %261 = vector.broadcast %260 : f32 to vector<14x14xf32>
    %262 = arith.mulf %247, %261 : vector<14x14xf32>
    %263 = arith.addf %237, %262 : vector<14x14xf32>
    %c117 = arith.constant 117 : index
    %264 = memref.load %arg3[%c117] : memref<162xf32, #tpu.memory_space<smem>>
    %265 = vector.broadcast %264 : f32 to vector<14x14xf32>
    %266 = arith.mulf %247, %265 : vector<14x14xf32>
    %267 = arith.addf %241, %266 : vector<14x14xf32>
    %c144 = arith.constant 144 : index
    %268 = memref.load %arg3[%c144] : memref<162xf32, #tpu.memory_space<smem>>
    %269 = vector.broadcast %268 : f32 to vector<14x14xf32>
    %270 = arith.mulf %247, %269 : vector<14x14xf32>
    %271 = arith.addf %245, %270 : vector<14x14xf32>
    %c0_46 = arith.constant 0 : index
    %c1_47 = arith.constant 1 : index
    %c0_48 = arith.constant 0 : index
    %c1_49 = arith.constant 1 : index
    %272 = vector.load %arg2[%c0_46, %c1_47, %c0_48, %c1_49] : memref<2x3x16x16xf32, #tpu.memory_space<vmem>>, vector<1x1x14x14xf32>
    %273 = vector.shape_cast %272 : vector<1x1x14x14xf32> to vector<14x14xf32>
    %c10 = arith.constant 10 : index
    %274 = memref.load %arg3[%c10] : memref<162xf32, #tpu.memory_space<smem>>
    %275 = vector.broadcast %274 : f32 to vector<14x14xf32>
    %276 = arith.mulf %273, %275 : vector<14x14xf32>
    %277 = arith.addf %251, %276 : vector<14x14xf32>
    %c37 = arith.constant 37 : index
    %278 = memref.load %arg3[%c37] : memref<162xf32, #tpu.memory_space<smem>>
    %279 = vector.broadcast %278 : f32 to vector<14x14xf32>
    %280 = arith.mulf %273, %279 : vector<14x14xf32>
    %281 = arith.addf %255, %280 : vector<14x14xf32>
    %c64 = arith.constant 64 : index
    %282 = memref.load %arg3[%c64] : memref<162xf32, #tpu.memory_space<smem>>
    %283 = vector.broadcast %282 : f32 to vector<14x14xf32>
    %284 = arith.mulf %273, %283 : vector<14x14xf32>
    %285 = arith.addf %259, %284 : vector<14x14xf32>
    %c91 = arith.constant 91 : index
    %286 = memref.load %arg3[%c91] : memref<162xf32, #tpu.memory_space<smem>>
    %287 = vector.broadcast %286 : f32 to vector<14x14xf32>
    %288 = arith.mulf %273, %287 : vector<14x14xf32>
    %289 = arith.addf %263, %288 : vector<14x14xf32>
    %c118 = arith.constant 118 : index
    %290 = memref.load %arg3[%c118] : memref<162xf32, #tpu.memory_space<smem>>
    %291 = vector.broadcast %290 : f32 to vector<14x14xf32>
    %292 = arith.mulf %273, %291 : vector<14x14xf32>
    %293 = arith.addf %267, %292 : vector<14x14xf32>
    %c145 = arith.constant 145 : index
    %294 = memref.load %arg3[%c145] : memref<162xf32, #tpu.memory_space<smem>>
    %295 = vector.broadcast %294 : f32 to vector<14x14xf32>
    %296 = arith.mulf %273, %295 : vector<14x14xf32>
    %297 = arith.addf %271, %296 : vector<14x14xf32>
    %c0_50 = arith.constant 0 : index
    %c1_51 = arith.constant 1 : index
    %c0_52 = arith.constant 0 : index
    %c2_53 = arith.constant 2 : index
    %298 = vector.load %arg2[%c0_50, %c1_51, %c0_52, %c2_53] : memref<2x3x16x16xf32, #tpu.memory_space<vmem>>, vector<1x1x14x14xf32>
    %299 = vector.shape_cast %298 : vector<1x1x14x14xf32> to vector<14x14xf32>
    %c11 = arith.constant 11 : index
    %300 = memref.load %arg3[%c11] : memref<162xf32, #tpu.memory_space<smem>>
    %301 = vector.broadcast %300 : f32 to vector<14x14xf32>
    %302 = arith.mulf %299, %301 : vector<14x14xf32>
    %303 = arith.addf %277, %302 : vector<14x14xf32>
    %c38 = arith.constant 38 : index
    %304 = memref.load %arg3[%c38] : memref<162xf32, #tpu.memory_space<smem>>
    %305 = vector.broadcast %304 : f32 to vector<14x14xf32>
    %306 = arith.mulf %299, %305 : vector<14x14xf32>
    %307 = arith.addf %281, %306 : vector<14x14xf32>
    %c65 = arith.constant 65 : index
    %308 = memref.load %arg3[%c65] : memref<162xf32, #tpu.memory_space<smem>>
    %309 = vector.broadcast %308 : f32 to vector<14x14xf32>
    %310 = arith.mulf %299, %309 : vector<14x14xf32>
    %311 = arith.addf %285, %310 : vector<14x14xf32>
    %c92 = arith.constant 92 : index
    %312 = memref.load %arg3[%c92] : memref<162xf32, #tpu.memory_space<smem>>
    %313 = vector.broadcast %312 : f32 to vector<14x14xf32>
    %314 = arith.mulf %299, %313 : vector<14x14xf32>
    %315 = arith.addf %289, %314 : vector<14x14xf32>
    %c119 = arith.constant 119 : index
    %316 = memref.load %arg3[%c119] : memref<162xf32, #tpu.memory_space<smem>>
    %317 = vector.broadcast %316 : f32 to vector<14x14xf32>
    %318 = arith.mulf %299, %317 : vector<14x14xf32>
    %319 = arith.addf %293, %318 : vector<14x14xf32>
    %c146 = arith.constant 146 : index
    %320 = memref.load %arg3[%c146] : memref<162xf32, #tpu.memory_space<smem>>
    %321 = vector.broadcast %320 : f32 to vector<14x14xf32>
    %322 = arith.mulf %299, %321 : vector<14x14xf32>
    %323 = arith.addf %297, %322 : vector<14x14xf32>
    %c0_54 = arith.constant 0 : index
    %c1_55 = arith.constant 1 : index
    %c1_56 = arith.constant 1 : index
    %c0_57 = arith.constant 0 : index
    %324 = vector.load %arg2[%c0_54, %c1_55, %c1_56, %c0_57] : memref<2x3x16x16xf32, #tpu.memory_space<vmem>>, vector<1x1x14x14xf32>
    %325 = vector.shape_cast %324 : vector<1x1x14x14xf32> to vector<14x14xf32>
    %c12 = arith.constant 12 : index
    %326 = memref.load %arg3[%c12] : memref<162xf32, #tpu.memory_space<smem>>
    %327 = vector.broadcast %326 : f32 to vector<14x14xf32>
    %328 = arith.mulf %325, %327 : vector<14x14xf32>
    %329 = arith.addf %303, %328 : vector<14x14xf32>
    %c39 = arith.constant 39 : index
    %330 = memref.load %arg3[%c39] : memref<162xf32, #tpu.memory_space<smem>>
    %331 = vector.broadcast %330 : f32 to vector<14x14xf32>
    %332 = arith.mulf %325, %331 : vector<14x14xf32>
    %333 = arith.addf %307, %332 : vector<14x14xf32>
    %c66 = arith.constant 66 : index
    %334 = memref.load %arg3[%c66] : memref<162xf32, #tpu.memory_space<smem>>
    %335 = vector.broadcast %334 : f32 to vector<14x14xf32>
    %336 = arith.mulf %325, %335 : vector<14x14xf32>
    %337 = arith.addf %311, %336 : vector<14x14xf32>
    %c93 = arith.constant 93 : index
    %338 = memref.load %arg3[%c93] : memref<162xf32, #tpu.memory_space<smem>>
    %339 = vector.broadcast %338 : f32 to vector<14x14xf32>
    %340 = arith.mulf %325, %339 : vector<14x14xf32>
    %341 = arith.addf %315, %340 : vector<14x14xf32>
    %c120 = arith.constant 120 : index
    %342 = memref.load %arg3[%c120] : memref<162xf32, #tpu.memory_space<smem>>
    %343 = vector.broadcast %342 : f32 to vector<14x14xf32>
    %344 = arith.mulf %325, %343 : vector<14x14xf32>
    %345 = arith.addf %319, %344 : vector<14x14xf32>
    %c147 = arith.constant 147 : index
    %346 = memref.load %arg3[%c147] : memref<162xf32, #tpu.memory_space<smem>>
    %347 = vector.broadcast %346 : f32 to vector<14x14xf32>
    %348 = arith.mulf %325, %347 : vector<14x14xf32>
    %349 = arith.addf %323, %348 : vector<14x14xf32>
    %c0_58 = arith.constant 0 : index
    %c1_59 = arith.constant 1 : index
    %c1_60 = arith.constant 1 : index
    %c1_61 = arith.constant 1 : index
    %350 = vector.load %arg2[%c0_58, %c1_59, %c1_60, %c1_61] : memref<2x3x16x16xf32, #tpu.memory_space<vmem>>, vector<1x1x14x14xf32>
    %351 = vector.shape_cast %350 : vector<1x1x14x14xf32> to vector<14x14xf32>
    %c13 = arith.constant 13 : index
    %352 = memref.load %arg3[%c13] : memref<162xf32, #tpu.memory_space<smem>>
    %353 = vector.broadcast %352 : f32 to vector<14x14xf32>
    %354 = arith.mulf %351, %353 : vector<14x14xf32>
    %355 = arith.addf %329, %354 : vector<14x14xf32>
    %c40 = arith.constant 40 : index
    %356 = memref.load %arg3[%c40] : memref<162xf32, #tpu.memory_space<smem>>
    %357 = vector.broadcast %356 : f32 to vector<14x14xf32>
    %358 = arith.mulf %351, %357 : vector<14x14xf32>
    %359 = arith.addf %333, %358 : vector<14x14xf32>
    %c67 = arith.constant 67 : index
    %360 = memref.load %arg3[%c67] : memref<162xf32, #tpu.memory_space<smem>>
    %361 = vector.broadcast %360 : f32 to vector<14x14xf32>
    %362 = arith.mulf %351, %361 : vector<14x14xf32>
    %363 = arith.addf %337, %362 : vector<14x14xf32>
    %c94 = arith.constant 94 : index
    %364 = memref.load %arg3[%c94] : memref<162xf32, #tpu.memory_space<smem>>
    %365 = vector.broadcast %364 : f32 to vector<14x14xf32>
    %366 = arith.mulf %351, %365 : vector<14x14xf32>
    %367 = arith.addf %341, %366 : vector<14x14xf32>
    %c121 = arith.constant 121 : index
    %368 = memref.load %arg3[%c121] : memref<162xf32, #tpu.memory_space<smem>>
    %369 = vector.broadcast %368 : f32 to vector<14x14xf32>
    %370 = arith.mulf %351, %369 : vector<14x14xf32>
    %371 = arith.addf %345, %370 : vector<14x14xf32>
    %c148 = arith.constant 148 : index
    %372 = memref.load %arg3[%c148] : memref<162xf32, #tpu.memory_space<smem>>
    %373 = vector.broadcast %372 : f32 to vector<14x14xf32>
    %374 = arith.mulf %351, %373 : vector<14x14xf32>
    %375 = arith.addf %349, %374 : vector<14x14xf32>
    %c0_62 = arith.constant 0 : index
    %c1_63 = arith.constant 1 : index
    %c1_64 = arith.constant 1 : index
    %c2_65 = arith.constant 2 : index
    %376 = vector.load %arg2[%c0_62, %c1_63, %c1_64, %c2_65] : memref<2x3x16x16xf32, #tpu.memory_space<vmem>>, vector<1x1x14x14xf32>
    %377 = vector.shape_cast %376 : vector<1x1x14x14xf32> to vector<14x14xf32>
    %c14 = arith.constant 14 : index
    %378 = memref.load %arg3[%c14] : memref<162xf32, #tpu.memory_space<smem>>
    %379 = vector.broadcast %378 : f32 to vector<14x14xf32>
    %380 = arith.mulf %377, %379 : vector<14x14xf32>
    %381 = arith.addf %355, %380 : vector<14x14xf32>
    %c41 = arith.constant 41 : index
    %382 = memref.load %arg3[%c41] : memref<162xf32, #tpu.memory_space<smem>>
    %383 = vector.broadcast %382 : f32 to vector<14x14xf32>
    %384 = arith.mulf %377, %383 : vector<14x14xf32>
    %385 = arith.addf %359, %384 : vector<14x14xf32>
    %c68 = arith.constant 68 : index
    %386 = memref.load %arg3[%c68] : memref<162xf32, #tpu.memory_space<smem>>
    %387 = vector.broadcast %386 : f32 to vector<14x14xf32>
    %388 = arith.mulf %377, %387 : vector<14x14xf32>
    %389 = arith.addf %363, %388 : vector<14x14xf32>
    %c95 = arith.constant 95 : index
    %390 = memref.load %arg3[%c95] : memref<162xf32, #tpu.memory_space<smem>>
    %391 = vector.broadcast %390 : f32 to vector<14x14xf32>
    %392 = arith.mulf %377, %391 : vector<14x14xf32>
    %393 = arith.addf %367, %392 : vector<14x14xf32>
    %c122 = arith.constant 122 : index
    %394 = memref.load %arg3[%c122] : memref<162xf32, #tpu.memory_space<smem>>
    %395 = vector.broadcast %394 : f32 to vector<14x14xf32>
    %396 = arith.mulf %377, %395 : vector<14x14xf32>
    %397 = arith.addf %371, %396 : vector<14x14xf32>
    %c149 = arith.constant 149 : index
    %398 = memref.load %arg3[%c149] : memref<162xf32, #tpu.memory_space<smem>>
    %399 = vector.broadcast %398 : f32 to vector<14x14xf32>
    %400 = arith.mulf %377, %399 : vector<14x14xf32>
    %401 = arith.addf %375, %400 : vector<14x14xf32>
    %c0_66 = arith.constant 0 : index
    %c1_67 = arith.constant 1 : index
    %c2_68 = arith.constant 2 : index
    %c0_69 = arith.constant 0 : index
    %402 = vector.load %arg2[%c0_66, %c1_67, %c2_68, %c0_69] : memref<2x3x16x16xf32, #tpu.memory_space<vmem>>, vector<1x1x14x14xf32>
    %403 = vector.shape_cast %402 : vector<1x1x14x14xf32> to vector<14x14xf32>
    %c15 = arith.constant 15 : index
    %404 = memref.load %arg3[%c15] : memref<162xf32, #tpu.memory_space<smem>>
    %405 = vector.broadcast %404 : f32 to vector<14x14xf32>
    %406 = arith.mulf %403, %405 : vector<14x14xf32>
    %407 = arith.addf %381, %406 : vector<14x14xf32>
    %c42 = arith.constant 42 : index
    %408 = memref.load %arg3[%c42] : memref<162xf32, #tpu.memory_space<smem>>
    %409 = vector.broadcast %408 : f32 to vector<14x14xf32>
    %410 = arith.mulf %403, %409 : vector<14x14xf32>
    %411 = arith.addf %385, %410 : vector<14x14xf32>
    %c69 = arith.constant 69 : index
    %412 = memref.load %arg3[%c69] : memref<162xf32, #tpu.memory_space<smem>>
    %413 = vector.broadcast %412 : f32 to vector<14x14xf32>
    %414 = arith.mulf %403, %413 : vector<14x14xf32>
    %415 = arith.addf %389, %414 : vector<14x14xf32>
    %c96 = arith.constant 96 : index
    %416 = memref.load %arg3[%c96] : memref<162xf32, #tpu.memory_space<smem>>
    %417 = vector.broadcast %416 : f32 to vector<14x14xf32>
    %418 = arith.mulf %403, %417 : vector<14x14xf32>
    %419 = arith.addf %393, %418 : vector<14x14xf32>
    %c123 = arith.constant 123 : index
    %420 = memref.load %arg3[%c123] : memref<162xf32, #tpu.memory_space<smem>>
    %421 = vector.broadcast %420 : f32 to vector<14x14xf32>
    %422 = arith.mulf %403, %421 : vector<14x14xf32>
    %423 = arith.addf %397, %422 : vector<14x14xf32>
    %c150 = arith.constant 150 : index
    %424 = memref.load %arg3[%c150] : memref<162xf32, #tpu.memory_space<smem>>
    %425 = vector.broadcast %424 : f32 to vector<14x14xf32>
    %426 = arith.mulf %403, %425 : vector<14x14xf32>
    %427 = arith.addf %401, %426 : vector<14x14xf32>
    %c0_70 = arith.constant 0 : index
    %c1_71 = arith.constant 1 : index
    %c2_72 = arith.constant 2 : index
    %c1_73 = arith.constant 1 : index
    %428 = vector.load %arg2[%c0_70, %c1_71, %c2_72, %c1_73] : memref<2x3x16x16xf32, #tpu.memory_space<vmem>>, vector<1x1x14x14xf32>
    %429 = vector.shape_cast %428 : vector<1x1x14x14xf32> to vector<14x14xf32>
    %c16 = arith.constant 16 : index
    %430 = memref.load %arg3[%c16] : memref<162xf32, #tpu.memory_space<smem>>
    %431 = vector.broadcast %430 : f32 to vector<14x14xf32>
    %432 = arith.mulf %429, %431 : vector<14x14xf32>
    %433 = arith.addf %407, %432 : vector<14x14xf32>
    %c43 = arith.constant 43 : index
    %434 = memref.load %arg3[%c43] : memref<162xf32, #tpu.memory_space<smem>>
    %435 = vector.broadcast %434 : f32 to vector<14x14xf32>
    %436 = arith.mulf %429, %435 : vector<14x14xf32>
    %437 = arith.addf %411, %436 : vector<14x14xf32>
    %c70 = arith.constant 70 : index
    %438 = memref.load %arg3[%c70] : memref<162xf32, #tpu.memory_space<smem>>
    %439 = vector.broadcast %438 : f32 to vector<14x14xf32>
    %440 = arith.mulf %429, %439 : vector<14x14xf32>
    %441 = arith.addf %415, %440 : vector<14x14xf32>
    %c97 = arith.constant 97 : index
    %442 = memref.load %arg3[%c97] : memref<162xf32, #tpu.memory_space<smem>>
    %443 = vector.broadcast %442 : f32 to vector<14x14xf32>
    %444 = arith.mulf %429, %443 : vector<14x14xf32>
    %445 = arith.addf %419, %444 : vector<14x14xf32>
    %c124 = arith.constant 124 : index
    %446 = memref.load %arg3[%c124] : memref<162xf32, #tpu.memory_space<smem>>
    %447 = vector.broadcast %446 : f32 to vector<14x14xf32>
    %448 = arith.mulf %429, %447 : vector<14x14xf32>
    %449 = arith.addf %423, %448 : vector<14x14xf32>
    %c151 = arith.constant 151 : index
    %450 = memref.load %arg3[%c151] : memref<162xf32, #tpu.memory_space<smem>>
    %451 = vector.broadcast %450 : f32 to vector<14x14xf32>
    %452 = arith.mulf %429, %451 : vector<14x14xf32>
    %453 = arith.addf %427, %452 : vector<14x14xf32>
    %c0_74 = arith.constant 0 : index
    %c1_75 = arith.constant 1 : index
    %c2_76 = arith.constant 2 : index
    %c2_77 = arith.constant 2 : index
    %454 = vector.load %arg2[%c0_74, %c1_75, %c2_76, %c2_77] : memref<2x3x16x16xf32, #tpu.memory_space<vmem>>, vector<1x1x14x14xf32>
    %455 = vector.shape_cast %454 : vector<1x1x14x14xf32> to vector<14x14xf32>
    %c17 = arith.constant 17 : index
    %456 = memref.load %arg3[%c17] : memref<162xf32, #tpu.memory_space<smem>>
    %457 = vector.broadcast %456 : f32 to vector<14x14xf32>
    %458 = arith.mulf %455, %457 : vector<14x14xf32>
    %459 = arith.addf %433, %458 : vector<14x14xf32>
    %c44 = arith.constant 44 : index
    %460 = memref.load %arg3[%c44] : memref<162xf32, #tpu.memory_space<smem>>
    %461 = vector.broadcast %460 : f32 to vector<14x14xf32>
    %462 = arith.mulf %455, %461 : vector<14x14xf32>
    %463 = arith.addf %437, %462 : vector<14x14xf32>
    %c71 = arith.constant 71 : index
    %464 = memref.load %arg3[%c71] : memref<162xf32, #tpu.memory_space<smem>>
    %465 = vector.broadcast %464 : f32 to vector<14x14xf32>
    %466 = arith.mulf %455, %465 : vector<14x14xf32>
    %467 = arith.addf %441, %466 : vector<14x14xf32>
    %c98 = arith.constant 98 : index
    %468 = memref.load %arg3[%c98] : memref<162xf32, #tpu.memory_space<smem>>
    %469 = vector.broadcast %468 : f32 to vector<14x14xf32>
    %470 = arith.mulf %455, %469 : vector<14x14xf32>
    %471 = arith.addf %445, %470 : vector<14x14xf32>
    %c125 = arith.constant 125 : index
    %472 = memref.load %arg3[%c125] : memref<162xf32, #tpu.memory_space<smem>>
    %473 = vector.broadcast %472 : f32 to vector<14x14xf32>
    %474 = arith.mulf %455, %473 : vector<14x14xf32>
    %475 = arith.addf %449, %474 : vector<14x14xf32>
    %c152 = arith.constant 152 : index
    %476 = memref.load %arg3[%c152] : memref<162xf32, #tpu.memory_space<smem>>
    %477 = vector.broadcast %476 : f32 to vector<14x14xf32>
    %478 = arith.mulf %455, %477 : vector<14x14xf32>
    %479 = arith.addf %453, %478 : vector<14x14xf32>
    %c0_78 = arith.constant 0 : index
    %c2_79 = arith.constant 2 : index
    %c0_80 = arith.constant 0 : index
    %c0_81 = arith.constant 0 : index
    %480 = vector.load %arg2[%c0_78, %c2_79, %c0_80, %c0_81] : memref<2x3x16x16xf32, #tpu.memory_space<vmem>>, vector<1x1x14x14xf32>
    %481 = vector.shape_cast %480 : vector<1x1x14x14xf32> to vector<14x14xf32>
    %c18 = arith.constant 18 : index
    %482 = memref.load %arg3[%c18] : memref<162xf32, #tpu.memory_space<smem>>
    %483 = vector.broadcast %482 : f32 to vector<14x14xf32>
    %484 = arith.mulf %481, %483 : vector<14x14xf32>
    %485 = arith.addf %459, %484 : vector<14x14xf32>
    %c45 = arith.constant 45 : index
    %486 = memref.load %arg3[%c45] : memref<162xf32, #tpu.memory_space<smem>>
    %487 = vector.broadcast %486 : f32 to vector<14x14xf32>
    %488 = arith.mulf %481, %487 : vector<14x14xf32>
    %489 = arith.addf %463, %488 : vector<14x14xf32>
    %c72 = arith.constant 72 : index
    %490 = memref.load %arg3[%c72] : memref<162xf32, #tpu.memory_space<smem>>
    %491 = vector.broadcast %490 : f32 to vector<14x14xf32>
    %492 = arith.mulf %481, %491 : vector<14x14xf32>
    %493 = arith.addf %467, %492 : vector<14x14xf32>
    %c99 = arith.constant 99 : index
    %494 = memref.load %arg3[%c99] : memref<162xf32, #tpu.memory_space<smem>>
    %495 = vector.broadcast %494 : f32 to vector<14x14xf32>
    %496 = arith.mulf %481, %495 : vector<14x14xf32>
    %497 = arith.addf %471, %496 : vector<14x14xf32>
    %c126 = arith.constant 126 : index
    %498 = memref.load %arg3[%c126] : memref<162xf32, #tpu.memory_space<smem>>
    %499 = vector.broadcast %498 : f32 to vector<14x14xf32>
    %500 = arith.mulf %481, %499 : vector<14x14xf32>
    %501 = arith.addf %475, %500 : vector<14x14xf32>
    %c153 = arith.constant 153 : index
    %502 = memref.load %arg3[%c153] : memref<162xf32, #tpu.memory_space<smem>>
    %503 = vector.broadcast %502 : f32 to vector<14x14xf32>
    %504 = arith.mulf %481, %503 : vector<14x14xf32>
    %505 = arith.addf %479, %504 : vector<14x14xf32>
    %c0_82 = arith.constant 0 : index
    %c2_83 = arith.constant 2 : index
    %c0_84 = arith.constant 0 : index
    %c1_85 = arith.constant 1 : index
    %506 = vector.load %arg2[%c0_82, %c2_83, %c0_84, %c1_85] : memref<2x3x16x16xf32, #tpu.memory_space<vmem>>, vector<1x1x14x14xf32>
    %507 = vector.shape_cast %506 : vector<1x1x14x14xf32> to vector<14x14xf32>
    %c19 = arith.constant 19 : index
    %508 = memref.load %arg3[%c19] : memref<162xf32, #tpu.memory_space<smem>>
    %509 = vector.broadcast %508 : f32 to vector<14x14xf32>
    %510 = arith.mulf %507, %509 : vector<14x14xf32>
    %511 = arith.addf %485, %510 : vector<14x14xf32>
    %c46 = arith.constant 46 : index
    %512 = memref.load %arg3[%c46] : memref<162xf32, #tpu.memory_space<smem>>
    %513 = vector.broadcast %512 : f32 to vector<14x14xf32>
    %514 = arith.mulf %507, %513 : vector<14x14xf32>
    %515 = arith.addf %489, %514 : vector<14x14xf32>
    %c73 = arith.constant 73 : index
    %516 = memref.load %arg3[%c73] : memref<162xf32, #tpu.memory_space<smem>>
    %517 = vector.broadcast %516 : f32 to vector<14x14xf32>
    %518 = arith.mulf %507, %517 : vector<14x14xf32>
    %519 = arith.addf %493, %518 : vector<14x14xf32>
    %c100 = arith.constant 100 : index
    %520 = memref.load %arg3[%c100] : memref<162xf32, #tpu.memory_space<smem>>
    %521 = vector.broadcast %520 : f32 to vector<14x14xf32>
    %522 = arith.mulf %507, %521 : vector<14x14xf32>
    %523 = arith.addf %497, %522 : vector<14x14xf32>
    %c127 = arith.constant 127 : index
    %524 = memref.load %arg3[%c127] : memref<162xf32, #tpu.memory_space<smem>>
    %525 = vector.broadcast %524 : f32 to vector<14x14xf32>
    %526 = arith.mulf %507, %525 : vector<14x14xf32>
    %527 = arith.addf %501, %526 : vector<14x14xf32>
    %c154 = arith.constant 154 : index
    %528 = memref.load %arg3[%c154] : memref<162xf32, #tpu.memory_space<smem>>
    %529 = vector.broadcast %528 : f32 to vector<14x14xf32>
    %530 = arith.mulf %507, %529 : vector<14x14xf32>
    %531 = arith.addf %505, %530 : vector<14x14xf32>
    %c0_86 = arith.constant 0 : index
    %c2_87 = arith.constant 2 : index
    %c0_88 = arith.constant 0 : index
    %c2_89 = arith.constant 2 : index
    %532 = vector.load %arg2[%c0_86, %c2_87, %c0_88, %c2_89] : memref<2x3x16x16xf32, #tpu.memory_space<vmem>>, vector<1x1x14x14xf32>
    %533 = vector.shape_cast %532 : vector<1x1x14x14xf32> to vector<14x14xf32>
    %c20 = arith.constant 20 : index
    %534 = memref.load %arg3[%c20] : memref<162xf32, #tpu.memory_space<smem>>
    %535 = vector.broadcast %534 : f32 to vector<14x14xf32>
    %536 = arith.mulf %533, %535 : vector<14x14xf32>
    %537 = arith.addf %511, %536 : vector<14x14xf32>
    %c47 = arith.constant 47 : index
    %538 = memref.load %arg3[%c47] : memref<162xf32, #tpu.memory_space<smem>>
    %539 = vector.broadcast %538 : f32 to vector<14x14xf32>
    %540 = arith.mulf %533, %539 : vector<14x14xf32>
    %541 = arith.addf %515, %540 : vector<14x14xf32>
    %c74 = arith.constant 74 : index
    %542 = memref.load %arg3[%c74] : memref<162xf32, #tpu.memory_space<smem>>
    %543 = vector.broadcast %542 : f32 to vector<14x14xf32>
    %544 = arith.mulf %533, %543 : vector<14x14xf32>
    %545 = arith.addf %519, %544 : vector<14x14xf32>
    %c101 = arith.constant 101 : index
    %546 = memref.load %arg3[%c101] : memref<162xf32, #tpu.memory_space<smem>>
    %547 = vector.broadcast %546 : f32 to vector<14x14xf32>
    %548 = arith.mulf %533, %547 : vector<14x14xf32>
    %549 = arith.addf %523, %548 : vector<14x14xf32>
    %c128 = arith.constant 128 : index
    %550 = memref.load %arg3[%c128] : memref<162xf32, #tpu.memory_space<smem>>
    %551 = vector.broadcast %550 : f32 to vector<14x14xf32>
    %552 = arith.mulf %533, %551 : vector<14x14xf32>
    %553 = arith.addf %527, %552 : vector<14x14xf32>
    %c155 = arith.constant 155 : index
    %554 = memref.load %arg3[%c155] : memref<162xf32, #tpu.memory_space<smem>>
    %555 = vector.broadcast %554 : f32 to vector<14x14xf32>
    %556 = arith.mulf %533, %555 : vector<14x14xf32>
    %557 = arith.addf %531, %556 : vector<14x14xf32>
    %c0_90 = arith.constant 0 : index
    %c2_91 = arith.constant 2 : index
    %c1_92 = arith.constant 1 : index
    %c0_93 = arith.constant 0 : index
    %558 = vector.load %arg2[%c0_90, %c2_91, %c1_92, %c0_93] : memref<2x3x16x16xf32, #tpu.memory_space<vmem>>, vector<1x1x14x14xf32>
    %559 = vector.shape_cast %558 : vector<1x1x14x14xf32> to vector<14x14xf32>
    %c21 = arith.constant 21 : index
    %560 = memref.load %arg3[%c21] : memref<162xf32, #tpu.memory_space<smem>>
    %561 = vector.broadcast %560 : f32 to vector<14x14xf32>
    %562 = arith.mulf %559, %561 : vector<14x14xf32>
    %563 = arith.addf %537, %562 : vector<14x14xf32>
    %c48 = arith.constant 48 : index
    %564 = memref.load %arg3[%c48] : memref<162xf32, #tpu.memory_space<smem>>
    %565 = vector.broadcast %564 : f32 to vector<14x14xf32>
    %566 = arith.mulf %559, %565 : vector<14x14xf32>
    %567 = arith.addf %541, %566 : vector<14x14xf32>
    %c75 = arith.constant 75 : index
    %568 = memref.load %arg3[%c75] : memref<162xf32, #tpu.memory_space<smem>>
    %569 = vector.broadcast %568 : f32 to vector<14x14xf32>
    %570 = arith.mulf %559, %569 : vector<14x14xf32>
    %571 = arith.addf %545, %570 : vector<14x14xf32>
    %c102 = arith.constant 102 : index
    %572 = memref.load %arg3[%c102] : memref<162xf32, #tpu.memory_space<smem>>
    %573 = vector.broadcast %572 : f32 to vector<14x14xf32>
    %574 = arith.mulf %559, %573 : vector<14x14xf32>
    %575 = arith.addf %549, %574 : vector<14x14xf32>
    %c129 = arith.constant 129 : index
    %576 = memref.load %arg3[%c129] : memref<162xf32, #tpu.memory_space<smem>>
    %577 = vector.broadcast %576 : f32 to vector<14x14xf32>
    %578 = arith.mulf %559, %577 : vector<14x14xf32>
    %579 = arith.addf %553, %578 : vector<14x14xf32>
    %c156 = arith.constant 156 : index
    %580 = memref.load %arg3[%c156] : memref<162xf32, #tpu.memory_space<smem>>
    %581 = vector.broadcast %580 : f32 to vector<14x14xf32>
    %582 = arith.mulf %559, %581 : vector<14x14xf32>
    %583 = arith.addf %557, %582 : vector<14x14xf32>
    %c0_94 = arith.constant 0 : index
    %c2_95 = arith.constant 2 : index
    %c1_96 = arith.constant 1 : index
    %c1_97 = arith.constant 1 : index
    %584 = vector.load %arg2[%c0_94, %c2_95, %c1_96, %c1_97] : memref<2x3x16x16xf32, #tpu.memory_space<vmem>>, vector<1x1x14x14xf32>
    %585 = vector.shape_cast %584 : vector<1x1x14x14xf32> to vector<14x14xf32>
    %c22 = arith.constant 22 : index
    %586 = memref.load %arg3[%c22] : memref<162xf32, #tpu.memory_space<smem>>
    %587 = vector.broadcast %586 : f32 to vector<14x14xf32>
    %588 = arith.mulf %585, %587 : vector<14x14xf32>
    %589 = arith.addf %563, %588 : vector<14x14xf32>
    %c49 = arith.constant 49 : index
    %590 = memref.load %arg3[%c49] : memref<162xf32, #tpu.memory_space<smem>>
    %591 = vector.broadcast %590 : f32 to vector<14x14xf32>
    %592 = arith.mulf %585, %591 : vector<14x14xf32>
    %593 = arith.addf %567, %592 : vector<14x14xf32>
    %c76 = arith.constant 76 : index
    %594 = memref.load %arg3[%c76] : memref<162xf32, #tpu.memory_space<smem>>
    %595 = vector.broadcast %594 : f32 to vector<14x14xf32>
    %596 = arith.mulf %585, %595 : vector<14x14xf32>
    %597 = arith.addf %571, %596 : vector<14x14xf32>
    %c103 = arith.constant 103 : index
    %598 = memref.load %arg3[%c103] : memref<162xf32, #tpu.memory_space<smem>>
    %599 = vector.broadcast %598 : f32 to vector<14x14xf32>
    %600 = arith.mulf %585, %599 : vector<14x14xf32>
    %601 = arith.addf %575, %600 : vector<14x14xf32>
    %c130 = arith.constant 130 : index
    %602 = memref.load %arg3[%c130] : memref<162xf32, #tpu.memory_space<smem>>
    %603 = vector.broadcast %602 : f32 to vector<14x14xf32>
    %604 = arith.mulf %585, %603 : vector<14x14xf32>
    %605 = arith.addf %579, %604 : vector<14x14xf32>
    %c157 = arith.constant 157 : index
    %606 = memref.load %arg3[%c157] : memref<162xf32, #tpu.memory_space<smem>>
    %607 = vector.broadcast %606 : f32 to vector<14x14xf32>
    %608 = arith.mulf %585, %607 : vector<14x14xf32>
    %609 = arith.addf %583, %608 : vector<14x14xf32>
    %c0_98 = arith.constant 0 : index
    %c2_99 = arith.constant 2 : index
    %c1_100 = arith.constant 1 : index
    %c2_101 = arith.constant 2 : index
    %610 = vector.load %arg2[%c0_98, %c2_99, %c1_100, %c2_101] : memref<2x3x16x16xf32, #tpu.memory_space<vmem>>, vector<1x1x14x14xf32>
    %611 = vector.shape_cast %610 : vector<1x1x14x14xf32> to vector<14x14xf32>
    %c23 = arith.constant 23 : index
    %612 = memref.load %arg3[%c23] : memref<162xf32, #tpu.memory_space<smem>>
    %613 = vector.broadcast %612 : f32 to vector<14x14xf32>
    %614 = arith.mulf %611, %613 : vector<14x14xf32>
    %615 = arith.addf %589, %614 : vector<14x14xf32>
    %c50 = arith.constant 50 : index
    %616 = memref.load %arg3[%c50] : memref<162xf32, #tpu.memory_space<smem>>
    %617 = vector.broadcast %616 : f32 to vector<14x14xf32>
    %618 = arith.mulf %611, %617 : vector<14x14xf32>
    %619 = arith.addf %593, %618 : vector<14x14xf32>
    %c77 = arith.constant 77 : index
    %620 = memref.load %arg3[%c77] : memref<162xf32, #tpu.memory_space<smem>>
    %621 = vector.broadcast %620 : f32 to vector<14x14xf32>
    %622 = arith.mulf %611, %621 : vector<14x14xf32>
    %623 = arith.addf %597, %622 : vector<14x14xf32>
    %c104 = arith.constant 104 : index
    %624 = memref.load %arg3[%c104] : memref<162xf32, #tpu.memory_space<smem>>
    %625 = vector.broadcast %624 : f32 to vector<14x14xf32>
    %626 = arith.mulf %611, %625 : vector<14x14xf32>
    %627 = arith.addf %601, %626 : vector<14x14xf32>
    %c131 = arith.constant 131 : index
    %628 = memref.load %arg3[%c131] : memref<162xf32, #tpu.memory_space<smem>>
    %629 = vector.broadcast %628 : f32 to vector<14x14xf32>
    %630 = arith.mulf %611, %629 : vector<14x14xf32>
    %631 = arith.addf %605, %630 : vector<14x14xf32>
    %c158 = arith.constant 158 : index
    %632 = memref.load %arg3[%c158] : memref<162xf32, #tpu.memory_space<smem>>
    %633 = vector.broadcast %632 : f32 to vector<14x14xf32>
    %634 = arith.mulf %611, %633 : vector<14x14xf32>
    %635 = arith.addf %609, %634 : vector<14x14xf32>
    %c0_102 = arith.constant 0 : index
    %c2_103 = arith.constant 2 : index
    %c2_104 = arith.constant 2 : index
    %c0_105 = arith.constant 0 : index
    %636 = vector.load %arg2[%c0_102, %c2_103, %c2_104, %c0_105] : memref<2x3x16x16xf32, #tpu.memory_space<vmem>>, vector<1x1x14x14xf32>
    %637 = vector.shape_cast %636 : vector<1x1x14x14xf32> to vector<14x14xf32>
    %c24 = arith.constant 24 : index
    %638 = memref.load %arg3[%c24] : memref<162xf32, #tpu.memory_space<smem>>
    %639 = vector.broadcast %638 : f32 to vector<14x14xf32>
    %640 = arith.mulf %637, %639 : vector<14x14xf32>
    %641 = arith.addf %615, %640 : vector<14x14xf32>
    %c51 = arith.constant 51 : index
    %642 = memref.load %arg3[%c51] : memref<162xf32, #tpu.memory_space<smem>>
    %643 = vector.broadcast %642 : f32 to vector<14x14xf32>
    %644 = arith.mulf %637, %643 : vector<14x14xf32>
    %645 = arith.addf %619, %644 : vector<14x14xf32>
    %c78 = arith.constant 78 : index
    %646 = memref.load %arg3[%c78] : memref<162xf32, #tpu.memory_space<smem>>
    %647 = vector.broadcast %646 : f32 to vector<14x14xf32>
    %648 = arith.mulf %637, %647 : vector<14x14xf32>
    %649 = arith.addf %623, %648 : vector<14x14xf32>
    %c105 = arith.constant 105 : index
    %650 = memref.load %arg3[%c105] : memref<162xf32, #tpu.memory_space<smem>>
    %651 = vector.broadcast %650 : f32 to vector<14x14xf32>
    %652 = arith.mulf %637, %651 : vector<14x14xf32>
    %653 = arith.addf %627, %652 : vector<14x14xf32>
    %c132 = arith.constant 132 : index
    %654 = memref.load %arg3[%c132] : memref<162xf32, #tpu.memory_space<smem>>
    %655 = vector.broadcast %654 : f32 to vector<14x14xf32>
    %656 = arith.mulf %637, %655 : vector<14x14xf32>
    %657 = arith.addf %631, %656 : vector<14x14xf32>
    %c159 = arith.constant 159 : index
    %658 = memref.load %arg3[%c159] : memref<162xf32, #tpu.memory_space<smem>>
    %659 = vector.broadcast %658 : f32 to vector<14x14xf32>
    %660 = arith.mulf %637, %659 : vector<14x14xf32>
    %661 = arith.addf %635, %660 : vector<14x14xf32>
    %c0_106 = arith.constant 0 : index
    %c2_107 = arith.constant 2 : index
    %c2_108 = arith.constant 2 : index
    %c1_109 = arith.constant 1 : index
    %662 = vector.load %arg2[%c0_106, %c2_107, %c2_108, %c1_109] : memref<2x3x16x16xf32, #tpu.memory_space<vmem>>, vector<1x1x14x14xf32>
    %663 = vector.shape_cast %662 : vector<1x1x14x14xf32> to vector<14x14xf32>
    %c25 = arith.constant 25 : index
    %664 = memref.load %arg3[%c25] : memref<162xf32, #tpu.memory_space<smem>>
    %665 = vector.broadcast %664 : f32 to vector<14x14xf32>
    %666 = arith.mulf %663, %665 : vector<14x14xf32>
    %667 = arith.addf %641, %666 : vector<14x14xf32>
    %c52 = arith.constant 52 : index
    %668 = memref.load %arg3[%c52] : memref<162xf32, #tpu.memory_space<smem>>
    %669 = vector.broadcast %668 : f32 to vector<14x14xf32>
    %670 = arith.mulf %663, %669 : vector<14x14xf32>
    %671 = arith.addf %645, %670 : vector<14x14xf32>
    %c79 = arith.constant 79 : index
    %672 = memref.load %arg3[%c79] : memref<162xf32, #tpu.memory_space<smem>>
    %673 = vector.broadcast %672 : f32 to vector<14x14xf32>
    %674 = arith.mulf %663, %673 : vector<14x14xf32>
    %675 = arith.addf %649, %674 : vector<14x14xf32>
    %c106 = arith.constant 106 : index
    %676 = memref.load %arg3[%c106] : memref<162xf32, #tpu.memory_space<smem>>
    %677 = vector.broadcast %676 : f32 to vector<14x14xf32>
    %678 = arith.mulf %663, %677 : vector<14x14xf32>
    %679 = arith.addf %653, %678 : vector<14x14xf32>
    %c133 = arith.constant 133 : index
    %680 = memref.load %arg3[%c133] : memref<162xf32, #tpu.memory_space<smem>>
    %681 = vector.broadcast %680 : f32 to vector<14x14xf32>
    %682 = arith.mulf %663, %681 : vector<14x14xf32>
    %683 = arith.addf %657, %682 : vector<14x14xf32>
    %c160 = arith.constant 160 : index
    %684 = memref.load %arg3[%c160] : memref<162xf32, #tpu.memory_space<smem>>
    %685 = vector.broadcast %684 : f32 to vector<14x14xf32>
    %686 = arith.mulf %663, %685 : vector<14x14xf32>
    %687 = arith.addf %661, %686 : vector<14x14xf32>
    %c0_110 = arith.constant 0 : index
    %c2_111 = arith.constant 2 : index
    %c2_112 = arith.constant 2 : index
    %c2_113 = arith.constant 2 : index
    %688 = vector.load %arg2[%c0_110, %c2_111, %c2_112, %c2_113] : memref<2x3x16x16xf32, #tpu.memory_space<vmem>>, vector<1x1x14x14xf32>
    %689 = vector.shape_cast %688 : vector<1x1x14x14xf32> to vector<14x14xf32>
    %c26 = arith.constant 26 : index
    %690 = memref.load %arg3[%c26] : memref<162xf32, #tpu.memory_space<smem>>
    %691 = vector.broadcast %690 : f32 to vector<14x14xf32>
    %692 = arith.mulf %689, %691 : vector<14x14xf32>
    %693 = arith.addf %667, %692 : vector<14x14xf32>
    %c53 = arith.constant 53 : index
    %694 = memref.load %arg3[%c53] : memref<162xf32, #tpu.memory_space<smem>>
    %695 = vector.broadcast %694 : f32 to vector<14x14xf32>
    %696 = arith.mulf %689, %695 : vector<14x14xf32>
    %697 = arith.addf %671, %696 : vector<14x14xf32>
    %c80 = arith.constant 80 : index
    %698 = memref.load %arg3[%c80] : memref<162xf32, #tpu.memory_space<smem>>
    %699 = vector.broadcast %698 : f32 to vector<14x14xf32>
    %700 = arith.mulf %689, %699 : vector<14x14xf32>
    %701 = arith.addf %675, %700 : vector<14x14xf32>
    %c107 = arith.constant 107 : index
    %702 = memref.load %arg3[%c107] : memref<162xf32, #tpu.memory_space<smem>>
    %703 = vector.broadcast %702 : f32 to vector<14x14xf32>
    %704 = arith.mulf %689, %703 : vector<14x14xf32>
    %705 = arith.addf %679, %704 : vector<14x14xf32>
    %c134 = arith.constant 134 : index
    %706 = memref.load %arg3[%c134] : memref<162xf32, #tpu.memory_space<smem>>
    %707 = vector.broadcast %706 : f32 to vector<14x14xf32>
    %708 = arith.mulf %689, %707 : vector<14x14xf32>
    %709 = arith.addf %683, %708 : vector<14x14xf32>
    %c161 = arith.constant 161 : index
    %710 = memref.load %arg3[%c161] : memref<162xf32, #tpu.memory_space<smem>>
    %711 = vector.broadcast %710 : f32 to vector<14x14xf32>
    %712 = arith.mulf %689, %711 : vector<14x14xf32>
    %713 = arith.addf %687, %712 : vector<14x14xf32>
    %c0_114 = arith.constant 0 : index
    %c0_115 = arith.constant 0 : index
    %c0_116 = arith.constant 0 : index
    %c0_117 = arith.constant 0 : index
    %714 = vector.load %arg5[%c0_114, %c0_115, %c0_116, %c0_117] : memref<2x6x14x14xf32, #tpu.memory_space<vmem>>, vector<1x1x14x14xf32>
    %715 = vector.shape_cast %714 : vector<1x1x14x14xf32> to vector<14x14xf32>
    %716 = vector.shape_cast %693 : vector<14x14xf32> to vector<1x1x14x14xf32>
    tpu.vector_store %arg5[%c0_114, %c0_115, %c0_116, %c0_117], %716 {strides = array<i32>} : memref<2x6x14x14xf32, #tpu.memory_space<vmem>>, vector<1x1x14x14xf32>,
    %c0_118 = arith.constant 0 : index
    %c1_119 = arith.constant 1 : index
    %c0_120 = arith.constant 0 : index
    %c0_121 = arith.constant 0 : index
    %717 = vector.load %arg5[%c0_118, %c1_119, %c0_120, %c0_121] : memref<2x6x14x14xf32, #tpu.memory_space<vmem>>, vector<1x1x14x14xf32>
    %718 = vector.shape_cast %717 : vector<1x1x14x14xf32> to vector<14x14xf32>
    %719 = vector.shape_cast %697 : vector<14x14xf32> to vector<1x1x14x14xf32>
    tpu.vector_store %arg5[%c0_118, %c1_119, %c0_120, %c0_121], %719 {strides = array<i32>} : memref<2x6x14x14xf32, #tpu.memory_space<vmem>>, vector<1x1x14x14xf32>,
    %c0_122 = arith.constant 0 : index
    %c2_123 = arith.constant 2 : index
    %c0_124 = arith.constant 0 : index
    %c0_125 = arith.constant 0 : index
    %720 = vector.load %arg5[%c0_122, %c2_123, %c0_124, %c0_125] : memref<2x6x14x14xf32, #tpu.memory_space<vmem>>, vector<1x1x14x14xf32>
    %721 = vector.shape_cast %720 : vector<1x1x14x14xf32> to vector<14x14xf32>
    %722 = vector.shape_cast %701 : vector<14x14xf32> to vector<1x1x14x14xf32>
    tpu.vector_store %arg5[%c0_122, %c2_123, %c0_124, %c0_125], %722 {strides = array<i32>} : memref<2x6x14x14xf32, #tpu.memory_space<vmem>>, vector<1x1x14x14xf32>,
    %c0_126 = arith.constant 0 : index
    %c3_127 = arith.constant 3 : index
    %c0_128 = arith.constant 0 : index
    %c0_129 = arith.constant 0 : index
    %723 = vector.load %arg5[%c0_126, %c3_127, %c0_128, %c0_129] : memref<2x6x14x14xf32, #tpu.memory_space<vmem>>, vector<1x1x14x14xf32>
    %724 = vector.shape_cast %723 : vector<1x1x14x14xf32> to vector<14x14xf32>
    %725 = vector.shape_cast %705 : vector<14x14xf32> to vector<1x1x14x14xf32>
    tpu.vector_store %arg5[%c0_126, %c3_127, %c0_128, %c0_129], %725 {strides = array<i32>} : memref<2x6x14x14xf32, #tpu.memory_space<vmem>>, vector<1x1x14x14xf32>,
    %c0_130 = arith.constant 0 : index
    %c4_131 = arith.constant 4 : index
    %c0_132 = arith.constant 0 : index
    %c0_133 = arith.constant 0 : index
    %726 = vector.load %arg5[%c0_130, %c4_131, %c0_132, %c0_133] : memref<2x6x14x14xf32, #tpu.memory_space<vmem>>, vector<1x1x14x14xf32>
    %727 = vector.shape_cast %726 : vector<1x1x14x14xf32> to vector<14x14xf32>
    %728 = vector.shape_cast %709 : vector<14x14xf32> to vector<1x1x14x14xf32>
    tpu.vector_store %arg5[%c0_130, %c4_131, %c0_132, %c0_133], %728 {strides = array<i32>} : memref<2x6x14x14xf32, #tpu.memory_space<vmem>>, vector<1x1x14x14xf32>,
    %c0_134 = arith.constant 0 : index
    %c5_135 = arith.constant 5 : index
    %c0_136 = arith.constant 0 : index
    %c0_137 = arith.constant 0 : index
    %729 = vector.load %arg5[%c0_134, %c5_135, %c0_136, %c0_137] : memref<2x6x14x14xf32, #tpu.memory_space<vmem>>, vector<1x1x14x14xf32>
    %730 = vector.shape_cast %729 : vector<1x1x14x14xf32> to vector<14x14xf32>
    %731 = vector.shape_cast %713 : vector<14x14xf32> to vector<1x1x14x14xf32>
    tpu.vector_store %arg5[%c0_134, %c5_135, %c0_136, %c0_137], %731 {strides = array<i32>} : memref<2x6x14x14xf32, #tpu.memory_space<vmem>>, vector<1x1x14x14xf32>,
    %c0_138 = arith.constant 0 : index
    %732 = memref.load %arg4[%c0_138] : memref<6xf32, #tpu.memory_space<smem>>
    %733 = vector.broadcast %732 : f32 to vector<14x14xf32>
    %c1_139 = arith.constant 1 : index
    %734 = memref.load %arg4[%c1_139] : memref<6xf32, #tpu.memory_space<smem>>
    %735 = vector.broadcast %734 : f32 to vector<14x14xf32>
    %c2_140 = arith.constant 2 : index
    %736 = memref.load %arg4[%c2_140] : memref<6xf32, #tpu.memory_space<smem>>
    %737 = vector.broadcast %736 : f32 to vector<14x14xf32>
    %c3_141 = arith.constant 3 : index
    %738 = memref.load %arg4[%c3_141] : memref<6xf32, #tpu.memory_space<smem>>
    %739 = vector.broadcast %738 : f32 to vector<14x14xf32>
    %c4_142 = arith.constant 4 : index
    %740 = memref.load %arg4[%c4_142] : memref<6xf32, #tpu.memory_space<smem>>
    %741 = vector.broadcast %740 : f32 to vector<14x14xf32>
    %c5_143 = arith.constant 5 : index
    %742 = memref.load %arg4[%c5_143] : memref<6xf32, #tpu.memory_space<smem>>
    %743 = vector.broadcast %742 : f32 to vector<14x14xf32>
    %c1_144 = arith.constant 1 : index
    %c0_145 = arith.constant 0 : index
    %c0_146 = arith.constant 0 : index
    %c0_147 = arith.constant 0 : index
    %744 = vector.load %arg2[%c1_144, %c0_145, %c0_146, %c0_147] : memref<2x3x16x16xf32, #tpu.memory_space<vmem>>, vector<1x1x14x14xf32>
    %745 = vector.shape_cast %744 : vector<1x1x14x14xf32> to vector<14x14xf32>
    %c0_148 = arith.constant 0 : index
    %746 = memref.load %arg3[%c0_148] : memref<162xf32, #tpu.memory_space<smem>>
    %747 = vector.broadcast %746 : f32 to vector<14x14xf32>
    %748 = arith.mulf %745, %747 : vector<14x14xf32>
    %749 = arith.addf %733, %748 : vector<14x14xf32>
    %c27_149 = arith.constant 27 : index
    %750 = memref.load %arg3[%c27_149] : memref<162xf32, #tpu.memory_space<smem>>
    %751 = vector.broadcast %750 : f32 to vector<14x14xf32>
    %752 = arith.mulf %745, %751 : vector<14x14xf32>
    %753 = arith.addf %735, %752 : vector<14x14xf32>
    %c54_150 = arith.constant 54 : index
    %754 = memref.load %arg3[%c54_150] : memref<162xf32, #tpu.memory_space<smem>>
    %755 = vector.broadcast %754 : f32 to vector<14x14xf32>
    %756 = arith.mulf %745, %755 : vector<14x14xf32>
    %757 = arith.addf %737, %756 : vector<14x14xf32>
    %c81_151 = arith.constant 81 : index
    %758 = memref.load %arg3[%c81_151] : memref<162xf32, #tpu.memory_space<smem>>
    %759 = vector.broadcast %758 : f32 to vector<14x14xf32>
    %760 = arith.mulf %745, %759 : vector<14x14xf32>
    %761 = arith.addf %739, %760 : vector<14x14xf32>
    %c108_152 = arith.constant 108 : index
    %762 = memref.load %arg3[%c108_152] : memref<162xf32, #tpu.memory_space<smem>>
    %763 = vector.broadcast %762 : f32 to vector<14x14xf32>
    %764 = arith.mulf %745, %763 : vector<14x14xf32>
    %765 = arith.addf %741, %764 : vector<14x14xf32>
    %c135_153 = arith.constant 135 : index
    %766 = memref.load %arg3[%c135_153] : memref<162xf32, #tpu.memory_space<smem>>
    %767 = vector.broadcast %766 : f32 to vector<14x14xf32>
    %768 = arith.mulf %745, %767 : vector<14x14xf32>
    %769 = arith.addf %743, %768 : vector<14x14xf32>
    %c1_154 = arith.constant 1 : index
    %c0_155 = arith.constant 0 : index
    %c0_156 = arith.constant 0 : index
    %c1_157 = arith.constant 1 : index
    %770 = vector.load %arg2[%c1_154, %c0_155, %c0_156, %c1_157] : memref<2x3x16x16xf32, #tpu.memory_space<vmem>>, vector<1x1x14x14xf32>
    %771 = vector.shape_cast %770 : vector<1x1x14x14xf32> to vector<14x14xf32>
    %c1_158 = arith.constant 1 : index
    %772 = memref.load %arg3[%c1_158] : memref<162xf32, #tpu.memory_space<smem>>
    %773 = vector.broadcast %772 : f32 to vector<14x14xf32>
    %774 = arith.mulf %771, %773 : vector<14x14xf32>
    %775 = arith.addf %749, %774 : vector<14x14xf32>
    %c28_159 = arith.constant 28 : index
    %776 = memref.load %arg3[%c28_159] : memref<162xf32, #tpu.memory_space<smem>>
    %777 = vector.broadcast %776 : f32 to vector<14x14xf32>
    %778 = arith.mulf %771, %777 : vector<14x14xf32>
    %779 = arith.addf %753, %778 : vector<14x14xf32>
    %c55_160 = arith.constant 55 : index
    %780 = memref.load %arg3[%c55_160] : memref<162xf32, #tpu.memory_space<smem>>
    %781 = vector.broadcast %780 : f32 to vector<14x14xf32>
    %782 = arith.mulf %771, %781 : vector<14x14xf32>
    %783 = arith.addf %757, %782 : vector<14x14xf32>
    %c82_161 = arith.constant 82 : index
    %784 = memref.load %arg3[%c82_161] : memref<162xf32, #tpu.memory_space<smem>>
    %785 = vector.broadcast %784 : f32 to vector<14x14xf32>
    %786 = arith.mulf %771, %785 : vector<14x14xf32>
    %787 = arith.addf %761, %786 : vector<14x14xf32>
    %c109_162 = arith.constant 109 : index
    %788 = memref.load %arg3[%c109_162] : memref<162xf32, #tpu.memory_space<smem>>
    %789 = vector.broadcast %788 : f32 to vector<14x14xf32>
    %790 = arith.mulf %771, %789 : vector<14x14xf32>
    %791 = arith.addf %765, %790 : vector<14x14xf32>
    %c136_163 = arith.constant 136 : index
    %792 = memref.load %arg3[%c136_163] : memref<162xf32, #tpu.memory_space<smem>>
    %793 = vector.broadcast %792 : f32 to vector<14x14xf32>
    %794 = arith.mulf %771, %793 : vector<14x14xf32>
    %795 = arith.addf %769, %794 : vector<14x14xf32>
    %c1_164 = arith.constant 1 : index
    %c0_165 = arith.constant 0 : index
    %c0_166 = arith.constant 0 : index
    %c2_167 = arith.constant 2 : index
    %796 = vector.load %arg2[%c1_164, %c0_165, %c0_166, %c2_167] : memref<2x3x16x16xf32, #tpu.memory_space<vmem>>, vector<1x1x14x14xf32>
    %797 = vector.shape_cast %796 : vector<1x1x14x14xf32> to vector<14x14xf32>
    %c2_168 = arith.constant 2 : index
    %798 = memref.load %arg3[%c2_168] : memref<162xf32, #tpu.memory_space<smem>>
    %799 = vector.broadcast %798 : f32 to vector<14x14xf32>
    %800 = arith.mulf %797, %799 : vector<14x14xf32>
    %801 = arith.addf %775, %800 : vector<14x14xf32>
    %c29_169 = arith.constant 29 : index
    %802 = memref.load %arg3[%c29_169] : memref<162xf32, #tpu.memory_space<smem>>
    %803 = vector.broadcast %802 : f32 to vector<14x14xf32>
    %804 = arith.mulf %797, %803 : vector<14x14xf32>
    %805 = arith.addf %779, %804 : vector<14x14xf32>
    %c56_170 = arith.constant 56 : index
    %806 = memref.load %arg3[%c56_170] : memref<162xf32, #tpu.memory_space<smem>>
    %807 = vector.broadcast %806 : f32 to vector<14x14xf32>
    %808 = arith.mulf %797, %807 : vector<14x14xf32>
    %809 = arith.addf %783, %808 : vector<14x14xf32>
    %c83_171 = arith.constant 83 : index
    %810 = memref.load %arg3[%c83_171] : memref<162xf32, #tpu.memory_space<smem>>
    %811 = vector.broadcast %810 : f32 to vector<14x14xf32>
    %812 = arith.mulf %797, %811 : vector<14x14xf32>
    %813 = arith.addf %787, %812 : vector<14x14xf32>
    %c110_172 = arith.constant 110 : index
    %814 = memref.load %arg3[%c110_172] : memref<162xf32, #tpu.memory_space<smem>>
    %815 = vector.broadcast %814 : f32 to vector<14x14xf32>
    %816 = arith.mulf %797, %815 : vector<14x14xf32>
    %817 = arith.addf %791, %816 : vector<14x14xf32>
    %c137_173 = arith.constant 137 : index
    %818 = memref.load %arg3[%c137_173] : memref<162xf32, #tpu.memory_space<smem>>
    %819 = vector.broadcast %818 : f32 to vector<14x14xf32>
    %820 = arith.mulf %797, %819 : vector<14x14xf32>
    %821 = arith.addf %795, %820 : vector<14x14xf32>
    %c1_174 = arith.constant 1 : index
    %c0_175 = arith.constant 0 : index
    %c1_176 = arith.constant 1 : index
    %c0_177 = arith.constant 0 : index
    %822 = vector.load %arg2[%c1_174, %c0_175, %c1_176, %c0_177] : memref<2x3x16x16xf32, #tpu.memory_space<vmem>>, vector<1x1x14x14xf32>
    %823 = vector.shape_cast %822 : vector<1x1x14x14xf32> to vector<14x14xf32>
    %c3_178 = arith.constant 3 : index
    %824 = memref.load %arg3[%c3_178] : memref<162xf32, #tpu.memory_space<smem>>
    %825 = vector.broadcast %824 : f32 to vector<14x14xf32>
    %826 = arith.mulf %823, %825 : vector<14x14xf32>
    %827 = arith.addf %801, %826 : vector<14x14xf32>
    %c30_179 = arith.constant 30 : index
    %828 = memref.load %arg3[%c30_179] : memref<162xf32, #tpu.memory_space<smem>>
    %829 = vector.broadcast %828 : f32 to vector<14x14xf32>
    %830 = arith.mulf %823, %829 : vector<14x14xf32>
    %831 = arith.addf %805, %830 : vector<14x14xf32>
    %c57_180 = arith.constant 57 : index
    %832 = memref.load %arg3[%c57_180] : memref<162xf32, #tpu.memory_space<smem>>
    %833 = vector.broadcast %832 : f32 to vector<14x14xf32>
    %834 = arith.mulf %823, %833 : vector<14x14xf32>
    %835 = arith.addf %809, %834 : vector<14x14xf32>
    %c84_181 = arith.constant 84 : index
    %836 = memref.load %arg3[%c84_181] : memref<162xf32, #tpu.memory_space<smem>>
    %837 = vector.broadcast %836 : f32 to vector<14x14xf32>
    %838 = arith.mulf %823, %837 : vector<14x14xf32>
    %839 = arith.addf %813, %838 : vector<14x14xf32>
    %c111_182 = arith.constant 111 : index
    %840 = memref.load %arg3[%c111_182] : memref<162xf32, #tpu.memory_space<smem>>
    %841 = vector.broadcast %840 : f32 to vector<14x14xf32>
    %842 = arith.mulf %823, %841 : vector<14x14xf32>
    %843 = arith.addf %817, %842 : vector<14x14xf32>
    %c138_183 = arith.constant 138 : index
    %844 = memref.load %arg3[%c138_183] : memref<162xf32, #tpu.memory_space<smem>>
    %845 = vector.broadcast %844 : f32 to vector<14x14xf32>
    %846 = arith.mulf %823, %845 : vector<14x14xf32>
    %847 = arith.addf %821, %846 : vector<14x14xf32>
    %c1_184 = arith.constant 1 : index
    %c0_185 = arith.constant 0 : index
    %c1_186 = arith.constant 1 : index
    %c1_187 = arith.constant 1 : index
    %848 = vector.load %arg2[%c1_184, %c0_185, %c1_186, %c1_187] : memref<2x3x16x16xf32, #tpu.memory_space<vmem>>, vector<1x1x14x14xf32>
    %849 = vector.shape_cast %848 : vector<1x1x14x14xf32> to vector<14x14xf32>
    %c4_188 = arith.constant 4 : index
    %850 = memref.load %arg3[%c4_188] : memref<162xf32, #tpu.memory_space<smem>>
    %851 = vector.broadcast %850 : f32 to vector<14x14xf32>
    %852 = arith.mulf %849, %851 : vector<14x14xf32>
    %853 = arith.addf %827, %852 : vector<14x14xf32>
    %c31_189 = arith.constant 31 : index
    %854 = memref.load %arg3[%c31_189] : memref<162xf32, #tpu.memory_space<smem>>
    %855 = vector.broadcast %854 : f32 to vector<14x14xf32>
    %856 = arith.mulf %849, %855 : vector<14x14xf32>
    %857 = arith.addf %831, %856 : vector<14x14xf32>
    %c58_190 = arith.constant 58 : index
    %858 = memref.load %arg3[%c58_190] : memref<162xf32, #tpu.memory_space<smem>>
    %859 = vector.broadcast %858 : f32 to vector<14x14xf32>
    %860 = arith.mulf %849, %859 : vector<14x14xf32>
    %861 = arith.addf %835, %860 : vector<14x14xf32>
    %c85_191 = arith.constant 85 : index
    %862 = memref.load %arg3[%c85_191] : memref<162xf32, #tpu.memory_space<smem>>
    %863 = vector.broadcast %862 : f32 to vector<14x14xf32>
    %864 = arith.mulf %849, %863 : vector<14x14xf32>
    %865 = arith.addf %839, %864 : vector<14x14xf32>
    %c112_192 = arith.constant 112 : index
    %866 = memref.load %arg3[%c112_192] : memref<162xf32, #tpu.memory_space<smem>>
    %867 = vector.broadcast %866 : f32 to vector<14x14xf32>
    %868 = arith.mulf %849, %867 : vector<14x14xf32>
    %869 = arith.addf %843, %868 : vector<14x14xf32>
    %c139_193 = arith.constant 139 : index
    %870 = memref.load %arg3[%c139_193] : memref<162xf32, #tpu.memory_space<smem>>
    %871 = vector.broadcast %870 : f32 to vector<14x14xf32>
    %872 = arith.mulf %849, %871 : vector<14x14xf32>
    %873 = arith.addf %847, %872 : vector<14x14xf32>
    %c1_194 = arith.constant 1 : index
    %c0_195 = arith.constant 0 : index
    %c1_196 = arith.constant 1 : index
    %c2_197 = arith.constant 2 : index
    %874 = vector.load %arg2[%c1_194, %c0_195, %c1_196, %c2_197] : memref<2x3x16x16xf32, #tpu.memory_space<vmem>>, vector<1x1x14x14xf32>
    %875 = vector.shape_cast %874 : vector<1x1x14x14xf32> to vector<14x14xf32>
    %c5_198 = arith.constant 5 : index
    %876 = memref.load %arg3[%c5_198] : memref<162xf32, #tpu.memory_space<smem>>
    %877 = vector.broadcast %876 : f32 to vector<14x14xf32>
    %878 = arith.mulf %875, %877 : vector<14x14xf32>
    %879 = arith.addf %853, %878 : vector<14x14xf32>
    %c32_199 = arith.constant 32 : index
    %880 = memref.load %arg3[%c32_199] : memref<162xf32, #tpu.memory_space<smem>>
    %881 = vector.broadcast %880 : f32 to vector<14x14xf32>
    %882 = arith.mulf %875, %881 : vector<14x14xf32>
    %883 = arith.addf %857, %882 : vector<14x14xf32>
    %c59_200 = arith.constant 59 : index
    %884 = memref.load %arg3[%c59_200] : memref<162xf32, #tpu.memory_space<smem>>
    %885 = vector.broadcast %884 : f32 to vector<14x14xf32>
    %886 = arith.mulf %875, %885 : vector<14x14xf32>
    %887 = arith.addf %861, %886 : vector<14x14xf32>
    %c86_201 = arith.constant 86 : index
    %888 = memref.load %arg3[%c86_201] : memref<162xf32, #tpu.memory_space<smem>>
    %889 = vector.broadcast %888 : f32 to vector<14x14xf32>
    %890 = arith.mulf %875, %889 : vector<14x14xf32>
    %891 = arith.addf %865, %890 : vector<14x14xf32>
    %c113_202 = arith.constant 113 : index
    %892 = memref.load %arg3[%c113_202] : memref<162xf32, #tpu.memory_space<smem>>
    %893 = vector.broadcast %892 : f32 to vector<14x14xf32>
    %894 = arith.mulf %875, %893 : vector<14x14xf32>
    %895 = arith.addf %869, %894 : vector<14x14xf32>
    %c140_203 = arith.constant 140 : index
    %896 = memref.load %arg3[%c140_203] : memref<162xf32, #tpu.memory_space<smem>>
    %897 = vector.broadcast %896 : f32 to vector<14x14xf32>
    %898 = arith.mulf %875, %897 : vector<14x14xf32>
    %899 = arith.addf %873, %898 : vector<14x14xf32>
    %c1_204 = arith.constant 1 : index
    %c0_205 = arith.constant 0 : index
    %c2_206 = arith.constant 2 : index
    %c0_207 = arith.constant 0 : index
    %900 = vector.load %arg2[%c1_204, %c0_205, %c2_206, %c0_207] : memref<2x3x16x16xf32, #tpu.memory_space<vmem>>, vector<1x1x14x14xf32>
    %901 = vector.shape_cast %900 : vector<1x1x14x14xf32> to vector<14x14xf32>
    %c6_208 = arith.constant 6 : index
    %902 = memref.load %arg3[%c6_208] : memref<162xf32, #tpu.memory_space<smem>>
    %903 = vector.broadcast %902 : f32 to vector<14x14xf32>
    %904 = arith.mulf %901, %903 : vector<14x14xf32>
    %905 = arith.addf %879, %904 : vector<14x14xf32>
    %c33_209 = arith.constant 33 : index
    %906 = memref.load %arg3[%c33_209] : memref<162xf32, #tpu.memory_space<smem>>
    %907 = vector.broadcast %906 : f32 to vector<14x14xf32>
    %908 = arith.mulf %901, %907 : vector<14x14xf32>
    %909 = arith.addf %883, %908 : vector<14x14xf32>
    %c60_210 = arith.constant 60 : index
    %910 = memref.load %arg3[%c60_210] : memref<162xf32, #tpu.memory_space<smem>>
    %911 = vector.broadcast %910 : f32 to vector<14x14xf32>
    %912 = arith.mulf %901, %911 : vector<14x14xf32>
    %913 = arith.addf %887, %912 : vector<14x14xf32>
    %c87_211 = arith.constant 87 : index
    %914 = memref.load %arg3[%c87_211] : memref<162xf32, #tpu.memory_space<smem>>
    %915 = vector.broadcast %914 : f32 to vector<14x14xf32>
    %916 = arith.mulf %901, %915 : vector<14x14xf32>
    %917 = arith.addf %891, %916 : vector<14x14xf32>
    %c114_212 = arith.constant 114 : index
    %918 = memref.load %arg3[%c114_212] : memref<162xf32, #tpu.memory_space<smem>>
    %919 = vector.broadcast %918 : f32 to vector<14x14xf32>
    %920 = arith.mulf %901, %919 : vector<14x14xf32>
    %921 = arith.addf %895, %920 : vector<14x14xf32>
    %c141_213 = arith.constant 141 : index
    %922 = memref.load %arg3[%c141_213] : memref<162xf32, #tpu.memory_space<smem>>
    %923 = vector.broadcast %922 : f32 to vector<14x14xf32>
    %924 = arith.mulf %901, %923 : vector<14x14xf32>
    %925 = arith.addf %899, %924 : vector<14x14xf32>
    %c1_214 = arith.constant 1 : index
    %c0_215 = arith.constant 0 : index
    %c2_216 = arith.constant 2 : index
    %c1_217 = arith.constant 1 : index
    %926 = vector.load %arg2[%c1_214, %c0_215, %c2_216, %c1_217] : memref<2x3x16x16xf32, #tpu.memory_space<vmem>>, vector<1x1x14x14xf32>
    %927 = vector.shape_cast %926 : vector<1x1x14x14xf32> to vector<14x14xf32>
    %c7_218 = arith.constant 7 : index
    %928 = memref.load %arg3[%c7_218] : memref<162xf32, #tpu.memory_space<smem>>
    %929 = vector.broadcast %928 : f32 to vector<14x14xf32>
    %930 = arith.mulf %927, %929 : vector<14x14xf32>
    %931 = arith.addf %905, %930 : vector<14x14xf32>
    %c34_219 = arith.constant 34 : index
    %932 = memref.load %arg3[%c34_219] : memref<162xf32, #tpu.memory_space<smem>>
    %933 = vector.broadcast %932 : f32 to vector<14x14xf32>
    %934 = arith.mulf %927, %933 : vector<14x14xf32>
    %935 = arith.addf %909, %934 : vector<14x14xf32>
    %c61_220 = arith.constant 61 : index
    %936 = memref.load %arg3[%c61_220] : memref<162xf32, #tpu.memory_space<smem>>
    %937 = vector.broadcast %936 : f32 to vector<14x14xf32>
    %938 = arith.mulf %927, %937 : vector<14x14xf32>
    %939 = arith.addf %913, %938 : vector<14x14xf32>
    %c88_221 = arith.constant 88 : index
    %940 = memref.load %arg3[%c88_221] : memref<162xf32, #tpu.memory_space<smem>>
    %941 = vector.broadcast %940 : f32 to vector<14x14xf32>
    %942 = arith.mulf %927, %941 : vector<14x14xf32>
    %943 = arith.addf %917, %942 : vector<14x14xf32>
    %c115_222 = arith.constant 115 : index
    %944 = memref.load %arg3[%c115_222] : memref<162xf32, #tpu.memory_space<smem>>
    %945 = vector.broadcast %944 : f32 to vector<14x14xf32>
    %946 = arith.mulf %927, %945 : vector<14x14xf32>
    %947 = arith.addf %921, %946 : vector<14x14xf32>
    %c142_223 = arith.constant 142 : index
    %948 = memref.load %arg3[%c142_223] : memref<162xf32, #tpu.memory_space<smem>>
    %949 = vector.broadcast %948 : f32 to vector<14x14xf32>
    %950 = arith.mulf %927, %949 : vector<14x14xf32>
    %951 = arith.addf %925, %950 : vector<14x14xf32>
    %c1_224 = arith.constant 1 : index
    %c0_225 = arith.constant 0 : index
    %c2_226 = arith.constant 2 : index
    %c2_227 = arith.constant 2 : index
    %952 = vector.load %arg2[%c1_224, %c0_225, %c2_226, %c2_227] : memref<2x3x16x16xf32, #tpu.memory_space<vmem>>, vector<1x1x14x14xf32>
    %953 = vector.shape_cast %952 : vector<1x1x14x14xf32> to vector<14x14xf32>
    %c8_228 = arith.constant 8 : index
    %954 = memref.load %arg3[%c8_228] : memref<162xf32, #tpu.memory_space<smem>>
    %955 = vector.broadcast %954 : f32 to vector<14x14xf32>
    %956 = arith.mulf %953, %955 : vector<14x14xf32>
    %957 = arith.addf %931, %956 : vector<14x14xf32>
    %c35_229 = arith.constant 35 : index
    %958 = memref.load %arg3[%c35_229] : memref<162xf32, #tpu.memory_space<smem>>
    %959 = vector.broadcast %958 : f32 to vector<14x14xf32>
    %960 = arith.mulf %953, %959 : vector<14x14xf32>
    %961 = arith.addf %935, %960 : vector<14x14xf32>
    %c62_230 = arith.constant 62 : index
    %962 = memref.load %arg3[%c62_230] : memref<162xf32, #tpu.memory_space<smem>>
    %963 = vector.broadcast %962 : f32 to vector<14x14xf32>
    %964 = arith.mulf %953, %963 : vector<14x14xf32>
    %965 = arith.addf %939, %964 : vector<14x14xf32>
    %c89_231 = arith.constant 89 : index
    %966 = memref.load %arg3[%c89_231] : memref<162xf32, #tpu.memory_space<smem>>
    %967 = vector.broadcast %966 : f32 to vector<14x14xf32>
    %968 = arith.mulf %953, %967 : vector<14x14xf32>
    %969 = arith.addf %943, %968 : vector<14x14xf32>
    %c116_232 = arith.constant 116 : index
    %970 = memref.load %arg3[%c116_232] : memref<162xf32, #tpu.memory_space<smem>>
    %971 = vector.broadcast %970 : f32 to vector<14x14xf32>
    %972 = arith.mulf %953, %971 : vector<14x14xf32>
    %973 = arith.addf %947, %972 : vector<14x14xf32>
    %c143_233 = arith.constant 143 : index
    %974 = memref.load %arg3[%c143_233] : memref<162xf32, #tpu.memory_space<smem>>
    %975 = vector.broadcast %974 : f32 to vector<14x14xf32>
    %976 = arith.mulf %953, %975 : vector<14x14xf32>
    %977 = arith.addf %951, %976 : vector<14x14xf32>
    %c1_234 = arith.constant 1 : index
    %c1_235 = arith.constant 1 : index
    %c0_236 = arith.constant 0 : index
    %c0_237 = arith.constant 0 : index
    %978 = vector.load %arg2[%c1_234, %c1_235, %c0_236, %c0_237] : memref<2x3x16x16xf32, #tpu.memory_space<vmem>>, vector<1x1x14x14xf32>
    %979 = vector.shape_cast %978 : vector<1x1x14x14xf32> to vector<14x14xf32>
    %c9_238 = arith.constant 9 : index
    %980 = memref.load %arg3[%c9_238] : memref<162xf32, #tpu.memory_space<smem>>
    %981 = vector.broadcast %980 : f32 to vector<14x14xf32>
    %982 = arith.mulf %979, %981 : vector<14x14xf32>
    %983 = arith.addf %957, %982 : vector<14x14xf32>
    %c36_239 = arith.constant 36 : index
    %984 = memref.load %arg3[%c36_239] : memref<162xf32, #tpu.memory_space<smem>>
    %985 = vector.broadcast %984 : f32 to vector<14x14xf32>
    %986 = arith.mulf %979, %985 : vector<14x14xf32>
    %987 = arith.addf %961, %986 : vector<14x14xf32>
    %c63_240 = arith.constant 63 : index
    %988 = memref.load %arg3[%c63_240] : memref<162xf32, #tpu.memory_space<smem>>
    %989 = vector.broadcast %988 : f32 to vector<14x14xf32>
    %990 = arith.mulf %979, %989 : vector<14x14xf32>
    %991 = arith.addf %965, %990 : vector<14x14xf32>
    %c90_241 = arith.constant 90 : index
    %992 = memref.load %arg3[%c90_241] : memref<162xf32, #tpu.memory_space<smem>>
    %993 = vector.broadcast %992 : f32 to vector<14x14xf32>
    %994 = arith.mulf %979, %993 : vector<14x14xf32>
    %995 = arith.addf %969, %994 : vector<14x14xf32>
    %c117_242 = arith.constant 117 : index
    %996 = memref.load %arg3[%c117_242] : memref<162xf32, #tpu.memory_space<smem>>
    %997 = vector.broadcast %996 : f32 to vector<14x14xf32>
    %998 = arith.mulf %979, %997 : vector<14x14xf32>
    %999 = arith.addf %973, %998 : vector<14x14xf32>
    %c144_243 = arith.constant 144 : index
    %1000 = memref.load %arg3[%c144_243] : memref<162xf32, #tpu.memory_space<smem>>
    %1001 = vector.broadcast %1000 : f32 to vector<14x14xf32>
    %1002 = arith.mulf %979, %1001 : vector<14x14xf32>
    %1003 = arith.addf %977, %1002 : vector<14x14xf32>
    %c1_244 = arith.constant 1 : index
    %c1_245 = arith.constant 1 : index
    %c0_246 = arith.constant 0 : index
    %c1_247 = arith.constant 1 : index
    %1004 = vector.load %arg2[%c1_244, %c1_245, %c0_246, %c1_247] : memref<2x3x16x16xf32, #tpu.memory_space<vmem>>, vector<1x1x14x14xf32>
    %1005 = vector.shape_cast %1004 : vector<1x1x14x14xf32> to vector<14x14xf32>
    %c10_248 = arith.constant 10 : index
    %1006 = memref.load %arg3[%c10_248] : memref<162xf32, #tpu.memory_space<smem>>
    %1007 = vector.broadcast %1006 : f32 to vector<14x14xf32>
    %1008 = arith.mulf %1005, %1007 : vector<14x14xf32>
    %1009 = arith.addf %983, %1008 : vector<14x14xf32>
    %c37_249 = arith.constant 37 : index
    %1010 = memref.load %arg3[%c37_249] : memref<162xf32, #tpu.memory_space<smem>>
    %1011 = vector.broadcast %1010 : f32 to vector<14x14xf32>
    %1012 = arith.mulf %1005, %1011 : vector<14x14xf32>
    %1013 = arith.addf %987, %1012 : vector<14x14xf32>
    %c64_250 = arith.constant 64 : index
    %1014 = memref.load %arg3[%c64_250] : memref<162xf32, #tpu.memory_space<smem>>
    %1015 = vector.broadcast %1014 : f32 to vector<14x14xf32>
    %1016 = arith.mulf %1005, %1015 : vector<14x14xf32>
    %1017 = arith.addf %991, %1016 : vector<14x14xf32>
    %c91_251 = arith.constant 91 : index
    %1018 = memref.load %arg3[%c91_251] : memref<162xf32, #tpu.memory_space<smem>>
    %1019 = vector.broadcast %1018 : f32 to vector<14x14xf32>
    %1020 = arith.mulf %1005, %1019 : vector<14x14xf32>
    %1021 = arith.addf %995, %1020 : vector<14x14xf32>
    %c118_252 = arith.constant 118 : index
    %1022 = memref.load %arg3[%c118_252] : memref<162xf32, #tpu.memory_space<smem>>
    %1023 = vector.broadcast %1022 : f32 to vector<14x14xf32>
    %1024 = arith.mulf %1005, %1023 : vector<14x14xf32>
    %1025 = arith.addf %999, %1024 : vector<14x14xf32>
    %c145_253 = arith.constant 145 : index
    %1026 = memref.load %arg3[%c145_253] : memref<162xf32, #tpu.memory_space<smem>>
    %1027 = vector.broadcast %1026 : f32 to vector<14x14xf32>
    %1028 = arith.mulf %1005, %1027 : vector<14x14xf32>
    %1029 = arith.addf %1003, %1028 : vector<14x14xf32>
    %c1_254 = arith.constant 1 : index
    %c1_255 = arith.constant 1 : index
    %c0_256 = arith.constant 0 : index
    %c2_257 = arith.constant 2 : index
    %1030 = vector.load %arg2[%c1_254, %c1_255, %c0_256, %c2_257] : memref<2x3x16x16xf32, #tpu.memory_space<vmem>>, vector<1x1x14x14xf32>
    %1031 = vector.shape_cast %1030 : vector<1x1x14x14xf32> to vector<14x14xf32>
    %c11_258 = arith.constant 11 : index
    %1032 = memref.load %arg3[%c11_258] : memref<162xf32, #tpu.memory_space<smem>>
    %1033 = vector.broadcast %1032 : f32 to vector<14x14xf32>
    %1034 = arith.mulf %1031, %1033 : vector<14x14xf32>
    %1035 = arith.addf %1009, %1034 : vector<14x14xf32>
    %c38_259 = arith.constant 38 : index
    %1036 = memref.load %arg3[%c38_259] : memref<162xf32, #tpu.memory_space<smem>>
    %1037 = vector.broadcast %1036 : f32 to vector<14x14xf32>
    %1038 = arith.mulf %1031, %1037 : vector<14x14xf32>
    %1039 = arith.addf %1013, %1038 : vector<14x14xf32>
    %c65_260 = arith.constant 65 : index
    %1040 = memref.load %arg3[%c65_260] : memref<162xf32, #tpu.memory_space<smem>>
    %1041 = vector.broadcast %1040 : f32 to vector<14x14xf32>
    %1042 = arith.mulf %1031, %1041 : vector<14x14xf32>
    %1043 = arith.addf %1017, %1042 : vector<14x14xf32>
    %c92_261 = arith.constant 92 : index
    %1044 = memref.load %arg3[%c92_261] : memref<162xf32, #tpu.memory_space<smem>>
    %1045 = vector.broadcast %1044 : f32 to vector<14x14xf32>
    %1046 = arith.mulf %1031, %1045 : vector<14x14xf32>
    %1047 = arith.addf %1021, %1046 : vector<14x14xf32>
    %c119_262 = arith.constant 119 : index
    %1048 = memref.load %arg3[%c119_262] : memref<162xf32, #tpu.memory_space<smem>>
    %1049 = vector.broadcast %1048 : f32 to vector<14x14xf32>
    %1050 = arith.mulf %1031, %1049 : vector<14x14xf32>
    %1051 = arith.addf %1025, %1050 : vector<14x14xf32>
    %c146_263 = arith.constant 146 : index
    %1052 = memref.load %arg3[%c146_263] : memref<162xf32, #tpu.memory_space<smem>>
    %1053 = vector.broadcast %1052 : f32 to vector<14x14xf32>
    %1054 = arith.mulf %1031, %1053 : vector<14x14xf32>
    %1055 = arith.addf %1029, %1054 : vector<14x14xf32>
    %c1_264 = arith.constant 1 : index
    %c1_265 = arith.constant 1 : index
    %c1_266 = arith.constant 1 : index
    %c0_267 = arith.constant 0 : index
    %1056 = vector.load %arg2[%c1_264, %c1_265, %c1_266, %c0_267] : memref<2x3x16x16xf32, #tpu.memory_space<vmem>>, vector<1x1x14x14xf32>
    %1057 = vector.shape_cast %1056 : vector<1x1x14x14xf32> to vector<14x14xf32>
    %c12_268 = arith.constant 12 : index
    %1058 = memref.load %arg3[%c12_268] : memref<162xf32, #tpu.memory_space<smem>>
    %1059 = vector.broadcast %1058 : f32 to vector<14x14xf32>
    %1060 = arith.mulf %1057, %1059 : vector<14x14xf32>
    %1061 = arith.addf %1035, %1060 : vector<14x14xf32>
    %c39_269 = arith.constant 39 : index
    %1062 = memref.load %arg3[%c39_269] : memref<162xf32, #tpu.memory_space<smem>>
    %1063 = vector.broadcast %1062 : f32 to vector<14x14xf32>
    %1064 = arith.mulf %1057, %1063 : vector<14x14xf32>
    %1065 = arith.addf %1039, %1064 : vector<14x14xf32>
    %c66_270 = arith.constant 66 : index
    %1066 = memref.load %arg3[%c66_270] : memref<162xf32, #tpu.memory_space<smem>>
    %1067 = vector.broadcast %1066 : f32 to vector<14x14xf32>
    %1068 = arith.mulf %1057, %1067 : vector<14x14xf32>
    %1069 = arith.addf %1043, %1068 : vector<14x14xf32>
    %c93_271 = arith.constant 93 : index
    %1070 = memref.load %arg3[%c93_271] : memref<162xf32, #tpu.memory_space<smem>>
    %1071 = vector.broadcast %1070 : f32 to vector<14x14xf32>
    %1072 = arith.mulf %1057, %1071 : vector<14x14xf32>
    %1073 = arith.addf %1047, %1072 : vector<14x14xf32>
    %c120_272 = arith.constant 120 : index
    %1074 = memref.load %arg3[%c120_272] : memref<162xf32, #tpu.memory_space<smem>>
    %1075 = vector.broadcast %1074 : f32 to vector<14x14xf32>
    %1076 = arith.mulf %1057, %1075 : vector<14x14xf32>
    %1077 = arith.addf %1051, %1076 : vector<14x14xf32>
    %c147_273 = arith.constant 147 : index
    %1078 = memref.load %arg3[%c147_273] : memref<162xf32, #tpu.memory_space<smem>>
    %1079 = vector.broadcast %1078 : f32 to vector<14x14xf32>
    %1080 = arith.mulf %1057, %1079 : vector<14x14xf32>
    %1081 = arith.addf %1055, %1080 : vector<14x14xf32>
    %c1_274 = arith.constant 1 : index
    %c1_275 = arith.constant 1 : index
    %c1_276 = arith.constant 1 : index
    %c1_277 = arith.constant 1 : index
    %1082 = vector.load %arg2[%c1_274, %c1_275, %c1_276, %c1_277] : memref<2x3x16x16xf32, #tpu.memory_space<vmem>>, vector<1x1x14x14xf32>
    %1083 = vector.shape_cast %1082 : vector<1x1x14x14xf32> to vector<14x14xf32>
    %c13_278 = arith.constant 13 : index
    %1084 = memref.load %arg3[%c13_278] : memref<162xf32, #tpu.memory_space<smem>>
    %1085 = vector.broadcast %1084 : f32 to vector<14x14xf32>
    %1086 = arith.mulf %1083, %1085 : vector<14x14xf32>
    %1087 = arith.addf %1061, %1086 : vector<14x14xf32>
    %c40_279 = arith.constant 40 : index
    %1088 = memref.load %arg3[%c40_279] : memref<162xf32, #tpu.memory_space<smem>>
    %1089 = vector.broadcast %1088 : f32 to vector<14x14xf32>
    %1090 = arith.mulf %1083, %1089 : vector<14x14xf32>
    %1091 = arith.addf %1065, %1090 : vector<14x14xf32>
    %c67_280 = arith.constant 67 : index
    %1092 = memref.load %arg3[%c67_280] : memref<162xf32, #tpu.memory_space<smem>>
    %1093 = vector.broadcast %1092 : f32 to vector<14x14xf32>
    %1094 = arith.mulf %1083, %1093 : vector<14x14xf32>
    %1095 = arith.addf %1069, %1094 : vector<14x14xf32>
    %c94_281 = arith.constant 94 : index
    %1096 = memref.load %arg3[%c94_281] : memref<162xf32, #tpu.memory_space<smem>>
    %1097 = vector.broadcast %1096 : f32 to vector<14x14xf32>
    %1098 = arith.mulf %1083, %1097 : vector<14x14xf32>
    %1099 = arith.addf %1073, %1098 : vector<14x14xf32>
    %c121_282 = arith.constant 121 : index
    %1100 = memref.load %arg3[%c121_282] : memref<162xf32, #tpu.memory_space<smem>>
    %1101 = vector.broadcast %1100 : f32 to vector<14x14xf32>
    %1102 = arith.mulf %1083, %1101 : vector<14x14xf32>
    %1103 = arith.addf %1077, %1102 : vector<14x14xf32>
    %c148_283 = arith.constant 148 : index
    %1104 = memref.load %arg3[%c148_283] : memref<162xf32, #tpu.memory_space<smem>>
    %1105 = vector.broadcast %1104 : f32 to vector<14x14xf32>
    %1106 = arith.mulf %1083, %1105 : vector<14x14xf32>
    %1107 = arith.addf %1081, %1106 : vector<14x14xf32>
    %c1_284 = arith.constant 1 : index
    %c1_285 = arith.constant 1 : index
    %c1_286 = arith.constant 1 : index
    %c2_287 = arith.constant 2 : index
    %1108 = vector.load %arg2[%c1_284, %c1_285, %c1_286, %c2_287] : memref<2x3x16x16xf32, #tpu.memory_space<vmem>>, vector<1x1x14x14xf32>
    %1109 = vector.shape_cast %1108 : vector<1x1x14x14xf32> to vector<14x14xf32>
    %c14_288 = arith.constant 14 : index
    %1110 = memref.load %arg3[%c14_288] : memref<162xf32, #tpu.memory_space<smem>>
    %1111 = vector.broadcast %1110 : f32 to vector<14x14xf32>
    %1112 = arith.mulf %1109, %1111 : vector<14x14xf32>
    %1113 = arith.addf %1087, %1112 : vector<14x14xf32>
    %c41_289 = arith.constant 41 : index
    %1114 = memref.load %arg3[%c41_289] : memref<162xf32, #tpu.memory_space<smem>>
    %1115 = vector.broadcast %1114 : f32 to vector<14x14xf32>
    %1116 = arith.mulf %1109, %1115 : vector<14x14xf32>
    %1117 = arith.addf %1091, %1116 : vector<14x14xf32>
    %c68_290 = arith.constant 68 : index
    %1118 = memref.load %arg3[%c68_290] : memref<162xf32, #tpu.memory_space<smem>>
    %1119 = vector.broadcast %1118 : f32 to vector<14x14xf32>
    %1120 = arith.mulf %1109, %1119 : vector<14x14xf32>
    %1121 = arith.addf %1095, %1120 : vector<14x14xf32>
    %c95_291 = arith.constant 95 : index
    %1122 = memref.load %arg3[%c95_291] : memref<162xf32, #tpu.memory_space<smem>>
    %1123 = vector.broadcast %1122 : f32 to vector<14x14xf32>
    %1124 = arith.mulf %1109, %1123 : vector<14x14xf32>
    %1125 = arith.addf %1099, %1124 : vector<14x14xf32>
    %c122_292 = arith.constant 122 : index
    %1126 = memref.load %arg3[%c122_292] : memref<162xf32, #tpu.memory_space<smem>>
    %1127 = vector.broadcast %1126 : f32 to vector<14x14xf32>
    %1128 = arith.mulf %1109, %1127 : vector<14x14xf32>
    %1129 = arith.addf %1103, %1128 : vector<14x14xf32>
    %c149_293 = arith.constant 149 : index
    %1130 = memref.load %arg3[%c149_293] : memref<162xf32, #tpu.memory_space<smem>>
    %1131 = vector.broadcast %1130 : f32 to vector<14x14xf32>
    %1132 = arith.mulf %1109, %1131 : vector<14x14xf32>
    %1133 = arith.addf %1107, %1132 : vector<14x14xf32>
    %c1_294 = arith.constant 1 : index
    %c1_295 = arith.constant 1 : index
    %c2_296 = arith.constant 2 : index
    %c0_297 = arith.constant 0 : index
    %1134 = vector.load %arg2[%c1_294, %c1_295, %c2_296, %c0_297] : memref<2x3x16x16xf32, #tpu.memory_space<vmem>>, vector<1x1x14x14xf32>
    %1135 = vector.shape_cast %1134 : vector<1x1x14x14xf32> to vector<14x14xf32>
    %c15_298 = arith.constant 15 : index
    %1136 = memref.load %arg3[%c15_298] : memref<162xf32, #tpu.memory_space<smem>>
    %1137 = vector.broadcast %1136 : f32 to vector<14x14xf32>
    %1138 = arith.mulf %1135, %1137 : vector<14x14xf32>
    %1139 = arith.addf %1113, %1138 : vector<14x14xf32>
    %c42_299 = arith.constant 42 : index
    %1140 = memref.load %arg3[%c42_299] : memref<162xf32, #tpu.memory_space<smem>>
    %1141 = vector.broadcast %1140 : f32 to vector<14x14xf32>
    %1142 = arith.mulf %1135, %1141 : vector<14x14xf32>
    %1143 = arith.addf %1117, %1142 : vector<14x14xf32>
    %c69_300 = arith.constant 69 : index
    %1144 = memref.load %arg3[%c69_300] : memref<162xf32, #tpu.memory_space<smem>>
    %1145 = vector.broadcast %1144 : f32 to vector<14x14xf32>
    %1146 = arith.mulf %1135, %1145 : vector<14x14xf32>
    %1147 = arith.addf %1121, %1146 : vector<14x14xf32>
    %c96_301 = arith.constant 96 : index
    %1148 = memref.load %arg3[%c96_301] : memref<162xf32, #tpu.memory_space<smem>>
    %1149 = vector.broadcast %1148 : f32 to vector<14x14xf32>
    %1150 = arith.mulf %1135, %1149 : vector<14x14xf32>
    %1151 = arith.addf %1125, %1150 : vector<14x14xf32>
    %c123_302 = arith.constant 123 : index
    %1152 = memref.load %arg3[%c123_302] : memref<162xf32, #tpu.memory_space<smem>>
    %1153 = vector.broadcast %1152 : f32 to vector<14x14xf32>
    %1154 = arith.mulf %1135, %1153 : vector<14x14xf32>
    %1155 = arith.addf %1129, %1154 : vector<14x14xf32>
    %c150_303 = arith.constant 150 : index
    %1156 = memref.load %arg3[%c150_303] : memref<162xf32, #tpu.memory_space<smem>>
    %1157 = vector.broadcast %1156 : f32 to vector<14x14xf32>
    %1158 = arith.mulf %1135, %1157 : vector<14x14xf32>
    %1159 = arith.addf %1133, %1158 : vector<14x14xf32>
    %c1_304 = arith.constant 1 : index
    %c1_305 = arith.constant 1 : index
    %c2_306 = arith.constant 2 : index
    %c1_307 = arith.constant 1 : index
    %1160 = vector.load %arg2[%c1_304, %c1_305, %c2_306, %c1_307] : memref<2x3x16x16xf32, #tpu.memory_space<vmem>>, vector<1x1x14x14xf32>
    %1161 = vector.shape_cast %1160 : vector<1x1x14x14xf32> to vector<14x14xf32>
    %c16_308 = arith.constant 16 : index
    %1162 = memref.load %arg3[%c16_308] : memref<162xf32, #tpu.memory_space<smem>>
    %1163 = vector.broadcast %1162 : f32 to vector<14x14xf32>
    %1164 = arith.mulf %1161, %1163 : vector<14x14xf32>
    %1165 = arith.addf %1139, %1164 : vector<14x14xf32>
    %c43_309 = arith.constant 43 : index
    %1166 = memref.load %arg3[%c43_309] : memref<162xf32, #tpu.memory_space<smem>>
    %1167 = vector.broadcast %1166 : f32 to vector<14x14xf32>
    %1168 = arith.mulf %1161, %1167 : vector<14x14xf32>
    %1169 = arith.addf %1143, %1168 : vector<14x14xf32>
    %c70_310 = arith.constant 70 : index
    %1170 = memref.load %arg3[%c70_310] : memref<162xf32, #tpu.memory_space<smem>>
    %1171 = vector.broadcast %1170 : f32 to vector<14x14xf32>
    %1172 = arith.mulf %1161, %1171 : vector<14x14xf32>
    %1173 = arith.addf %1147, %1172 : vector<14x14xf32>
    %c97_311 = arith.constant 97 : index
    %1174 = memref.load %arg3[%c97_311] : memref<162xf32, #tpu.memory_space<smem>>
    %1175 = vector.broadcast %1174 : f32 to vector<14x14xf32>
    %1176 = arith.mulf %1161, %1175 : vector<14x14xf32>
    %1177 = arith.addf %1151, %1176 : vector<14x14xf32>
    %c124_312 = arith.constant 124 : index
    %1178 = memref.load %arg3[%c124_312] : memref<162xf32, #tpu.memory_space<smem>>
    %1179 = vector.broadcast %1178 : f32 to vector<14x14xf32>
    %1180 = arith.mulf %1161, %1179 : vector<14x14xf32>
    %1181 = arith.addf %1155, %1180 : vector<14x14xf32>
    %c151_313 = arith.constant 151 : index
    %1182 = memref.load %arg3[%c151_313] : memref<162xf32, #tpu.memory_space<smem>>
    %1183 = vector.broadcast %1182 : f32 to vector<14x14xf32>
    %1184 = arith.mulf %1161, %1183 : vector<14x14xf32>
    %1185 = arith.addf %1159, %1184 : vector<14x14xf32>
    %c1_314 = arith.constant 1 : index
    %c1_315 = arith.constant 1 : index
    %c2_316 = arith.constant 2 : index
    %c2_317 = arith.constant 2 : index
    %1186 = vector.load %arg2[%c1_314, %c1_315, %c2_316, %c2_317] : memref<2x3x16x16xf32, #tpu.memory_space<vmem>>, vector<1x1x14x14xf32>
    %1187 = vector.shape_cast %1186 : vector<1x1x14x14xf32> to vector<14x14xf32>
    %c17_318 = arith.constant 17 : index
    %1188 = memref.load %arg3[%c17_318] : memref<162xf32, #tpu.memory_space<smem>>
    %1189 = vector.broadcast %1188 : f32 to vector<14x14xf32>
    %1190 = arith.mulf %1187, %1189 : vector<14x14xf32>
    %1191 = arith.addf %1165, %1190 : vector<14x14xf32>
    %c44_319 = arith.constant 44 : index
    %1192 = memref.load %arg3[%c44_319] : memref<162xf32, #tpu.memory_space<smem>>
    %1193 = vector.broadcast %1192 : f32 to vector<14x14xf32>
    %1194 = arith.mulf %1187, %1193 : vector<14x14xf32>
    %1195 = arith.addf %1169, %1194 : vector<14x14xf32>
    %c71_320 = arith.constant 71 : index
    %1196 = memref.load %arg3[%c71_320] : memref<162xf32, #tpu.memory_space<smem>>
    %1197 = vector.broadcast %1196 : f32 to vector<14x14xf32>
    %1198 = arith.mulf %1187, %1197 : vector<14x14xf32>
    %1199 = arith.addf %1173, %1198 : vector<14x14xf32>
    %c98_321 = arith.constant 98 : index
    %1200 = memref.load %arg3[%c98_321] : memref<162xf32, #tpu.memory_space<smem>>
    %1201 = vector.broadcast %1200 : f32 to vector<14x14xf32>
    %1202 = arith.mulf %1187, %1201 : vector<14x14xf32>
    %1203 = arith.addf %1177, %1202 : vector<14x14xf32>
    %c125_322 = arith.constant 125 : index
    %1204 = memref.load %arg3[%c125_322] : memref<162xf32, #tpu.memory_space<smem>>
    %1205 = vector.broadcast %1204 : f32 to vector<14x14xf32>
    %1206 = arith.mulf %1187, %1205 : vector<14x14xf32>
    %1207 = arith.addf %1181, %1206 : vector<14x14xf32>
    %c152_323 = arith.constant 152 : index
    %1208 = memref.load %arg3[%c152_323] : memref<162xf32, #tpu.memory_space<smem>>
    %1209 = vector.broadcast %1208 : f32 to vector<14x14xf32>
    %1210 = arith.mulf %1187, %1209 : vector<14x14xf32>
    %1211 = arith.addf %1185, %1210 : vector<14x14xf32>
    %c1_324 = arith.constant 1 : index
    %c2_325 = arith.constant 2 : index
    %c0_326 = arith.constant 0 : index
    %c0_327 = arith.constant 0 : index
    %1212 = vector.load %arg2[%c1_324, %c2_325, %c0_326, %c0_327] : memref<2x3x16x16xf32, #tpu.memory_space<vmem>>, vector<1x1x14x14xf32>
    %1213 = vector.shape_cast %1212 : vector<1x1x14x14xf32> to vector<14x14xf32>
    %c18_328 = arith.constant 18 : index
    %1214 = memref.load %arg3[%c18_328] : memref<162xf32, #tpu.memory_space<smem>>
    %1215 = vector.broadcast %1214 : f32 to vector<14x14xf32>
    %1216 = arith.mulf %1213, %1215 : vector<14x14xf32>
    %1217 = arith.addf %1191, %1216 : vector<14x14xf32>
    %c45_329 = arith.constant 45 : index
    %1218 = memref.load %arg3[%c45_329] : memref<162xf32, #tpu.memory_space<smem>>
    %1219 = vector.broadcast %1218 : f32 to vector<14x14xf32>
    %1220 = arith.mulf %1213, %1219 : vector<14x14xf32>
    %1221 = arith.addf %1195, %1220 : vector<14x14xf32>
    %c72_330 = arith.constant 72 : index
    %1222 = memref.load %arg3[%c72_330] : memref<162xf32, #tpu.memory_space<smem>>
    %1223 = vector.broadcast %1222 : f32 to vector<14x14xf32>
    %1224 = arith.mulf %1213, %1223 : vector<14x14xf32>
    %1225 = arith.addf %1199, %1224 : vector<14x14xf32>
    %c99_331 = arith.constant 99 : index
    %1226 = memref.load %arg3[%c99_331] : memref<162xf32, #tpu.memory_space<smem>>
    %1227 = vector.broadcast %1226 : f32 to vector<14x14xf32>
    %1228 = arith.mulf %1213, %1227 : vector<14x14xf32>
    %1229 = arith.addf %1203, %1228 : vector<14x14xf32>
    %c126_332 = arith.constant 126 : index
    %1230 = memref.load %arg3[%c126_332] : memref<162xf32, #tpu.memory_space<smem>>
    %1231 = vector.broadcast %1230 : f32 to vector<14x14xf32>
    %1232 = arith.mulf %1213, %1231 : vector<14x14xf32>
    %1233 = arith.addf %1207, %1232 : vector<14x14xf32>
    %c153_333 = arith.constant 153 : index
    %1234 = memref.load %arg3[%c153_333] : memref<162xf32, #tpu.memory_space<smem>>
    %1235 = vector.broadcast %1234 : f32 to vector<14x14xf32>
    %1236 = arith.mulf %1213, %1235 : vector<14x14xf32>
    %1237 = arith.addf %1211, %1236 : vector<14x14xf32>
    %c1_334 = arith.constant 1 : index
    %c2_335 = arith.constant 2 : index
    %c0_336 = arith.constant 0 : index
    %c1_337 = arith.constant 1 : index
    %1238 = vector.load %arg2[%c1_334, %c2_335, %c0_336, %c1_337] : memref<2x3x16x16xf32, #tpu.memory_space<vmem>>, vector<1x1x14x14xf32>
    %1239 = vector.shape_cast %1238 : vector<1x1x14x14xf32> to vector<14x14xf32>
    %c19_338 = arith.constant 19 : index
    %1240 = memref.load %arg3[%c19_338] : memref<162xf32, #tpu.memory_space<smem>>
    %1241 = vector.broadcast %1240 : f32 to vector<14x14xf32>
    %1242 = arith.mulf %1239, %1241 : vector<14x14xf32>
    %1243 = arith.addf %1217, %1242 : vector<14x14xf32>
    %c46_339 = arith.constant 46 : index
    %1244 = memref.load %arg3[%c46_339] : memref<162xf32, #tpu.memory_space<smem>>
    %1245 = vector.broadcast %1244 : f32 to vector<14x14xf32>
    %1246 = arith.mulf %1239, %1245 : vector<14x14xf32>
    %1247 = arith.addf %1221, %1246 : vector<14x14xf32>
    %c73_340 = arith.constant 73 : index
    %1248 = memref.load %arg3[%c73_340] : memref<162xf32, #tpu.memory_space<smem>>
    %1249 = vector.broadcast %1248 : f32 to vector<14x14xf32>
    %1250 = arith.mulf %1239, %1249 : vector<14x14xf32>
    %1251 = arith.addf %1225, %1250 : vector<14x14xf32>
    %c100_341 = arith.constant 100 : index
    %1252 = memref.load %arg3[%c100_341] : memref<162xf32, #tpu.memory_space<smem>>
    %1253 = vector.broadcast %1252 : f32 to vector<14x14xf32>
    %1254 = arith.mulf %1239, %1253 : vector<14x14xf32>
    %1255 = arith.addf %1229, %1254 : vector<14x14xf32>
    %c127_342 = arith.constant 127 : index
    %1256 = memref.load %arg3[%c127_342] : memref<162xf32, #tpu.memory_space<smem>>
    %1257 = vector.broadcast %1256 : f32 to vector<14x14xf32>
    %1258 = arith.mulf %1239, %1257 : vector<14x14xf32>
    %1259 = arith.addf %1233, %1258 : vector<14x14xf32>
    %c154_343 = arith.constant 154 : index
    %1260 = memref.load %arg3[%c154_343] : memref<162xf32, #tpu.memory_space<smem>>
    %1261 = vector.broadcast %1260 : f32 to vector<14x14xf32>
    %1262 = arith.mulf %1239, %1261 : vector<14x14xf32>
    %1263 = arith.addf %1237, %1262 : vector<14x14xf32>
    %c1_344 = arith.constant 1 : index
    %c2_345 = arith.constant 2 : index
    %c0_346 = arith.constant 0 : index
    %c2_347 = arith.constant 2 : index
    %1264 = vector.load %arg2[%c1_344, %c2_345, %c0_346, %c2_347] : memref<2x3x16x16xf32, #tpu.memory_space<vmem>>, vector<1x1x14x14xf32>
    %1265 = vector.shape_cast %1264 : vector<1x1x14x14xf32> to vector<14x14xf32>
    %c20_348 = arith.constant 20 : index
    %1266 = memref.load %arg3[%c20_348] : memref<162xf32, #tpu.memory_space<smem>>
    %1267 = vector.broadcast %1266 : f32 to vector<14x14xf32>
    %1268 = arith.mulf %1265, %1267 : vector<14x14xf32>
    %1269 = arith.addf %1243, %1268 : vector<14x14xf32>
    %c47_349 = arith.constant 47 : index
    %1270 = memref.load %arg3[%c47_349] : memref<162xf32, #tpu.memory_space<smem>>
    %1271 = vector.broadcast %1270 : f32 to vector<14x14xf32>
    %1272 = arith.mulf %1265, %1271 : vector<14x14xf32>
    %1273 = arith.addf %1247, %1272 : vector<14x14xf32>
    %c74_350 = arith.constant 74 : index
    %1274 = memref.load %arg3[%c74_350] : memref<162xf32, #tpu.memory_space<smem>>
    %1275 = vector.broadcast %1274 : f32 to vector<14x14xf32>
    %1276 = arith.mulf %1265, %1275 : vector<14x14xf32>
    %1277 = arith.addf %1251, %1276 : vector<14x14xf32>
    %c101_351 = arith.constant 101 : index
    %1278 = memref.load %arg3[%c101_351] : memref<162xf32, #tpu.memory_space<smem>>
    %1279 = vector.broadcast %1278 : f32 to vector<14x14xf32>
    %1280 = arith.mulf %1265, %1279 : vector<14x14xf32>
    %1281 = arith.addf %1255, %1280 : vector<14x14xf32>
    %c128_352 = arith.constant 128 : index
    %1282 = memref.load %arg3[%c128_352] : memref<162xf32, #tpu.memory_space<smem>>
    %1283 = vector.broadcast %1282 : f32 to vector<14x14xf32>
    %1284 = arith.mulf %1265, %1283 : vector<14x14xf32>
    %1285 = arith.addf %1259, %1284 : vector<14x14xf32>
    %c155_353 = arith.constant 155 : index
    %1286 = memref.load %arg3[%c155_353] : memref<162xf32, #tpu.memory_space<smem>>
    %1287 = vector.broadcast %1286 : f32 to vector<14x14xf32>
    %1288 = arith.mulf %1265, %1287 : vector<14x14xf32>
    %1289 = arith.addf %1263, %1288 : vector<14x14xf32>
    %c1_354 = arith.constant 1 : index
    %c2_355 = arith.constant 2 : index
    %c1_356 = arith.constant 1 : index
    %c0_357 = arith.constant 0 : index
    %1290 = vector.load %arg2[%c1_354, %c2_355, %c1_356, %c0_357] : memref<2x3x16x16xf32, #tpu.memory_space<vmem>>, vector<1x1x14x14xf32>
    %1291 = vector.shape_cast %1290 : vector<1x1x14x14xf32> to vector<14x14xf32>
    %c21_358 = arith.constant 21 : index
    %1292 = memref.load %arg3[%c21_358] : memref<162xf32, #tpu.memory_space<smem>>
    %1293 = vector.broadcast %1292 : f32 to vector<14x14xf32>
    %1294 = arith.mulf %1291, %1293 : vector<14x14xf32>
    %1295 = arith.addf %1269, %1294 : vector<14x14xf32>
    %c48_359 = arith.constant 48 : index
    %1296 = memref.load %arg3[%c48_359] : memref<162xf32, #tpu.memory_space<smem>>
    %1297 = vector.broadcast %1296 : f32 to vector<14x14xf32>
    %1298 = arith.mulf %1291, %1297 : vector<14x14xf32>
    %1299 = arith.addf %1273, %1298 : vector<14x14xf32>
    %c75_360 = arith.constant 75 : index
    %1300 = memref.load %arg3[%c75_360] : memref<162xf32, #tpu.memory_space<smem>>
    %1301 = vector.broadcast %1300 : f32 to vector<14x14xf32>
    %1302 = arith.mulf %1291, %1301 : vector<14x14xf32>
    %1303 = arith.addf %1277, %1302 : vector<14x14xf32>
    %c102_361 = arith.constant 102 : index
    %1304 = memref.load %arg3[%c102_361] : memref<162xf32, #tpu.memory_space<smem>>
    %1305 = vector.broadcast %1304 : f32 to vector<14x14xf32>
    %1306 = arith.mulf %1291, %1305 : vector<14x14xf32>
    %1307 = arith.addf %1281, %1306 : vector<14x14xf32>
    %c129_362 = arith.constant 129 : index
    %1308 = memref.load %arg3[%c129_362] : memref<162xf32, #tpu.memory_space<smem>>
    %1309 = vector.broadcast %1308 : f32 to vector<14x14xf32>
    %1310 = arith.mulf %1291, %1309 : vector<14x14xf32>
    %1311 = arith.addf %1285, %1310 : vector<14x14xf32>
    %c156_363 = arith.constant 156 : index
    %1312 = memref.load %arg3[%c156_363] : memref<162xf32, #tpu.memory_space<smem>>
    %1313 = vector.broadcast %1312 : f32 to vector<14x14xf32>
    %1314 = arith.mulf %1291, %1313 : vector<14x14xf32>
    %1315 = arith.addf %1289, %1314 : vector<14x14xf32>
    %c1_364 = arith.constant 1 : index
    %c2_365 = arith.constant 2 : index
    %c1_366 = arith.constant 1 : index
    %c1_367 = arith.constant 1 : index
    %1316 = vector.load %arg2[%c1_364, %c2_365, %c1_366, %c1_367] : memref<2x3x16x16xf32, #tpu.memory_space<vmem>>, vector<1x1x14x14xf32>
    %1317 = vector.shape_cast %1316 : vector<1x1x14x14xf32> to vector<14x14xf32>
    %c22_368 = arith.constant 22 : index
    %1318 = memref.load %arg3[%c22_368] : memref<162xf32, #tpu.memory_space<smem>>
    %1319 = vector.broadcast %1318 : f32 to vector<14x14xf32>
    %1320 = arith.mulf %1317, %1319 : vector<14x14xf32>
    %1321 = arith.addf %1295, %1320 : vector<14x14xf32>
    %c49_369 = arith.constant 49 : index
    %1322 = memref.load %arg3[%c49_369] : memref<162xf32, #tpu.memory_space<smem>>
    %1323 = vector.broadcast %1322 : f32 to vector<14x14xf32>
    %1324 = arith.mulf %1317, %1323 : vector<14x14xf32>
    %1325 = arith.addf %1299, %1324 : vector<14x14xf32>
    %c76_370 = arith.constant 76 : index
    %1326 = memref.load %arg3[%c76_370] : memref<162xf32, #tpu.memory_space<smem>>
    %1327 = vector.broadcast %1326 : f32 to vector<14x14xf32>
    %1328 = arith.mulf %1317, %1327 : vector<14x14xf32>
    %1329 = arith.addf %1303, %1328 : vector<14x14xf32>
    %c103_371 = arith.constant 103 : index
    %1330 = memref.load %arg3[%c103_371] : memref<162xf32, #tpu.memory_space<smem>>
    %1331 = vector.broadcast %1330 : f32 to vector<14x14xf32>
    %1332 = arith.mulf %1317, %1331 : vector<14x14xf32>
    %1333 = arith.addf %1307, %1332 : vector<14x14xf32>
    %c130_372 = arith.constant 130 : index
    %1334 = memref.load %arg3[%c130_372] : memref<162xf32, #tpu.memory_space<smem>>
    %1335 = vector.broadcast %1334 : f32 to vector<14x14xf32>
    %1336 = arith.mulf %1317, %1335 : vector<14x14xf32>
    %1337 = arith.addf %1311, %1336 : vector<14x14xf32>
    %c157_373 = arith.constant 157 : index
    %1338 = memref.load %arg3[%c157_373] : memref<162xf32, #tpu.memory_space<smem>>
    %1339 = vector.broadcast %1338 : f32 to vector<14x14xf32>
    %1340 = arith.mulf %1317, %1339 : vector<14x14xf32>
    %1341 = arith.addf %1315, %1340 : vector<14x14xf32>
    %c1_374 = arith.constant 1 : index
    %c2_375 = arith.constant 2 : index
    %c1_376 = arith.constant 1 : index
    %c2_377 = arith.constant 2 : index
    %1342 = vector.load %arg2[%c1_374, %c2_375, %c1_376, %c2_377] : memref<2x3x16x16xf32, #tpu.memory_space<vmem>>, vector<1x1x14x14xf32>
    %1343 = vector.shape_cast %1342 : vector<1x1x14x14xf32> to vector<14x14xf32>
    %c23_378 = arith.constant 23 : index
    %1344 = memref.load %arg3[%c23_378] : memref<162xf32, #tpu.memory_space<smem>>
    %1345 = vector.broadcast %1344 : f32 to vector<14x14xf32>
    %1346 = arith.mulf %1343, %1345 : vector<14x14xf32>
    %1347 = arith.addf %1321, %1346 : vector<14x14xf32>
    %c50_379 = arith.constant 50 : index
    %1348 = memref.load %arg3[%c50_379] : memref<162xf32, #tpu.memory_space<smem>>
    %1349 = vector.broadcast %1348 : f32 to vector<14x14xf32>
    %1350 = arith.mulf %1343, %1349 : vector<14x14xf32>
    %1351 = arith.addf %1325, %1350 : vector<14x14xf32>
    %c77_380 = arith.constant 77 : index
    %1352 = memref.load %arg3[%c77_380] : memref<162xf32, #tpu.memory_space<smem>>
    %1353 = vector.broadcast %1352 : f32 to vector<14x14xf32>
    %1354 = arith.mulf %1343, %1353 : vector<14x14xf32>
    %1355 = arith.addf %1329, %1354 : vector<14x14xf32>
    %c104_381 = arith.constant 104 : index
    %1356 = memref.load %arg3[%c104_381] : memref<162xf32, #tpu.memory_space<smem>>
    %1357 = vector.broadcast %1356 : f32 to vector<14x14xf32>
    %1358 = arith.mulf %1343, %1357 : vector<14x14xf32>
    %1359 = arith.addf %1333, %1358 : vector<14x14xf32>
    %c131_382 = arith.constant 131 : index
    %1360 = memref.load %arg3[%c131_382] : memref<162xf32, #tpu.memory_space<smem>>
    %1361 = vector.broadcast %1360 : f32 to vector<14x14xf32>
    %1362 = arith.mulf %1343, %1361 : vector<14x14xf32>
    %1363 = arith.addf %1337, %1362 : vector<14x14xf32>
    %c158_383 = arith.constant 158 : index
    %1364 = memref.load %arg3[%c158_383] : memref<162xf32, #tpu.memory_space<smem>>
    %1365 = vector.broadcast %1364 : f32 to vector<14x14xf32>
    %1366 = arith.mulf %1343, %1365 : vector<14x14xf32>
    %1367 = arith.addf %1341, %1366 : vector<14x14xf32>
    %c1_384 = arith.constant 1 : index
    %c2_385 = arith.constant 2 : index
    %c2_386 = arith.constant 2 : index
    %c0_387 = arith.constant 0 : index
    %1368 = vector.load %arg2[%c1_384, %c2_385, %c2_386, %c0_387] : memref<2x3x16x16xf32, #tpu.memory_space<vmem>>, vector<1x1x14x14xf32>
    %1369 = vector.shape_cast %1368 : vector<1x1x14x14xf32> to vector<14x14xf32>
    %c24_388 = arith.constant 24 : index
    %1370 = memref.load %arg3[%c24_388] : memref<162xf32, #tpu.memory_space<smem>>
    %1371 = vector.broadcast %1370 : f32 to vector<14x14xf32>
    %1372 = arith.mulf %1369, %1371 : vector<14x14xf32>
    %1373 = arith.addf %1347, %1372 : vector<14x14xf32>
    %c51_389 = arith.constant 51 : index
    %1374 = memref.load %arg3[%c51_389] : memref<162xf32, #tpu.memory_space<smem>>
    %1375 = vector.broadcast %1374 : f32 to vector<14x14xf32>
    %1376 = arith.mulf %1369, %1375 : vector<14x14xf32>
    %1377 = arith.addf %1351, %1376 : vector<14x14xf32>
    %c78_390 = arith.constant 78 : index
    %1378 = memref.load %arg3[%c78_390] : memref<162xf32, #tpu.memory_space<smem>>
    %1379 = vector.broadcast %1378 : f32 to vector<14x14xf32>
    %1380 = arith.mulf %1369, %1379 : vector<14x14xf32>
    %1381 = arith.addf %1355, %1380 : vector<14x14xf32>
    %c105_391 = arith.constant 105 : index
    %1382 = memref.load %arg3[%c105_391] : memref<162xf32, #tpu.memory_space<smem>>
    %1383 = vector.broadcast %1382 : f32 to vector<14x14xf32>
    %1384 = arith.mulf %1369, %1383 : vector<14x14xf32>
    %1385 = arith.addf %1359, %1384 : vector<14x14xf32>
    %c132_392 = arith.constant 132 : index
    %1386 = memref.load %arg3[%c132_392] : memref<162xf32, #tpu.memory_space<smem>>
    %1387 = vector.broadcast %1386 : f32 to vector<14x14xf32>
    %1388 = arith.mulf %1369, %1387 : vector<14x14xf32>
    %1389 = arith.addf %1363, %1388 : vector<14x14xf32>
    %c159_393 = arith.constant 159 : index
    %1390 = memref.load %arg3[%c159_393] : memref<162xf32, #tpu.memory_space<smem>>
    %1391 = vector.broadcast %1390 : f32 to vector<14x14xf32>
    %1392 = arith.mulf %1369, %1391 : vector<14x14xf32>
    %1393 = arith.addf %1367, %1392 : vector<14x14xf32>
    %c1_394 = arith.constant 1 : index
    %c2_395 = arith.constant 2 : index
    %c2_396 = arith.constant 2 : index
    %c1_397 = arith.constant 1 : index
    %1394 = vector.load %arg2[%c1_394, %c2_395, %c2_396, %c1_397] : memref<2x3x16x16xf32, #tpu.memory_space<vmem>>, vector<1x1x14x14xf32>
    %1395 = vector.shape_cast %1394 : vector<1x1x14x14xf32> to vector<14x14xf32>
    %c25_398 = arith.constant 25 : index
    %1396 = memref.load %arg3[%c25_398] : memref<162xf32, #tpu.memory_space<smem>>
    %1397 = vector.broadcast %1396 : f32 to vector<14x14xf32>
    %1398 = arith.mulf %1395, %1397 : vector<14x14xf32>
    %1399 = arith.addf %1373, %1398 : vector<14x14xf32>
    %c52_399 = arith.constant 52 : index
    %1400 = memref.load %arg3[%c52_399] : memref<162xf32, #tpu.memory_space<smem>>
    %1401 = vector.broadcast %1400 : f32 to vector<14x14xf32>
    %1402 = arith.mulf %1395, %1401 : vector<14x14xf32>
    %1403 = arith.addf %1377, %1402 : vector<14x14xf32>
    %c79_400 = arith.constant 79 : index
    %1404 = memref.load %arg3[%c79_400] : memref<162xf32, #tpu.memory_space<smem>>
    %1405 = vector.broadcast %1404 : f32 to vector<14x14xf32>
    %1406 = arith.mulf %1395, %1405 : vector<14x14xf32>
    %1407 = arith.addf %1381, %1406 : vector<14x14xf32>
    %c106_401 = arith.constant 106 : index
    %1408 = memref.load %arg3[%c106_401] : memref<162xf32, #tpu.memory_space<smem>>
    %1409 = vector.broadcast %1408 : f32 to vector<14x14xf32>
    %1410 = arith.mulf %1395, %1409 : vector<14x14xf32>
    %1411 = arith.addf %1385, %1410 : vector<14x14xf32>
    %c133_402 = arith.constant 133 : index
    %1412 = memref.load %arg3[%c133_402] : memref<162xf32, #tpu.memory_space<smem>>
    %1413 = vector.broadcast %1412 : f32 to vector<14x14xf32>
    %1414 = arith.mulf %1395, %1413 : vector<14x14xf32>
    %1415 = arith.addf %1389, %1414 : vector<14x14xf32>
    %c160_403 = arith.constant 160 : index
    %1416 = memref.load %arg3[%c160_403] : memref<162xf32, #tpu.memory_space<smem>>
    %1417 = vector.broadcast %1416 : f32 to vector<14x14xf32>
    %1418 = arith.mulf %1395, %1417 : vector<14x14xf32>
    %1419 = arith.addf %1393, %1418 : vector<14x14xf32>
    %c1_404 = arith.constant 1 : index
    %c2_405 = arith.constant 2 : index
    %c2_406 = arith.constant 2 : index
    %c2_407 = arith.constant 2 : index
    %1420 = vector.load %arg2[%c1_404, %c2_405, %c2_406, %c2_407] : memref<2x3x16x16xf32, #tpu.memory_space<vmem>>, vector<1x1x14x14xf32>
    %1421 = vector.shape_cast %1420 : vector<1x1x14x14xf32> to vector<14x14xf32>
    %c26_408 = arith.constant 26 : index
    %1422 = memref.load %arg3[%c26_408] : memref<162xf32, #tpu.memory_space<smem>>
    %1423 = vector.broadcast %1422 : f32 to vector<14x14xf32>
    %1424 = arith.mulf %1421, %1423 : vector<14x14xf32>
    %1425 = arith.addf %1399, %1424 : vector<14x14xf32>
    %c53_409 = arith.constant 53 : index
    %1426 = memref.load %arg3[%c53_409] : memref<162xf32, #tpu.memory_space<smem>>
    %1427 = vector.broadcast %1426 : f32 to vector<14x14xf32>
    %1428 = arith.mulf %1421, %1427 : vector<14x14xf32>
    %1429 = arith.addf %1403, %1428 : vector<14x14xf32>
    %c80_410 = arith.constant 80 : index
    %1430 = memref.load %arg3[%c80_410] : memref<162xf32, #tpu.memory_space<smem>>
    %1431 = vector.broadcast %1430 : f32 to vector<14x14xf32>
    %1432 = arith.mulf %1421, %1431 : vector<14x14xf32>
    %1433 = arith.addf %1407, %1432 : vector<14x14xf32>
    %c107_411 = arith.constant 107 : index
    %1434 = memref.load %arg3[%c107_411] : memref<162xf32, #tpu.memory_space<smem>>
    %1435 = vector.broadcast %1434 : f32 to vector<14x14xf32>
    %1436 = arith.mulf %1421, %1435 : vector<14x14xf32>
    %1437 = arith.addf %1411, %1436 : vector<14x14xf32>
    %c134_412 = arith.constant 134 : index
    %1438 = memref.load %arg3[%c134_412] : memref<162xf32, #tpu.memory_space<smem>>
    %1439 = vector.broadcast %1438 : f32 to vector<14x14xf32>
    %1440 = arith.mulf %1421, %1439 : vector<14x14xf32>
    %1441 = arith.addf %1415, %1440 : vector<14x14xf32>
    %c161_413 = arith.constant 161 : index
    %1442 = memref.load %arg3[%c161_413] : memref<162xf32, #tpu.memory_space<smem>>
    %1443 = vector.broadcast %1442 : f32 to vector<14x14xf32>
    %1444 = arith.mulf %1421, %1443 : vector<14x14xf32>
    %1445 = arith.addf %1419, %1444 : vector<14x14xf32>
    %c1_414 = arith.constant 1 : index
    %c0_415 = arith.constant 0 : index
    %c0_416 = arith.constant 0 : index
    %c0_417 = arith.constant 0 : index
    %1446 = vector.load %arg5[%c1_414, %c0_415, %c0_416, %c0_417] : memref<2x6x14x14xf32, #tpu.memory_space<vmem>>, vector<1x1x14x14xf32>
    %1447 = vector.shape_cast %1446 : vector<1x1x14x14xf32> to vector<14x14xf32>
    %1448 = vector.shape_cast %1425 : vector<14x14xf32> to vector<1x1x14x14xf32>
    tpu.vector_store %arg5[%c1_414, %c0_415, %c0_416, %c0_417], %1448 {strides = array<i32>} : memref<2x6x14x14xf32, #tpu.memory_space<vmem>>, vector<1x1x14x14xf32>,
    %c1_418 = arith.constant 1 : index
    %c1_419 = arith.constant 1 : index
    %c0_420 = arith.constant 0 : index
    %c0_421 = arith.constant 0 : index
    %1449 = vector.load %arg5[%c1_418, %c1_419, %c0_420, %c0_421] : memref<2x6x14x14xf32, #tpu.memory_space<vmem>>, vector<1x1x14x14xf32>
    %1450 = vector.shape_cast %1449 : vector<1x1x14x14xf32> to vector<14x14xf32>
    %1451 = vector.shape_cast %1429 : vector<14x14xf32> to vector<1x1x14x14xf32>
    tpu.vector_store %arg5[%c1_418, %c1_419, %c0_420, %c0_421], %1451 {strides = array<i32>} : memref<2x6x14x14xf32, #tpu.memory_space<vmem>>, vector<1x1x14x14xf32>,
    %c1_422 = arith.constant 1 : index
    %c2_423 = arith.constant 2 : index
    %c0_424 = arith.constant 0 : index
    %c0_425 = arith.constant 0 : index
    %1452 = vector.load %arg5[%c1_422, %c2_423, %c0_424, %c0_425] : memref<2x6x14x14xf32, #tpu.memory_space<vmem>>, vector<1x1x14x14xf32>
    %1453 = vector.shape_cast %1452 : vector<1x1x14x14xf32> to vector<14x14xf32>
    %1454 = vector.shape_cast %1433 : vector<14x14xf32> to vector<1x1x14x14xf32>
    tpu.vector_store %arg5[%c1_422, %c2_423, %c0_424, %c0_425], %1454 {strides = array<i32>} : memref<2x6x14x14xf32, #tpu.memory_space<vmem>>, vector<1x1x14x14xf32>,
    %c1_426 = arith.constant 1 : index
    %c3_427 = arith.constant 3 : index
    %c0_428 = arith.constant 0 : index
    %c0_429 = arith.constant 0 : index
    %1455 = vector.load %arg5[%c1_426, %c3_427, %c0_428, %c0_429] : memref<2x6x14x14xf32, #tpu.memory_space<vmem>>, vector<1x1x14x14xf32>
    %1456 = vector.shape_cast %1455 : vector<1x1x14x14xf32> to vector<14x14xf32>
    %1457 = vector.shape_cast %1437 : vector<14x14xf32> to vector<1x1x14x14xf32>
    tpu.vector_store %arg5[%c1_426, %c3_427, %c0_428, %c0_429], %1457 {strides = array<i32>} : memref<2x6x14x14xf32, #tpu.memory_space<vmem>>, vector<1x1x14x14xf32>,
    %c1_430 = arith.constant 1 : index
    %c4_431 = arith.constant 4 : index
    %c0_432 = arith.constant 0 : index
    %c0_433 = arith.constant 0 : index
    %1458 = vector.load %arg5[%c1_430, %c4_431, %c0_432, %c0_433] : memref<2x6x14x14xf32, #tpu.memory_space<vmem>>, vector<1x1x14x14xf32>
    %1459 = vector.shape_cast %1458 : vector<1x1x14x14xf32> to vector<14x14xf32>
    %1460 = vector.shape_cast %1441 : vector<14x14xf32> to vector<1x1x14x14xf32>
    tpu.vector_store %arg5[%c1_430, %c4_431, %c0_432, %c0_433], %1460 {strides = array<i32>} : memref<2x6x14x14xf32, #tpu.memory_space<vmem>>, vector<1x1x14x14xf32>,
    %c1_434 = arith.constant 1 : index
    %c5_435 = arith.constant 5 : index
    %c0_436 = arith.constant 0 : index
    %c0_437 = arith.constant 0 : index
    %1461 = vector.load %arg5[%c1_434, %c5_435, %c0_436, %c0_437] : memref<2x6x14x14xf32, #tpu.memory_space<vmem>>, vector<1x1x14x14xf32>
    %1462 = vector.shape_cast %1461 : vector<1x1x14x14xf32> to vector<14x14xf32>
    %1463 = vector.shape_cast %1445 : vector<14x14xf32> to vector<1x1x14x14xf32>
    tpu.vector_store %arg5[%c1_434, %c5_435, %c0_436, %c0_437], %1463 {strides = array<i32>} : memref<2x6x14x14xf32, #tpu.memory_space<vmem>>, vector<1x1x14x14xf32>,
    return
  }
  func.func @transform_0(%arg0: i32, %arg1: i32) -> (i32, i32, i32, i32) {
    %c0_i32 = arith.constant 0 : i32
    %c0_i32_0 = arith.constant 0 : i32
    %c0_i32_1 = arith.constant 0 : i32
    %c0_i32_2 = arith.constant 0 : i32
    return %arg0, %c0_i32, %c0_i32_0, %c0_i32_1 : i32, i32, i32, i32
  }
  func.func @transform_1(%arg0: i32, %arg1: i32) -> i32 {
    %c0_i32 = arith.constant 0 : i32
    %c0_i32_0 = arith.constant 0 : i32
    return %c0_i32 : i32
  }
  func.func @transform_2(%arg0: i32, %arg1: i32) -> i32 {
    %c0_i32 = arith.constant 0 : i32
    %c0_i32_0 = arith.constant 0 : i32
    return %c0_i32 : i32
  }
  func.func @transform_3(%arg0: i32, %arg1: i32) -> (i32, i32, i32, i32) {
    %c0_i32 = arith.constant 0 : i32
    %c0_i32_0 = arith.constant 0 : i32
    %c0_i32_1 = arith.constant 0 : i32
    return %arg0, %arg1, %c0_i32, %c0_i32_0 : i32, i32, i32, i32
  }
}

</mosaic_0001>

<llo_original>
// kernel: tpu_custom_call.1
$region0: #{tpu_custom_call.1}
  #allocation0 [shape = 'u32[]', space=smem, size = 0x4, offset = 0x4, fixed_abs, tag = 'smem constant byte address 0x4 - core index']
  #allocation1 [shape = 'u32[144,128]{1,0:T(1,128)}', space=vmem, size = 0x12000, scoped, tag = 'internal scratch']
  %s0 = inlined_call_operand.hbm [shape: f32[2,3,16,16], index: 0, kind: input, shape index: {}]
  %s1 = inlined_call_operand.hbm [shape: f32[162], index: 1, kind: input, shape index: {}]
  %s2 = inlined_call_operand.vmem [shape: f32[6], index: 2, kind: input, shape index: {}]
  %s3 = inlined_call_operand.vmem [shape: f32[2,6,14,14], index: 3, kind: output, shape index: {}]
  %s4 = sld [smem:[#allocation0]]
  $region34: #{tpu_custom_call.1} parent=0
    _
  %s6 = ssub.s32 1, %s4
  %s7 = scalar_select 0, %s6, %s4
  $region1: #{tpu_custom_call.1} parent=0
    #allocation2 [shape = 'u8[49152]{0}', space=vmem, size = 0xc000, scoped, tag = 'input window, operand 0, single buffered']
    #allocation3 [shape = 's32[1]{0}', space=sflag, size = 0x4, scoped, tag = 'scoped memory for tpu_custom_call.1']
    #allocation4 [shape = 's32[1]{0}', space=sflag, size = 0x4, scoped, tag = 'scoped memory for tpu_custom_call.1']
    #allocation5 [shape = 's32[1]{0}', space=sflag, size = 0x4, scoped, tag = 'scoped memory for tpu_custom_call.1']
    #allocation6 [shape = 'u8[1024]{0}', space=smem, size = 0x400, scoped, tag = 'input window, operand 1, single buffered']
    #allocation7 [shape = 'u8[512]{0}', space=smem, size = 0x200, scoped, tag = 'input window, operand 2, single buffered']
    %8 = vsyncpa [#allocation3], 0
    %9 = vsyncpa [#allocation4], 0
    %10 = vsyncpa [#allocation5], 0
    // Predicated region
    $region2: #{tpu_custom_call.1} parent=1 // pred_check
      _
    $region3: #{tpu_custom_call.1} parent=1 // pred_check_branch
      %12 = sbr.rel (0) target = $region5
    $region4: #{tpu_custom_call.1} parent=1 // pred_region
      %s14 = ssub.s32 1536, 1536
      %15 = vsyncadd [#allocation3], %s14
      %s16 = sshll.u32 [#allocation2], 4
      %s17 = int_to_ptr.vmem [resolvable:$true] %s16
      %22 = dma.hbm_to_vmem [thread:$0]  %s0, 1536, %s17, [#allocation3], 128, 128, 8
    $region5: #{tpu_custom_call.1} parent=1 // pred_fallthru
      _
    // Predicated region
    $region6: #{tpu_custom_call.1} parent=1 // pred_check
      _
    $region7: #{tpu_custom_call.1} parent=1 // pred_check_branch
      %24 = sbr.rel (0) target = $region9
    $region8: #{tpu_custom_call.1} parent=1 // pred_region
      %s26 = ssub.s32 32, 32
      %27 = vsyncadd [#allocation4], %s26
      %30 = dma.hbm_to_smem %s1, 32, [#allocation6], [#allocation4]
    $region9: #{tpu_custom_call.1} parent=1 // pred_fallthru
      _
    // Predicated region
    $region10: #{tpu_custom_call.1} parent=1 // pred_check
      _
    $region11: #{tpu_custom_call.1} parent=1 // pred_check_branch
      %32 = sbr.rel (0) target = $region13
    $region12: #{tpu_custom_call.1} parent=1 // pred_region
      %s34 = ssub.s32 16, 16
      %35 = vsyncadd [#allocation5], %s34
      %s37 = sshll.u32 %s2, 4
      %s38 = int_to_ptr.vmem [resolvable:$true] %s37
      %40 = dma.vmem_to_smem %s38, 16, [#allocation7], [#allocation5]
    $region13: #{tpu_custom_call.1} parent=1 // pred_fallthru
      _
    // Predicated region
    $region14: #{tpu_custom_call.1} parent=1 // pred_check
      _
    $region15: #{tpu_custom_call.1} parent=1 // pred_check_branch
      %42 = sbr.rel (0) target = $region17
    $region16: #{tpu_custom_call.1} parent=1 // pred_region
      %43 = dma.done [#allocation3], 1536
    $region17: #{tpu_custom_call.1} parent=1 // pred_fallthru
      _
    // Predicated region
    $region18: #{tpu_custom_call.1} parent=1 // pred_check
      _
    $region19: #{tpu_custom_call.1} parent=1 // pred_check_branch
      %45 = sbr.rel (0) target = $region21
    $region20: #{tpu_custom_call.1} parent=1 // pred_region
      %46 = dma.done [#allocation4], 32
    $region21: #{tpu_custom_call.1} parent=1 // pred_fallthru
      _
    // Predicated region
    $region22: #{tpu_custom_call.1} parent=1 // pred_check
      _
    $region23: #{tpu_custom_call.1} parent=1 // pred_check_branch
      %48 = sbr.rel (0) target = $region25
    $region24: #{tpu_custom_call.1} parent=1 // pred_region
      %49 = dma.done [#allocation5], 16
    $region25: #{tpu_custom_call.1} parent=1 // pred_fallthru
      _
    %50 = sfence
    %s51 = sld [smem:[#allocation7]]
    %v52 = vstv %s51
    %s53 = sld [smem:[#allocation7 + $0x1]]
    %v54 = vstv %s53
    %s55 = sld [smem:[#allocation7 + $0x2]]
    %v56 = vstv %s55
    %s57 = sld [smem:[#allocation7 + $0x3]]
    %v58 = vstv %s57
    %s59 = sld [smem:[#allocation7 + $0x4]]
    %v60 = vstv %s59
    %s61 = sld [smem:[#allocation7 + $0x5]]
    %v62 = vstv %s61
    %v63 = vld [vmem:[#allocation2] sm:$0xff]
    %v64 = vld [vmem:[#allocation2 + $0x8] sm:$0x3f]
    %s65 = sld [smem:[#allocation6]]
    %v66 = vstv %s65
    %v67 = vmul.f32 %v63, %v66
    %v68 = vmul.f32 %v64, %v66
    %v69 = vadd.f32 %v52, %v67
    %v70 = vadd.f32 %v52, %v68
    %s71 = sld [smem:[#allocation6 + $0x1b]]
    %v72 = vstv %s71
    %v73 = vmul.f32 %v63, %v72
    %v74 = vmul.f32 %v64, %v72
    %v75 = vadd.f32 %v54, %v73
    %v76 = vadd.f32 %v54, %v74
    %s77 = sld [smem:[#allocation6 + $0x36]]
    %v78 = vstv %s77
    %v79 = vmul.f32 %v63, %v78
    %v80 = vmul.f32 %v64, %v78
    %v81 = vadd.f32 %v56, %v79
    %v82 = vadd.f32 %v56, %v80
    %s83 = sld [smem:[#allocation6 + $0x51]]
    %v84 = vstv %s83
    %v85 = vmul.f32 %v63, %v84
    %v86 = vmul.f32 %v64, %v84
    %v87 = vadd.f32 %v58, %v85
    %v88 = vadd.f32 %v58, %v86
    %s89 = sld [smem:[#allocation6 + $0x6c]]
    %v90 = vstv %s89
    %v91 = vmul.f32 %v63, %v90
    %v92 = vmul.f32 %v64, %v90
    %v93 = vadd.f32 %v60, %v91
    %v94 = vadd.f32 %v60, %v92
    %s95 = sld [smem:[#allocation6 + $0x87]]
    %v96 = vstv %s95
    %v97 = vmul.f32 %v63, %v96
    %v98 = vmul.f32 %v64, %v96
    %v99 = vadd.f32 %v62, %v97
    %v100 = vadd.f32 %v62, %v98
    %s101 = sld [smem:[#allocation6 + $0x1]]
    %v102 = vstv %s101
    %v103 = vmul.f32 %v63, %v102
    %v104 = vmul.f32 %v64, %v102
    %107 = vrot.lane.b32.xlu0 %v103, 127
    %v108 = vpop.permute.xlu0 %107
    %109 = vrot.lane.b32.xlu0 %v104, 127
    %v110 = vpop.permute.xlu0 %109
    %v113 = vadd.f32 %v69, %v108
    %v114 = vadd.f32 %v70, %v110
    %s115 = sld [smem:[#allocation6 + $0x1c]]
    %v116 = vstv %s115
    %v117 = vmul.f32 %v63, %v116
    %v118 = vmul.f32 %v64, %v116
    %121 = vrot.lane.b32.xlu0 %v117, 127
    %v122 = vpop.permute.xlu0 %121
    %123 = vrot.lane.b32.xlu0 %v118, 127
    %v124 = vpop.permute.xlu0 %123
    %v127 = vadd.f32 %v75, %v122
    %v128 = vadd.f32 %v76, %v124
    %s129 = sld [smem:[#allocation6 + $0x37]]
    %v130 = vstv %s129
    %v131 = vmul.f32 %v63, %v130
    %v132 = vmul.f32 %v64, %v130
    %135 = vrot.lane.b32.xlu0 %v131, 127
    %v136 = vpop.permute.xlu0 %135
    %137 = vrot.lane.b32.xlu0 %v132, 127
    %v138 = vpop.permute.xlu0 %137
    %v141 = vadd.f32 %v81, %v136
    %v142 = vadd.f32 %v82, %v138
    %s143 = sld [smem:[#allocation6 + $0x52]]
    %v144 = vstv %s143
    %v145 = vmul.f32 %v63, %v144
    %v146 = vmul.f32 %v64, %v144
    %149 = vrot.lane.b32.xlu0 %v145, 127
    %v150 = vpop.permute.xlu0 %149
    %151 = vrot.lane.b32.xlu0 %v146, 127
    %v152 = vpop.permute.xlu0 %151
    %v155 = vadd.f32 %v87, %v150
    %v156 = vadd.f32 %v88, %v152
    %s157 = sld [smem:[#allocation6 + $0x6d]]
    %v158 = vstv %s157
    %v159 = vmul.f32 %v63, %v158
    %v160 = vmul.f32 %v64, %v158
    %163 = vrot.lane.b32.xlu0 %v159, 127
    %v164 = vpop.permute.xlu0 %163
    %165 = vrot.lane.b32.xlu0 %v160, 127
    %v166 = vpop.permute.xlu0 %165
    %v169 = vadd.f32 %v93, %v164
    %v170 = vadd.f32 %v94, %v166
    %s171 = sld [smem:[#allocation6 + $0x88]]
    %v172 = vstv %s171
    %v173 = vmul.f32 %v63, %v172
    %v174 = vmul.f32 %v64, %v172
    %177 = vrot.lane.b32.xlu0 %v173, 127
    %v178 = vpop.permute.xlu0 %177
    %179 = vrot.lane.b32.xlu0 %v174, 127
    %v180 = vpop.permute.xlu0 %179
    %v183 = vadd.f32 %v99, %v178
    %v184 = vadd.f32 %v100, %v180
    %s185 = sld [smem:[#allocation6 + $0x2]]
    %v186 = vstv %s185
    %v187 = vmul.f32 %v63, %v186
    %v188 = vmul.f32 %v64, %v186
    %191 = vrot.lane.b32.xlu0 %v187, 126
    %v192 = vpop.permute.xlu0 %191
    %193 = vrot.lane.b32.xlu0 %v188, 126
    %v194 = vpop.permute.xlu0 %193
    %v197 = vadd.f32 %v113, %v192
    %v198 = vadd.f32 %v114, %v194
    %s199 = sld [smem:[#allocation6 + $0x1d]]
    %v200 = vstv %s199
    %v201 = vmul.f32 %v63, %v200
    %v202 = vmul.f32 %v64, %v200
    %205 = vrot.lane.b32.xlu0 %v201, 126
    %v206 = vpop.permute.xlu0 %205
    %207 = vrot.lane.b32.xlu0 %v202, 126
    %v208 = vpop.permute.xlu0 %207
    %v211 = vadd.f32 %v127, %v206
    %v212 = vadd.f32 %v128, %v208
    %s213 = sld [smem:[#allocation6 + $0x38]]
    %v214 = vstv %s213
    %v215 = vmul.f32 %v63, %v214
    %v216 = vmul.f32 %v64, %v214
    %219 = vrot.lane.b32.xlu0 %v215, 126
    %v220 = vpop.permute.xlu0 %219
    %221 = vrot.lane.b32.xlu0 %v216, 126
    %v222 = vpop.permute.xlu0 %221
    %v225 = vadd.f32 %v141, %v220
    %v226 = vadd.f32 %v142, %v222
    %s227 = sld [smem:[#allocation6 + $0x53]]
    %v228 = vstv %s227
    %v229 = vmul.f32 %v63, %v228
    %v230 = vmul.f32 %v64, %v228
    %233 = vrot.lane.b32.xlu0 %v229, 126
    %v234 = vpop.permute.xlu0 %233
    %235 = vrot.lane.b32.xlu0 %v230, 126
    %v236 = vpop.permute.xlu0 %235
    %v239 = vadd.f32 %v155, %v234
    %v240 = vadd.f32 %v156, %v236
    %s241 = sld [smem:[#allocation6 + $0x6e]]
    %v242 = vstv %s241
    %v243 = vmul.f32 %v63, %v242
    %v244 = vmul.f32 %v64, %v242
    %247 = vrot.lane.b32.xlu0 %v243, 126
    %v248 = vpop.permute.xlu0 %247
    %249 = vrot.lane.b32.xlu0 %v244, 126
    %v250 = vpop.permute.xlu0 %249
    %v253 = vadd.f32 %v169, %v248
    %v254 = vadd.f32 %v170, %v250
    %s255 = sld [smem:[#allocation6 + $0x89]]
    %v256 = vstv %s255
    %v257 = vmul.f32 %v63, %v256
    %v258 = vmul.f32 %v64, %v256
    %261 = vrot.lane.b32.xlu0 %v257, 126
    %v262 = vpop.permute.xlu0 %261
    %263 = vrot.lane.b32.xlu0 %v258, 126
    %v264 = vpop.permute.xlu0 %263
    %v267 = vadd.f32 %v183, %v262
    %v268 = vadd.f32 %v184, %v264
    %v269 = vld [vmem:[#allocation2 + $0x1] sm:$0xff]
    %v270 = vld [vmem:[#allocation2 + $0x9] sm:$0x3f]
    %s271 = sld [smem:[#allocation6 + $0x3]]
    %v272 = vstv %s271
    %v273 = vmul.f32 %v269, %v272
    %v274 = vmul.f32 %v270, %v272
    %v275 = vadd.f32 %v197, %v273
    %v276 = vadd.f32 %v198, %v274
    %s277 = sld [smem:[#allocation6 + $0x1e]]
    %v278 = vstv %s277
    %v279 = vmul.f32 %v269, %v278
    %v280 = vmul.f32 %v270, %v278
    %v281 = vadd.f32 %v211, %v279
    %v282 = vadd.f32 %v212, %v280
    %s283 = sld [smem:[#allocation6 + $0x39]]
    %v284 = vstv %s283
    %v285 = vmul.f32 %v269, %v284
    %v286 = vmul.f32 %v270, %v284
    %v287 = vadd.f32 %v225, %v285
    %v288 = vadd.f32 %v226, %v286
    %s289 = sld [smem:[#allocation6 + $0x54]]
    %v290 = vstv %s289
    %v291 = vmul.f32 %v269, %v290
    %v292 = vmul.f32 %v270, %v290
    %v293 = vadd.f32 %v239, %v291
    %v294 = vadd.f32 %v240, %v292
    %s295 = sld [smem:[#allocation6 + $0x6f]]
    %v296 = vstv %s295
    %v297 = vmul.f32 %v269, %v296
    %v298 = vmul.f32 %v270, %v296
    %v299 = vadd.f32 %v253, %v297
    %v300 = vadd.f32 %v254, %v298
    %s301 = sld [smem:[#allocation6 + $0x8a]]
    %v302 = vstv %s301
    %v303 = vmul.f32 %v269, %v302
    %v304 = vmul.f32 %v270, %v302
    %v305 = vadd.f32 %v267, %v303
    %v306 = vadd.f32 %v268, %v304
    %s307 = sld [smem:[#allocation6 + $0x4]]
    %v308 = vstv %s307
    %v309 = vmul.f32 %v269, %v308
    %v310 = vmul.f32 %v270, %v308
    %313 = vrot.lane.b32.xlu0 %v309, 127
    %v314 = vpop.permute.xlu0 %313
    %315 = vrot.lane.b32.xlu0 %v310, 127
    %v316 = vpop.permute.xlu0 %315
    %v319 = vadd.f32 %v275, %v314
    %v320 = vadd.f32 %v276, %v316
    %s321 = sld [smem:[#allocation6 + $0x1f]]
    %v322 = vstv %s321
    %v323 = vmul.f32 %v269, %v322
    %v324 = vmul.f32 %v270, %v322
    %327 = vrot.lane.b32.xlu0 %v323, 127
    %v328 = vpop.permute.xlu0 %327
    %329 = vrot.lane.b32.xlu0 %v324, 127
    %v330 = vpop.permute.xlu0 %329
    %v333 = vadd.f32 %v281, %v328
    %v334 = vadd.f32 %v282, %v330
    %s335 = sld [smem:[#allocation6 + $0x3a]]
    %v336 = vstv %s335
    %v337 = vmul.f32 %v269, %v336
    %v338 = vmul.f32 %v270, %v336
    %341 = vrot.lane.b32.xlu0 %v337, 127
    %v342 = vpop.permute.xlu0 %341
    %343 = vrot.lane.b32.xlu0 %v338, 127
    %v344 = vpop.permute.xlu0 %343
    %v347 = vadd.f32 %v287, %v342
    %v348 = vadd.f32 %v288, %v344
    %s349 = sld [smem:[#allocation6 + $0x55]]
    %v350 = vstv %s349
    %v351 = vmul.f32 %v269, %v350
    %v352 = vmul.f32 %v270, %v350
    %355 = vrot.lane.b32.xlu0 %v351, 127
    %v356 = vpop.permute.xlu0 %355
    %357 = vrot.lane.b32.xlu0 %v352, 127
    %v358 = vpop.permute.xlu0 %357
    %v361 = vadd.f32 %v293, %v356
    %v362 = vadd.f32 %v294, %v358
    %s363 = sld [smem:[#allocation6 + $0x70]]
    %v364 = vstv %s363
    %v365 = vmul.f32 %v269, %v364
    %v366 = vmul.f32 %v270, %v364
    %369 = vrot.lane.b32.xlu0 %v365, 127
    %v370 = vpop.permute.xlu0 %369
    %371 = vrot.lane.b32.xlu0 %v366, 127
    %v372 = vpop.permute.xlu0 %371
    %v375 = vadd.f32 %v299, %v370
    %v376 = vadd.f32 %v300, %v372
    %s377 = sld [smem:[#allocation6 + $0x8b]]
    %v378 = vstv %s377
    %v379 = vmul.f32 %v269, %v378
    %v380 = vmul.f32 %v270, %v378
    %383 = vrot.lane.b32.xlu0 %v379, 127
    %v384 = vpop.permute.xlu0 %383
    %385 = vrot.lane.b32.xlu0 %v380, 127
    %v386 = vpop.permute.xlu0 %385
    %v389 = vadd.f32 %v305, %v384
    %v390 = vadd.f32 %v306, %v386
    %s391 = sld [smem:[#allocation6 + $0x5]]
    %v392 = vstv %s391
    %v393 = vmul.f32 %v269, %v392
    %v394 = vmul.f32 %v270, %v392
    %397 = vrot.lane.b32.xlu0 %v393, 126
    %v398 = vpop.permute.xlu0 %397
    %399 = vrot.lane.b32.xlu0 %v394, 126
    %v400 = vpop.permute.xlu0 %399
    %v403 = vadd.f32 %v319, %v398
    %v404 = vadd.f32 %v320, %v400
    %s405 = sld [smem:[#allocation6 + $0x20]]
    %v406 = vstv %s405
    %v407 = vmul.f32 %v269, %v406
    %v408 = vmul.f32 %v270, %v406
    %411 = vrot.lane.b32.xlu0 %v407, 126
    %v412 = vpop.permute.xlu0 %411
    %413 = vrot.lane.b32.xlu0 %v408, 126
    %v414 = vpop.permute.xlu0 %413
    %v417 = vadd.f32 %v333, %v412
    %v418 = vadd.f32 %v334, %v414
    %s419 = sld [smem:[#allocation6 + $0x3b]]
    %v420 = vstv %s419
    %v421 = vmul.f32 %v269, %v420
    %v422 = vmul.f32 %v270, %v420
    %425 = vrot.lane.b32.xlu0 %v421, 126
    %v426 = vpop.permute.xlu0 %425
    %427 = vrot.lane.b32.xlu0 %v422, 126
    %v428 = vpop.permute.xlu0 %427
    %v431 = vadd.f32 %v347, %v426
    %v432 = vadd.f32 %v348, %v428
    %s433 = sld [smem:[#allocation6 + $0x56]]
    %v434 = vstv %s433
    %v435 = vmul.f32 %v269, %v434
    %v436 = vmul.f32 %v270, %v434
    %439 = vrot.lane.b32.xlu0 %v435, 126
    %v440 = vpop.permute.xlu0 %439
    %441 = vrot.lane.b32.xlu0 %v436, 126
    %v442 = vpop.permute.xlu0 %441
    %v445 = vadd.f32 %v361, %v440
    %v446 = vadd.f32 %v362, %v442
    %s447 = sld [smem:[#allocation6 + $0x71]]
    %v448 = vstv %s447
    %v449 = vmul.f32 %v269, %v448
    %v450 = vmul.f32 %v270, %v448
    %453 = vrot.lane.b32.xlu0 %v449, 126
    %v454 = vpop.permute.xlu0 %453
    %455 = vrot.lane.b32.xlu0 %v450, 126
    %v456 = vpop.permute.xlu0 %455
    %v459 = vadd.f32 %v375, %v454
    %v460 = vadd.f32 %v376, %v456
    %s461 = sld [smem:[#allocation6 + $0x8c]]
    %v462 = vstv %s461
    %v463 = vmul.f32 %v269, %v462
    %v464 = vmul.f32 %v270, %v462
    %467 = vrot.lane.b32.xlu0 %v463, 126
    %v468 = vpop.permute.xlu0 %467
    %469 = vrot.lane.b32.xlu0 %v464, 126
    %v470 = vpop.permute.xlu0 %469
    %v473 = vadd.f32 %v389, %v468
    %v474 = vadd.f32 %v390, %v470
    %v475 = vld [vmem:[#allocation2 + $0x2] sm:$0xff]
    %v476 = vld [vmem:[#allocation2 + $0xa] sm:$0x3f]
    %s477 = sld [smem:[#allocation6 + $0x6]]
    %v478 = vstv %s477
    %v479 = vmul.f32 %v475, %v478
    %v480 = vmul.f32 %v476, %v478
    %v481 = vadd.f32 %v403, %v479
    %v482 = vadd.f32 %v404, %v480
    %s483 = sld [smem:[#allocation6 + $0x21]]
    %v484 = vstv %s483
    %v485 = vmul.f32 %v475, %v484
    %v486 = vmul.f32 %v476, %v484
    %v487 = vadd.f32 %v417, %v485
    %v488 = vadd.f32 %v418, %v486
    %s489 = sld [smem:[#allocation6 + $0x3c]]
    %v490 = vstv %s489
    %v491 = vmul.f32 %v475, %v490
    %v492 = vmul.f32 %v476, %v490
    %v493 = vadd.f32 %v431, %v491
    %v494 = vadd.f32 %v432, %v492
    %s495 = sld [smem:[#allocation6 + $0x57]]
    %v496 = vstv %s495
    %v497 = vmul.f32 %v475, %v496
    %v498 = vmul.f32 %v476, %v496
    %v499 = vadd.f32 %v445, %v497
    %v500 = vadd.f32 %v446, %v498
    %s501 = sld [smem:[#allocation6 + $0x72]]
    %v502 = vstv %s501
    %v503 = vmul.f32 %v475, %v502
    %v504 = vmul.f32 %v476, %v502
    %v505 = vadd.f32 %v459, %v503
    %v506 = vadd.f32 %v460, %v504
    %s507 = sld [smem:[#allocation6 + $0x8d]]
    %v508 = vstv %s507
    %v509 = vmul.f32 %v475, %v508
    %v510 = vmul.f32 %v476, %v508
    %v511 = vadd.f32 %v473, %v509
    %v512 = vadd.f32 %v474, %v510
    %s513 = sld [smem:[#allocation6 + $0x7]]
    %v514 = vstv %s513
    %v515 = vmul.f32 %v475, %v514
    %v516 = vmul.f32 %v476, %v514
    %519 = vrot.lane.b32.xlu0 %v515, 127
    %v520 = vpop.permute.xlu0 %519
    %521 = vrot.lane.b32.xlu0 %v516, 127
    %v522 = vpop.permute.xlu0 %521
    %v525 = vadd.f32 %v481, %v520
    %v526 = vadd.f32 %v482, %v522
    %s527 = sld [smem:[#allocation6 + $0x22]]
    %v528 = vstv %s527
    %v529 = vmul.f32 %v475, %v528
    %v530 = vmul.f32 %v476, %v528
    %533 = vrot.lane.b32.xlu0 %v529, 127
    %v534 = vpop.permute.xlu0 %533
    %535 = vrot.lane.b32.xlu0 %v530, 127
    %v536 = vpop.permute.xlu0 %535
    %v539 = vadd.f32 %v487, %v534
    %v540 = vadd.f32 %v488, %v536
    %s541 = sld [smem:[#allocation6 + $0x3d]]
    %v542 = vstv %s541
    %v543 = vmul.f32 %v475, %v542
    %v544 = vmul.f32 %v476, %v542
    %547 = vrot.lane.b32.xlu0 %v543, 127
    %v548 = vpop.permute.xlu0 %547
    %549 = vrot.lane.b32.xlu0 %v544, 127
    %v550 = vpop.permute.xlu0 %549
    %v553 = vadd.f32 %v493, %v548
    %v554 = vadd.f32 %v494, %v550
    %s555 = sld [smem:[#allocation6 + $0x58]]
    %v556 = vstv %s555
    %v557 = vmul.f32 %v475, %v556
    %v558 = vmul.f32 %v476, %v556
    %561 = vrot.lane.b32.xlu0 %v557, 127
    %v562 = vpop.permute.xlu0 %561
    %563 = vrot.lane.b32.xlu0 %v558, 127
    %v564 = vpop.permute.xlu0 %563
    %v567 = vadd.f32 %v499, %v562
    %v568 = vadd.f32 %v500, %v564
    %s569 = sld [smem:[#allocation6 + $0x73]]
    %v570 = vstv %s569
    %v571 = vmul.f32 %v475, %v570
    %v572 = vmul.f32 %v476, %v570
    %575 = vrot.lane.b32.xlu0 %v571, 127
    %v576 = vpop.permute.xlu0 %575
    %577 = vrot.lane.b32.xlu0 %v572, 127
    %v578 = vpop.permute.xlu0 %577
    %v581 = vadd.f32 %v505, %v576
    %v582 = vadd.f32 %v506, %v578
    %s583 = sld [smem:[#allocation6 + $0x8e]]
    %v584 = vstv %s583
    %v585 = vmul.f32 %v475, %v584
    %v586 = vmul.f32 %v476, %v584
    %589 = vrot.lane.b32.xlu0 %v585, 127
    %v590 = vpop.permute.xlu0 %589
    %591 = vrot.lane.b32.xlu0 %v586, 127
    %v592 = vpop.permute.xlu0 %591
    %v595 = vadd.f32 %v511, %v590
    %v596 = vadd.f32 %v512, %v592
    %s597 = sld [smem:[#allocation6 + $0x8]]
    %v598 = vstv %s597
    %v599 = vmul.f32 %v475, %v598
    %v600 = vmul.f32 %v476, %v598
    %603 = vrot.lane.b32.xlu0 %v599, 126
    %v604 = vpop.permute.xlu0 %603
    %605 = vrot.lane.b32.xlu0 %v600, 126
    %v606 = vpop.permute.xlu0 %605
    %v609 = vadd.f32 %v525, %v604
    %v610 = vadd.f32 %v526, %v606
    %s611 = sld [smem:[#allocation6 + $0x23]]
    %v612 = vstv %s611
    %v613 = vmul.f32 %v475, %v612
    %v614 = vmul.f32 %v476, %v612
    %617 = vrot.lane.b32.xlu0 %v613, 126
    %v618 = vpop.permute.xlu0 %617
    %619 = vrot.lane.b32.xlu0 %v614, 126
    %v620 = vpop.permute.xlu0 %619
    %v623 = vadd.f32 %v539, %v618
    %v624 = vadd.f32 %v540, %v620
    %s625 = sld [smem:[#allocation6 + $0x3e]]
    %v626 = vstv %s625
    %v627 = vmul.f32 %v475, %v626
    %v628 = vmul.f32 %v476, %v626
    %631 = vrot.lane.b32.xlu0 %v627, 126
    %v632 = vpop.permute.xlu0 %631
    %633 = vrot.lane.b32.xlu0 %v628, 126
    %v634 = vpop.permute.xlu0 %633
    %v637 = vadd.f32 %v553, %v632
    %v638 = vadd.f32 %v554, %v634
    %s639 = sld [smem:[#allocation6 + $0x59]]
    %v640 = vstv %s639
    %v641 = vmul.f32 %v475, %v640
    %v642 = vmul.f32 %v476, %v640
    %645 = vrot.lane.b32.xlu0 %v641, 126
    %v646 = vpop.permute.xlu0 %645
    %647 = vrot.lane.b32.xlu0 %v642, 126
    %v648 = vpop.permute.xlu0 %647
    %v651 = vadd.f32 %v567, %v646
    %v652 = vadd.f32 %v568, %v648
    %s653 = sld [smem:[#allocation6 + $0x74]]
    %v654 = vstv %s653
    %v655 = vmul.f32 %v475, %v654
    %v656 = vmul.f32 %v476, %v654
    %659 = vrot.lane.b32.xlu0 %v655, 126
    %v660 = vpop.permute.xlu0 %659
    %661 = vrot.lane.b32.xlu0 %v656, 126
    %v662 = vpop.permute.xlu0 %661
    %v665 = vadd.f32 %v581, %v660
    %v666 = vadd.f32 %v582, %v662
    %s667 = sld [smem:[#allocation6 + $0x8f]]
    %v668 = vstv %s667
    %v669 = vmul.f32 %v475, %v668
    %v670 = vmul.f32 %v476, %v668
    %673 = vrot.lane.b32.xlu0 %v669, 126
    %v674 = vpop.permute.xlu0 %673
    %675 = vrot.lane.b32.xlu0 %v670, 126
    %v676 = vpop.permute.xlu0 %675
    %v679 = vadd.f32 %v595, %v674
    %v680 = vadd.f32 %v596, %v676
    %s681 = scalar_lea.vmem [#allocation2], 16
    %v682 = vld [vmem:[%s681] sm:$0xff]
    %v683 = vld [vmem:[%s681 + $0x8] sm:$0x3f]
    %s684 = sld [smem:[#allocation6 + $0x9]]
    %v685 = vstv %s684
    %v686 = vmul.f32 %v682, %v685
    %v687 = vmul.f32 %v683, %v685
    %v688 = vadd.f32 %v609, %v686
    %v689 = vadd.f32 %v610, %v687
    %s690 = sld [smem:[#allocation6 + $0x24]]
    %v691 = vstv %s690
    %v692 = vmul.f32 %v682, %v691
    %v693 = vmul.f32 %v683, %v691
    %v694 = vadd.f32 %v623, %v692
    %v695 = vadd.f32 %v624, %v693
    %s696 = sld [smem:[#allocation6 + $0x3f]]
    %v697 = vstv %s696
    %v698 = vmul.f32 %v682, %v697
    %v699 = vmul.f32 %v683, %v697
    %v700 = vadd.f32 %v637, %v698
    %v701 = vadd.f32 %v638, %v699
    %s702 = sld [smem:[#allocation6 + $0x5a]]
    %v703 = vstv %s702
    %v704 = vmul.f32 %v682, %v703
    %v705 = vmul.f32 %v683, %v703
    %v706 = vadd.f32 %v651, %v704
    %v707 = vadd.f32 %v652, %v705
    %s708 = sld [smem:[#allocation6 + $0x75]]
    %v709 = vstv %s708
    %v710 = vmul.f32 %v682, %v709
    %v711 = vmul.f32 %v683, %v709
    %v712 = vadd.f32 %v665, %v710
    %v713 = vadd.f32 %v666, %v711
    %s714 = sld [smem:[#allocation6 + $0x90]]
    %v715 = vstv %s714
    %v716 = vmul.f32 %v682, %v715
    %v717 = vmul.f32 %v683, %v715
    %v718 = vadd.f32 %v679, %v716
    %v719 = vadd.f32 %v680, %v717
    %s720 = sld [smem:[#allocation6 + $0xa]]
    %v721 = vstv %s720
    %v722 = vmul.f32 %v682, %v721
    %v723 = vmul.f32 %v683, %v721
    %726 = vrot.lane.b32.xlu0 %v722, 127
    %v727 = vpop.permute.xlu0 %726
    %728 = vrot.lane.b32.xlu0 %v723, 127
    %v729 = vpop.permute.xlu0 %728
    %v732 = vadd.f32 %v688, %v727
    %v733 = vadd.f32 %v689, %v729
    %s734 = sld [smem:[#allocation6 + $0x25]]
    %v735 = vstv %s734
    %v736 = vmul.f32 %v682, %v735
    %v737 = vmul.f32 %v683, %v735
    %740 = vrot.lane.b32.xlu0 %v736, 127
    %v741 = vpop.permute.xlu0 %740
    %742 = vrot.lane.b32.xlu0 %v737, 127
    %v743 = vpop.permute.xlu0 %742
    %v746 = vadd.f32 %v694, %v741
    %v747 = vadd.f32 %v695, %v743
    %s748 = sld [smem:[#allocation6 + $0x40]]
    %v749 = vstv %s748
    %v750 = vmul.f32 %v682, %v749
    %v751 = vmul.f32 %v683, %v749
    %754 = vrot.lane.b32.xlu0 %v750, 127
    %v755 = vpop.permute.xlu0 %754
    %756 = vrot.lane.b32.xlu0 %v751, 127
    %v757 = vpop.permute.xlu0 %756
    %v760 = vadd.f32 %v700, %v755
    %v761 = vadd.f32 %v701, %v757
    %s762 = sld [smem:[#allocation6 + $0x5b]]
    %v763 = vstv %s762
    %v764 = vmul.f32 %v682, %v763
    %v765 = vmul.f32 %v683, %v763
    %768 = vrot.lane.b32.xlu0 %v764, 127
    %v769 = vpop.permute.xlu0 %768
    %770 = vrot.lane.b32.xlu0 %v765, 127
    %v771 = vpop.permute.xlu0 %770
    %v774 = vadd.f32 %v706, %v769
    %v775 = vadd.f32 %v707, %v771
    %s776 = sld [smem:[#allocation6 + $0x76]]
    %v777 = vstv %s776
    %v778 = vmul.f32 %v682, %v777
    %v779 = vmul.f32 %v683, %v777
    %782 = vrot.lane.b32.xlu0 %v778, 127
    %v783 = vpop.permute.xlu0 %782
    %784 = vrot.lane.b32.xlu0 %v779, 127
    %v785 = vpop.permute.xlu0 %784
    %v788 = vadd.f32 %v712, %v783
    %v789 = vadd.f32 %v713, %v785
    %s790 = sld [smem:[#allocation6 + $0x91]]
    %v791 = vstv %s790
    %v792 = vmul.f32 %v682, %v791
    %v793 = vmul.f32 %v683, %v791
    %796 = vrot.lane.b32.xlu0 %v792, 127
    %v797 = vpop.permute.xlu0 %796
    %798 = vrot.lane.b32.xlu0 %v793, 127
    %v799 = vpop.permute.xlu0 %798
    %v802 = vadd.f32 %v718, %v797
    %v803 = vadd.f32 %v719, %v799
    %s804 = sld [smem:[#allocation6 + $0xb]]
    %v805 = vstv %s804
    %v806 = vmul.f32 %v682, %v805
    %v807 = vmul.f32 %v683, %v805
    %810 = vrot.lane.b32.xlu0 %v806, 126
    %v811 = vpop.permute.xlu0 %810
    %812 = vrot.lane.b32.xlu0 %v807, 126
    %v813 = vpop.permute.xlu0 %812
    %v816 = vadd.f32 %v732, %v811
    %v817 = vadd.f32 %v733, %v813
    %s818 = sld [smem:[#allocation6 + $0x26]]
    %v819 = vstv %s818
    %v820 = vmul.f32 %v682, %v819
    %v821 = vmul.f32 %v683, %v819
    %824 = vrot.lane.b32.xlu0 %v820, 126
    %v825 = vpop.permute.xlu0 %824
    %826 = vrot.lane.b32.xlu0 %v821, 126
    %v827 = vpop.permute.xlu0 %826
    %v830 = vadd.f32 %v746, %v825
    %v831 = vadd.f32 %v747, %v827
    %s832 = sld [smem:[#allocation6 + $0x41]]
    %v833 = vstv %s832
    %v834 = vmul.f32 %v682, %v833
    %v835 = vmul.f32 %v683, %v833
    %838 = vrot.lane.b32.xlu0 %v834, 126
    %v839 = vpop.permute.xlu0 %838
    %840 = vrot.lane.b32.xlu0 %v835, 126
    %v841 = vpop.permute.xlu0 %840
    %v844 = vadd.f32 %v760, %v839
    %v845 = vadd.f32 %v761, %v841
    %s846 = sld [smem:[#allocation6 + $0x5c]]
    %v847 = vstv %s846
    %v848 = vmul.f32 %v682, %v847
    %v849 = vmul.f32 %v683, %v847
    %852 = vrot.lane.b32.xlu0 %v848, 126
    %v853 = vpop.permute.xlu0 %852
    %854 = vrot.lane.b32.xlu0 %v849, 126
    %v855 = vpop.permute.xlu0 %854
    %v858 = vadd.f32 %v774, %v853
    %v859 = vadd.f32 %v775, %v855
    %s860 = sld [smem:[#allocation6 + $0x77]]
    %v861 = vstv %s860
    %v862 = vmul.f32 %v682, %v861
    %v863 = vmul.f32 %v683, %v861
    %866 = vrot.lane.b32.xlu0 %v862, 126
    %v867 = vpop.permute.xlu0 %866
    %868 = vrot.lane.b32.xlu0 %v863, 126
    %v869 = vpop.permute.xlu0 %868
    %v872 = vadd.f32 %v788, %v867
    %v873 = vadd.f32 %v789, %v869
    %s874 = sld [smem:[#allocation6 + $0x92]]
    %v875 = vstv %s874
    %v876 = vmul.f32 %v682, %v875
    %v877 = vmul.f32 %v683, %v875
    %880 = vrot.lane.b32.xlu0 %v876, 126
    %v881 = vpop.permute.xlu0 %880
    %882 = vrot.lane.b32.xlu0 %v877, 126
    %v883 = vpop.permute.xlu0 %882
    %v886 = vadd.f32 %v802, %v881
    %v887 = vadd.f32 %v803, %v883
    %v888 = vld [vmem:[%s681 + $0x1] sm:$0xff]
    %v889 = vld [vmem:[%s681 + $0x9] sm:$0x3f]
    %s890 = sld [smem:[#allocation6 + $0xc]]
    %v891 = vstv %s890
    %v892 = vmul.f32 %v888, %v891
    %v893 = vmul.f32 %v889, %v891
    %v894 = vadd.f32 %v816, %v892
    %v895 = vadd.f32 %v817, %v893
    %s896 = sld [smem:[#allocation6 + $0x27]]
    %v897 = vstv %s896
    %v898 = vmul.f32 %v888, %v897
    %v899 = vmul.f32 %v889, %v897
    %v900 = vadd.f32 %v830, %v898
    %v901 = vadd.f32 %v831, %v899
    %s902 = sld [smem:[#allocation6 + $0x42]]
    %v903 = vstv %s902
    %v904 = vmul.f32 %v888, %v903
    %v905 = vmul.f32 %v889, %v903
    %v906 = vadd.f32 %v844, %v904
    %v907 = vadd.f32 %v845, %v905
    %s908 = sld [smem:[#allocation6 + $0x5d]]
    %v909 = vstv %s908
    %v910 = vmul.f32 %v888, %v909
    %v911 = vmul.f32 %v889, %v909
    %v912 = vadd.f32 %v858, %v910
    %v913 = vadd.f32 %v859, %v911
    %s914 = sld [smem:[#allocation6 + $0x78]]
    %v915 = vstv %s914
    %v916 = vmul.f32 %v888, %v915
    %v917 = vmul.f32 %v889, %v915
    %v918 = vadd.f32 %v872, %v916
    %v919 = vadd.f32 %v873, %v917
    %s920 = sld [smem:[#allocation6 + $0x93]]
    %v921 = vstv %s920
    %v922 = vmul.f32 %v888, %v921
    %v923 = vmul.f32 %v889, %v921
    %v924 = vadd.f32 %v886, %v922
    %v925 = vadd.f32 %v887, %v923
    %s926 = sld [smem:[#allocation6 + $0xd]]
    %v927 = vstv %s926
    %v928 = vmul.f32 %v888, %v927
    %v929 = vmul.f32 %v889, %v927
    %932 = vrot.lane.b32.xlu0 %v928, 127
    %v933 = vpop.permute.xlu0 %932
    %934 = vrot.lane.b32.xlu0 %v929, 127
    %v935 = vpop.permute.xlu0 %934
    %v938 = vadd.f32 %v894, %v933
    %v939 = vadd.f32 %v895, %v935
    %s940 = sld [smem:[#allocation6 + $0x28]]
    %v941 = vstv %s940
    %v942 = vmul.f32 %v888, %v941
    %v943 = vmul.f32 %v889, %v941
    %946 = vrot.lane.b32.xlu0 %v942, 127
    %v947 = vpop.permute.xlu0 %946
    %948 = vrot.lane.b32.xlu0 %v943, 127
    %v949 = vpop.permute.xlu0 %948
    %v952 = vadd.f32 %v900, %v947
    %v953 = vadd.f32 %v901, %v949
    %s954 = sld [smem:[#allocation6 + $0x43]]
    %v955 = vstv %s954
    %v956 = vmul.f32 %v888, %v955
    %v957 = vmul.f32 %v889, %v955
    %960 = vrot.lane.b32.xlu0 %v956, 127
    %v961 = vpop.permute.xlu0 %960
    %962 = vrot.lane.b32.xlu0 %v957, 127
    %v963 = vpop.permute.xlu0 %962
    %v966 = vadd.f32 %v906, %v961
    %v967 = vadd.f32 %v907, %v963
    %s968 = sld [smem:[#allocation6 + $0x5e]]
    %v969 = vstv %s968
    %v970 = vmul.f32 %v888, %v969
    %v971 = vmul.f32 %v889, %v969
    %974 = vrot.lane.b32.xlu0 %v970, 127
    %v975 = vpop.permute.xlu0 %974
    %976 = vrot.lane.b32.xlu0 %v971, 127
    %v977 = vpop.permute.xlu0 %976
    %v980 = vadd.f32 %v912, %v975
    %v981 = vadd.f32 %v913, %v977
    %s982 = sld [smem:[#allocation6 + $0x79]]
    %v983 = vstv %s982
    %v984 = vmul.f32 %v888, %v983
    %v985 = vmul.f32 %v889, %v983
    %988 = vrot.lane.b32.xlu0 %v984, 127
    %v989 = vpop.permute.xlu0 %988
    %990 = vrot.lane.b32.xlu0 %v985, 127
    %v991 = vpop.permute.xlu0 %990
    %v994 = vadd.f32 %v918, %v989
    %v995 = vadd.f32 %v919, %v991
    %s996 = sld [smem:[#allocation6 + $0x94]]
    %v997 = vstv %s996
    %v998 = vmul.f32 %v888, %v997
    %v999 = vmul.f32 %v889, %v997
    %1002 = vrot.lane.b32.xlu0 %v998, 127
    %v1003 = vpop.permute.xlu0 %1002
    %1004 = vrot.lane.b32.xlu0 %v999, 127
    %v1005 = vpop.permute.xlu0 %1004
    %v1008 = vadd.f32 %v924, %v1003
    %v1009 = vadd.f32 %v925, %v1005
    %s1010 = sld [smem:[#allocation6 + $0xe]]
    %v1011 = vstv %s1010
    %v1012 = vmul.f32 %v888, %v1011
    %v1013 = vmul.f32 %v889, %v1011
    %1016 = vrot.lane.b32.xlu0 %v1012, 126
    %v1017 = vpop.permute.xlu0 %1016
    %1018 = vrot.lane.b32.xlu0 %v1013, 126
    %v1019 = vpop.permute.xlu0 %1018
    %v1022 = vadd.f32 %v938, %v1017
    %v1023 = vadd.f32 %v939, %v1019
    %s1024 = sld [smem:[#allocation6 + $0x29]]
    %v1025 = vstv %s1024
    %v1026 = vmul.f32 %v888, %v1025
    %v1027 = vmul.f32 %v889, %v1025
    %1030 = vrot.lane.b32.xlu0 %v1026, 126
    %v1031 = vpop.permute.xlu0 %1030
    %1032 = vrot.lane.b32.xlu0 %v1027, 126
    %v1033 = vpop.permute.xlu0 %1032
    %v1036 = vadd.f32 %v952, %v1031
    %v1037 = vadd.f32 %v953, %v1033
    %s1038 = sld [smem:[#allocation6 + $0x44]]
    %v1039 = vstv %s1038
    %v1040 = vmul.f32 %v888, %v1039
    %v1041 = vmul.f32 %v889, %v1039
    %1044 = vrot.lane.b32.xlu0 %v1040, 126
    %v1045 = vpop.permute.xlu0 %1044
    %1046 = vrot.lane.b32.xlu0 %v1041, 126
    %v1047 = vpop.permute.xlu0 %1046
    %v1050 = vadd.f32 %v966, %v1045
    %v1051 = vadd.f32 %v967, %v1047
    %s1052 = sld [smem:[#allocation6 + $0x5f]]
    %v1053 = vstv %s1052
    %v1054 = vmul.f32 %v888, %v1053
    %v1055 = vmul.f32 %v889, %v1053
    %1058 = vrot.lane.b32.xlu0 %v1054, 126
    %v1059 = vpop.permute.xlu0 %1058
    %1060 = vrot.lane.b32.xlu0 %v1055, 126
    %v1061 = vpop.permute.xlu0 %1060
    %v1064 = vadd.f32 %v980, %v1059
    %v1065 = vadd.f32 %v981, %v1061
    %s1066 = sld [smem:[#allocation6 + $0x7a]]
    %v1067 = vstv %s1066
    %v1068 = vmul.f32 %v888, %v1067
    %v1069 = vmul.f32 %v889, %v1067
    %1072 = vrot.lane.b32.xlu0 %v1068, 126
    %v1073 = vpop.permute.xlu0 %1072
    %1074 = vrot.lane.b32.xlu0 %v1069, 126
    %v1075 = vpop.permute.xlu0 %1074
    %v1078 = vadd.f32 %v994, %v1073
    %v1079 = vadd.f32 %v995, %v1075
    %s1080 = sld [smem:[#allocation6 + $0x95]]
    %v1081 = vstv %s1080
    %v1082 = vmul.f32 %v888, %v1081
    %v1083 = vmul.f32 %v889, %v1081
    %1086 = vrot.lane.b32.xlu0 %v1082, 126
    %v1087 = vpop.permute.xlu0 %1086
    %1088 = vrot.lane.b32.xlu0 %v1083, 126
    %v1089 = vpop.permute.xlu0 %1088
    %v1092 = vadd.f32 %v1008, %v1087
    %v1093 = vadd.f32 %v1009, %v1089
    %v1094 = vld [vmem:[%s681 + $0x2] sm:$0xff]
    %v1095 = vld [vmem:[%s681 + $0xa] sm:$0x3f]
    %s1096 = sld [smem:[#allocation6 + $0xf]]
    %v1097 = vstv %s1096
    %v1098 = vmul.f32 %v1094, %v1097
    %v1099 = vmul.f32 %v1095, %v1097
    %v1100 = vadd.f32 %v1022, %v1098
    %v1101 = vadd.f32 %v1023, %v1099
    %s1102 = sld [smem:[#allocation6 + $0x2a]]
    %v1103 = vstv %s1102
    %v1104 = vmul.f32 %v1094, %v1103
    %v1105 = vmul.f32 %v1095, %v1103
    %v1106 = vadd.f32 %v1036, %v1104
    %v1107 = vadd.f32 %v1037, %v1105
    %s1108 = sld [smem:[#allocation6 + $0x45]]
    %v1109 = vstv %s1108
    %v1110 = vmul.f32 %v1094, %v1109
    %v1111 = vmul.f32 %v1095, %v1109
    %v1112 = vadd.f32 %v1050, %v1110
    %v1113 = vadd.f32 %v1051, %v1111
    %s1114 = sld [smem:[#allocation6 + $0x60]]
    %v1115 = vstv %s1114
    %v1116 = vmul.f32 %v1094, %v1115
    %v1117 = vmul.f32 %v1095, %v1115
    %v1118 = vadd.f32 %v1064, %v1116
    %v1119 = vadd.f32 %v1065, %v1117
    %s1120 = sld [smem:[#allocation6 + $0x7b]]
    %v1121 = vstv %s1120
    %v1122 = vmul.f32 %v1094, %v1121
    %v1123 = vmul.f32 %v1095, %v1121
    %v1124 = vadd.f32 %v1078, %v1122
    %v1125 = vadd.f32 %v1079, %v1123
    %s1126 = sld [smem:[#allocation6 + $0x96]]
    %v1127 = vstv %s1126
    %v1128 = vmul.f32 %v1094, %v1127
    %v1129 = vmul.f32 %v1095, %v1127
    %v1130 = vadd.f32 %v1092, %v1128
    %v1131 = vadd.f32 %v1093, %v1129
    %s1132 = sld [smem:[#allocation6 + $0x10]]
    %v1133 = vstv %s1132
    %v1134 = vmul.f32 %v1094, %v1133
    %v1135 = vmul.f32 %v1095, %v1133
    %1138 = vrot.lane.b32.xlu0 %v1134, 127
    %v1139 = vpop.permute.xlu0 %1138
    %1140 = vrot.lane.b32.xlu0 %v1135, 127
    %v1141 = vpop.permute.xlu0 %1140
    %v1144 = vadd.f32 %v1100, %v1139
    %v1145 = vadd.f32 %v1101, %v1141
    %s1146 = sld [smem:[#allocation6 + $0x2b]]
    %v1147 = vstv %s1146
    %v1148 = vmul.f32 %v1094, %v1147
    %v1149 = vmul.f32 %v1095, %v1147
    %1152 = vrot.lane.b32.xlu0 %v1148, 127
    %v1153 = vpop.permute.xlu0 %1152
    %1154 = vrot.lane.b32.xlu0 %v1149, 127
    %v1155 = vpop.permute.xlu0 %1154
    %v1158 = vadd.f32 %v1106, %v1153
    %v1159 = vadd.f32 %v1107, %v1155
    %s1160 = sld [smem:[#allocation6 + $0x46]]
    %v1161 = vstv %s1160
    %v1162 = vmul.f32 %v1094, %v1161
    %v1163 = vmul.f32 %v1095, %v1161
    %1166 = vrot.lane.b32.xlu0 %v1162, 127
    %v1167 = vpop.permute.xlu0 %1166
    %1168 = vrot.lane.b32.xlu0 %v1163, 127
    %v1169 = vpop.permute.xlu0 %1168
    %v1172 = vadd.f32 %v1112, %v1167
    %v1173 = vadd.f32 %v1113, %v1169
    %s1174 = sld [smem:[#allocation6 + $0x61]]
    %v1175 = vstv %s1174
    %v1176 = vmul.f32 %v1094, %v1175
    %v1177 = vmul.f32 %v1095, %v1175
    %1180 = vrot.lane.b32.xlu0 %v1176, 127
    %v1181 = vpop.permute.xlu0 %1180
    %1182 = vrot.lane.b32.xlu0 %v1177, 127
    %v1183 = vpop.permute.xlu0 %1182
    %v1186 = vadd.f32 %v1118, %v1181
    %v1187 = vadd.f32 %v1119, %v1183
    %s1188 = sld [smem:[#allocation6 + $0x7c]]
    %v1189 = vstv %s1188
    %v1190 = vmul.f32 %v1094, %v1189
    %v1191 = vmul.f32 %v1095, %v1189
    %1194 = vrot.lane.b32.xlu0 %v1190, 127
    %v1195 = vpop.permute.xlu0 %1194
    %1196 = vrot.lane.b32.xlu0 %v1191, 127
    %v1197 = vpop.permute.xlu0 %1196
    %v1200 = vadd.f32 %v1124, %v1195
    %v1201 = vadd.f32 %v1125, %v1197
    %s1202 = sld [smem:[#allocation6 + $0x97]]
    %v1203 = vstv %s1202
    %v1204 = vmul.f32 %v1094, %v1203
    %v1205 = vmul.f32 %v1095, %v1203
    %1208 = vrot.lane.b32.xlu0 %v1204, 127
    %v1209 = vpop.permute.xlu0 %1208
    %1210 = vrot.lane.b32.xlu0 %v1205, 127
    %v1211 = vpop.permute.xlu0 %1210
    %v1214 = vadd.f32 %v1130, %v1209
    %v1215 = vadd.f32 %v1131, %v1211
    %s1216 = sld [smem:[#allocation6 + $0x11]]
    %v1217 = vstv %s1216
    %v1218 = vmul.f32 %v1094, %v1217
    %v1219 = vmul.f32 %v1095, %v1217
    %1222 = vrot.lane.b32.xlu0 %v1218, 126
    %v1223 = vpop.permute.xlu0 %1222
    %1224 = vrot.lane.b32.xlu0 %v1219, 126
    %v1225 = vpop.permute.xlu0 %1224
    %v1228 = vadd.f32 %v1144, %v1223
    %v1229 = vadd.f32 %v1145, %v1225
    %s1230 = sld [smem:[#allocation6 + $0x2c]]
    %v1231 = vstv %s1230
    %v1232 = vmul.f32 %v1094, %v1231
    %v1233 = vmul.f32 %v1095, %v1231
    %1236 = vrot.lane.b32.xlu0 %v1232, 126
    %v1237 = vpop.permute.xlu0 %1236
    %1238 = vrot.lane.b32.xlu0 %v1233, 126
    %v1239 = vpop.permute.xlu0 %1238
    %v1242 = vadd.f32 %v1158, %v1237
    %v1243 = vadd.f32 %v1159, %v1239
    %s1244 = sld [smem:[#allocation6 + $0x47]]
    %v1245 = vstv %s1244
    %v1246 = vmul.f32 %v1094, %v1245
    %v1247 = vmul.f32 %v1095, %v1245
    %1250 = vrot.lane.b32.xlu0 %v1246, 126
    %v1251 = vpop.permute.xlu0 %1250
    %1252 = vrot.lane.b32.xlu0 %v1247, 126
    %v1253 = vpop.permute.xlu0 %1252
    %v1256 = vadd.f32 %v1172, %v1251
    %v1257 = vadd.f32 %v1173, %v1253
    %s1258 = sld [smem:[#allocation6 + $0x62]]
    %v1259 = vstv %s1258
    %v1260 = vmul.f32 %v1094, %v1259
    %v1261 = vmul.f32 %v1095, %v1259
    %1264 = vrot.lane.b32.xlu0 %v1260, 126
    %v1265 = vpop.permute.xlu0 %1264
    %1266 = vrot.lane.b32.xlu0 %v1261, 126
    %v1267 = vpop.permute.xlu0 %1266
    %v1270 = vadd.f32 %v1186, %v1265
    %v1271 = vadd.f32 %v1187, %v1267
    %s1272 = sld [smem:[#allocation6 + $0x7d]]
    %v1273 = vstv %s1272
    %v1274 = vmul.f32 %v1094, %v1273
    %v1275 = vmul.f32 %v1095, %v1273
    %1278 = vrot.lane.b32.xlu0 %v1274, 126
    %v1279 = vpop.permute.xlu0 %1278
    %1280 = vrot.lane.b32.xlu0 %v1275, 126
    %v1281 = vpop.permute.xlu0 %1280
    %v1284 = vadd.f32 %v1200, %v1279
    %v1285 = vadd.f32 %v1201, %v1281
    %s1286 = sld [smem:[#allocation6 + $0x98]]
    %v1287 = vstv %s1286
    %v1288 = vmul.f32 %v1094, %v1287
    %v1289 = vmul.f32 %v1095, %v1287
    %1292 = vrot.lane.b32.xlu0 %v1288, 126
    %v1293 = vpop.permute.xlu0 %1292
    %1294 = vrot.lane.b32.xlu0 %v1289, 126
    %v1295 = vpop.permute.xlu0 %1294
    %v1298 = vadd.f32 %v1214, %v1293
    %v1299 = vadd.f32 %v1215, %v1295
    %s1300 = scalar_lea.vmem [#allocation2], 32
    %v1301 = vld [vmem:[%s1300] sm:$0xff]
    %v1302 = vld [vmem:[%s1300 + $0x8] sm:$0x3f]
    %s1303 = sld [smem:[#allocation6 + $0x12]]
    %v1304 = vstv %s1303
    %v1305 = vmul.f32 %v1301, %v1304
    %v1306 = vmul.f32 %v1302, %v1304
    %v1307 = vadd.f32 %v1228, %v1305
    %v1308 = vadd.f32 %v1229, %v1306
    %s1309 = sld [smem:[#allocation6 + $0x2d]]
    %v1310 = vstv %s1309
    %v1311 = vmul.f32 %v1301, %v1310
    %v1312 = vmul.f32 %v1302, %v1310
    %v1313 = vadd.f32 %v1242, %v1311
    %v1314 = vadd.f32 %v1243, %v1312
    %s1315 = sld [smem:[#allocation6 + $0x48]]
    %v1316 = vstv %s1315
    %v1317 = vmul.f32 %v1301, %v1316
    %v1318 = vmul.f32 %v1302, %v1316
    %v1319 = vadd.f32 %v1256, %v1317
    %v1320 = vadd.f32 %v1257, %v1318
    %s1321 = sld [smem:[#allocation6 + $0x63]]
    %v1322 = vstv %s1321
    %v1323 = vmul.f32 %v1301, %v1322
    %v1324 = vmul.f32 %v1302, %v1322
    %v1325 = vadd.f32 %v1270, %v1323
    %v1326 = vadd.f32 %v1271, %v1324
    %s1327 = sld [smem:[#allocation6 + $0x7e]]
    %v1328 = vstv %s1327
    %v1329 = vmul.f32 %v1301, %v1328
    %v1330 = vmul.f32 %v1302, %v1328
    %v1331 = vadd.f32 %v1284, %v1329
    %v1332 = vadd.f32 %v1285, %v1330
    %s1333 = sld [smem:[#allocation6 + $0x99]]
    %v1334 = vstv %s1333
    %v1335 = vmul.f32 %v1301, %v1334
    %v1336 = vmul.f32 %v1302, %v1334
    %v1337 = vadd.f32 %v1298, %v1335
    %v1338 = vadd.f32 %v1299, %v1336
    %s1339 = sld [smem:[#allocation6 + $0x13]]
    %v1340 = vstv %s1339
    %v1341 = vmul.f32 %v1301, %v1340
    %v1342 = vmul.f32 %v1302, %v1340
    %1345 = vrot.lane.b32.xlu0 %v1341, 127
    %v1346 = vpop.permute.xlu0 %1345
    %1347 = vrot.lane.b32.xlu0 %v1342, 127
    %v1348 = vpop.permute.xlu0 %1347
    %v1351 = vadd.f32 %v1307, %v1346
    %v1352 = vadd.f32 %v1308, %v1348
    %s1353 = sld [smem:[#allocation6 + $0x2e]]
    %v1354 = vstv %s1353
    %v1355 = vmul.f32 %v1301, %v1354
    %v1356 = vmul.f32 %v1302, %v1354
    %1359 = vrot.lane.b32.xlu0 %v1355, 127
    %v1360 = vpop.permute.xlu0 %1359
    %1361 = vrot.lane.b32.xlu0 %v1356, 127
    %v1362 = vpop.permute.xlu0 %1361
    %v1365 = vadd.f32 %v1313, %v1360
    %v1366 = vadd.f32 %v1314, %v1362
    %s1367 = sld [smem:[#allocation6 + $0x49]]
    %v1368 = vstv %s1367
    %v1369 = vmul.f32 %v1301, %v1368
    %v1370 = vmul.f32 %v1302, %v1368
    %1373 = vrot.lane.b32.xlu0 %v1369, 127
    %v1374 = vpop.permute.xlu0 %1373
    %1375 = vrot.lane.b32.xlu0 %v1370, 127
    %v1376 = vpop.permute.xlu0 %1375
    %v1379 = vadd.f32 %v1319, %v1374
    %v1380 = vadd.f32 %v1320, %v1376
    %s1381 = sld [smem:[#allocation6 + $0x64]]
    %v1382 = vstv %s1381
    %v1383 = vmul.f32 %v1301, %v1382
    %v1384 = vmul.f32 %v1302, %v1382
    %1387 = vrot.lane.b32.xlu0 %v1383, 127
    %v1388 = vpop.permute.xlu0 %1387
    %1389 = vrot.lane.b32.xlu0 %v1384, 127
    %v1390 = vpop.permute.xlu0 %1389
    %v1393 = vadd.f32 %v1325, %v1388
    %v1394 = vadd.f32 %v1326, %v1390
    %s1395 = sld [smem:[#allocation6 + $0x7f]]
    %v1396 = vstv %s1395
    %v1397 = vmul.f32 %v1301, %v1396
    %v1398 = vmul.f32 %v1302, %v1396
    %1401 = vrot.lane.b32.xlu0 %v1397, 127
    %v1402 = vpop.permute.xlu0 %1401
    %1403 = vrot.lane.b32.xlu0 %v1398, 127
    %v1404 = vpop.permute.xlu0 %1403
    %v1407 = vadd.f32 %v1331, %v1402
    %v1408 = vadd.f32 %v1332, %v1404
    %s1409 = sld [smem:[#allocation6 + $0x9a]]
    %v1410 = vstv %s1409
    %v1411 = vmul.f32 %v1301, %v1410
    %v1412 = vmul.f32 %v1302, %v1410
    %1415 = vrot.lane.b32.xlu0 %v1411, 127
    %v1416 = vpop.permute.xlu0 %1415
    %1417 = vrot.lane.b32.xlu0 %v1412, 127
    %v1418 = vpop.permute.xlu0 %1417
    %v1421 = vadd.f32 %v1337, %v1416
    %v1422 = vadd.f32 %v1338, %v1418
    %s1423 = sld [smem:[#allocation6 + $0x14]]
    %v1424 = vstv %s1423
    %v1425 = vmul.f32 %v1301, %v1424
    %v1426 = vmul.f32 %v1302, %v1424
    %1429 = vrot.lane.b32.xlu0 %v1425, 126
    %v1430 = vpop.permute.xlu0 %1429
    %1431 = vrot.lane.b32.xlu0 %v1426, 126
    %v1432 = vpop.permute.xlu0 %1431
    %v1435 = vadd.f32 %v1351, %v1430
    %v1436 = vadd.f32 %v1352, %v1432
    %s1437 = sld [smem:[#allocation6 + $0x2f]]
    %v1438 = vstv %s1437
    %v1439 = vmul.f32 %v1301, %v1438
    %v1440 = vmul.f32 %v1302, %v1438
    %1443 = vrot.lane.b32.xlu0 %v1439, 126
    %v1444 = vpop.permute.xlu0 %1443
    %1445 = vrot.lane.b32.xlu0 %v1440, 126
    %v1446 = vpop.permute.xlu0 %1445
    %v1449 = vadd.f32 %v1365, %v1444
    %v1450 = vadd.f32 %v1366, %v1446
    %s1451 = sld [smem:[#allocation6 + $0x4a]]
    %v1452 = vstv %s1451
    %v1453 = vmul.f32 %v1301, %v1452
    %v1454 = vmul.f32 %v1302, %v1452
    %1457 = vrot.lane.b32.xlu0 %v1453, 126
    %v1458 = vpop.permute.xlu0 %1457
    %1459 = vrot.lane.b32.xlu0 %v1454, 126
    %v1460 = vpop.permute.xlu0 %1459
    %v1463 = vadd.f32 %v1379, %v1458
    %v1464 = vadd.f32 %v1380, %v1460
    %s1465 = sld [smem:[#allocation6 + $0x65]]
    %v1466 = vstv %s1465
    %v1467 = vmul.f32 %v1301, %v1466
    %v1468 = vmul.f32 %v1302, %v1466
    %1471 = vrot.lane.b32.xlu0 %v1467, 126
    %v1472 = vpop.permute.xlu0 %1471
    %1473 = vrot.lane.b32.xlu0 %v1468, 126
    %v1474 = vpop.permute.xlu0 %1473
    %v1477 = vadd.f32 %v1393, %v1472
    %v1478 = vadd.f32 %v1394, %v1474
    %s1479 = sld [smem:[#allocation6 + $0x80]]
    %v1480 = vstv %s1479
    %v1481 = vmul.f32 %v1301, %v1480
    %v1482 = vmul.f32 %v1302, %v1480
    %1485 = vrot.lane.b32.xlu0 %v1481, 126
    %v1486 = vpop.permute.xlu0 %1485
    %1487 = vrot.lane.b32.xlu0 %v1482, 126
    %v1488 = vpop.permute.xlu0 %1487
    %v1491 = vadd.f32 %v1407, %v1486
    %v1492 = vadd.f32 %v1408, %v1488
    %s1493 = sld [smem:[#allocation6 + $0x9b]]
    %v1494 = vstv %s1493
    %v1495 = vmul.f32 %v1301, %v1494
    %v1496 = vmul.f32 %v1302, %v1494
    %1499 = vrot.lane.b32.xlu0 %v1495, 126
    %v1500 = vpop.permute.xlu0 %1499
    %1501 = vrot.lane.b32.xlu0 %v1496, 126
    %v1502 = vpop.permute.xlu0 %1501
    %v1505 = vadd.f32 %v1421, %v1500
    %v1506 = vadd.f32 %v1422, %v1502
    %v1507 = vld [vmem:[%s1300 + $0x1] sm:$0xff]
    %v1508 = vld [vmem:[%s1300 + $0x9] sm:$0x3f]
    %s1509 = sld [smem:[#allocation6 + $0x15]]
    %v1510 = vstv %s1509
    %v1511 = vmul.f32 %v1507, %v1510
    %v1512 = vmul.f32 %v1508, %v1510
    %v1513 = vadd.f32 %v1435, %v1511
    %v1514 = vadd.f32 %v1436, %v1512
    %s1515 = sld [smem:[#allocation6 + $0x30]]
    %v1516 = vstv %s1515
    %v1517 = vmul.f32 %v1507, %v1516
    %v1518 = vmul.f32 %v1508, %v1516
    %v1519 = vadd.f32 %v1449, %v1517
    %v1520 = vadd.f32 %v1450, %v1518
    %s1521 = sld [smem:[#allocation6 + $0x4b]]
    %v1522 = vstv %s1521
    %v1523 = vmul.f32 %v1507, %v1522
    %v1524 = vmul.f32 %v1508, %v1522
    %v1525 = vadd.f32 %v1463, %v1523
    %v1526 = vadd.f32 %v1464, %v1524
    %s1527 = sld [smem:[#allocation6 + $0x66]]
    %v1528 = vstv %s1527
    %v1529 = vmul.f32 %v1507, %v1528
    %v1530 = vmul.f32 %v1508, %v1528
    %v1531 = vadd.f32 %v1477, %v1529
    %v1532 = vadd.f32 %v1478, %v1530
    %s1533 = sld [smem:[#allocation6 + $0x81]]
    %v1534 = vstv %s1533
    %v1535 = vmul.f32 %v1507, %v1534
    %v1536 = vmul.f32 %v1508, %v1534
    %v1537 = vadd.f32 %v1491, %v1535
    %v1538 = vadd.f32 %v1492, %v1536
    %s1539 = sld [smem:[#allocation6 + $0x9c]]
    %v1540 = vstv %s1539
    %v1541 = vmul.f32 %v1507, %v1540
    %v1542 = vmul.f32 %v1508, %v1540
    %v1543 = vadd.f32 %v1505, %v1541
    %v1544 = vadd.f32 %v1506, %v1542
    %s1545 = sld [smem:[#allocation6 + $0x16]]
    %v1546 = vstv %s1545
    %v1547 = vmul.f32 %v1507, %v1546
    %v1548 = vmul.f32 %v1508, %v1546
    %1551 = vrot.lane.b32.xlu0 %v1547, 127
    %v1552 = vpop.permute.xlu0 %1551
    %1553 = vrot.lane.b32.xlu0 %v1548, 127
    %v1554 = vpop.permute.xlu0 %1553
    %v1557 = vadd.f32 %v1513, %v1552
    %v1558 = vadd.f32 %v1514, %v1554
    %s1559 = sld [smem:[#allocation6 + $0x31]]
    %v1560 = vstv %s1559
    %v1561 = vmul.f32 %v1507, %v1560
    %v1562 = vmul.f32 %v1508, %v1560
    %1565 = vrot.lane.b32.xlu0 %v1561, 127
    %v1566 = vpop.permute.xlu0 %1565
    %1567 = vrot.lane.b32.xlu0 %v1562, 127
    %v1568 = vpop.permute.xlu0 %1567
    %v1571 = vadd.f32 %v1519, %v1566
    %v1572 = vadd.f32 %v1520, %v1568
    %s1573 = sld [smem:[#allocation6 + $0x4c]]
    %v1574 = vstv %s1573
    %v1575 = vmul.f32 %v1507, %v1574
    %v1576 = vmul.f32 %v1508, %v1574
    %1579 = vrot.lane.b32.xlu0 %v1575, 127
    %v1580 = vpop.permute.xlu0 %1579
    %1581 = vrot.lane.b32.xlu0 %v1576, 127
    %v1582 = vpop.permute.xlu0 %1581
    %v1585 = vadd.f32 %v1525, %v1580
    %v1586 = vadd.f32 %v1526, %v1582
    %s1587 = sld [smem:[#allocation6 + $0x67]]
    %v1588 = vstv %s1587
    %v1589 = vmul.f32 %v1507, %v1588
    %v1590 = vmul.f32 %v1508, %v1588
    %1593 = vrot.lane.b32.xlu0 %v1589, 127
    %v1594 = vpop.permute.xlu0 %1593
    %1595 = vrot.lane.b32.xlu0 %v1590, 127
    %v1596 = vpop.permute.xlu0 %1595
    %v1599 = vadd.f32 %v1531, %v1594
    %v1600 = vadd.f32 %v1532, %v1596
    %s1601 = sld [smem:[#allocation6 + $0x82]]
    %v1602 = vstv %s1601
    %v1603 = vmul.f32 %v1507, %v1602
    %v1604 = vmul.f32 %v1508, %v1602
    %1607 = vrot.lane.b32.xlu0 %v1603, 127
    %v1608 = vpop.permute.xlu0 %1607
    %1609 = vrot.lane.b32.xlu0 %v1604, 127
    %v1610 = vpop.permute.xlu0 %1609
    %v1613 = vadd.f32 %v1537, %v1608
    %v1614 = vadd.f32 %v1538, %v1610
    %s1615 = sld [smem:[#allocation6 + $0x9d]]
    %v1616 = vstv %s1615
    %v1617 = vmul.f32 %v1507, %v1616
    %v1618 = vmul.f32 %v1508, %v1616
    %1621 = vrot.lane.b32.xlu0 %v1617, 127
    %v1622 = vpop.permute.xlu0 %1621
    %1623 = vrot.lane.b32.xlu0 %v1618, 127
    %v1624 = vpop.permute.xlu0 %1623
    %v1627 = vadd.f32 %v1543, %v1622
    %v1628 = vadd.f32 %v1544, %v1624
    %s1629 = sld [smem:[#allocation6 + $0x17]]
    %v1630 = vstv %s1629
    %v1631 = vmul.f32 %v1507, %v1630
    %v1632 = vmul.f32 %v1508, %v1630
    %1635 = vrot.lane.b32.xlu0 %v1631, 126
    %v1636 = vpop.permute.xlu0 %1635
    %1637 = vrot.lane.b32.xlu0 %v1632, 126
    %v1638 = vpop.permute.xlu0 %1637
    %v1641 = vadd.f32 %v1557, %v1636
    %v1642 = vadd.f32 %v1558, %v1638
    %s1643 = sld [smem:[#allocation6 + $0x32]]
    %v1644 = vstv %s1643
    %v1645 = vmul.f32 %v1507, %v1644
    %v1646 = vmul.f32 %v1508, %v1644
    %1649 = vrot.lane.b32.xlu0 %v1645, 126
    %v1650 = vpop.permute.xlu0 %1649
    %1651 = vrot.lane.b32.xlu0 %v1646, 126
    %v1652 = vpop.permute.xlu0 %1651
    %v1655 = vadd.f32 %v1571, %v1650
    %v1656 = vadd.f32 %v1572, %v1652
    %s1657 = sld [smem:[#allocation6 + $0x4d]]
    %v1658 = vstv %s1657
    %v1659 = vmul.f32 %v1507, %v1658
    %v1660 = vmul.f32 %v1508, %v1658
    %1663 = vrot.lane.b32.xlu0 %v1659, 126
    %v1664 = vpop.permute.xlu0 %1663
    %1665 = vrot.lane.b32.xlu0 %v1660, 126
    %v1666 = vpop.permute.xlu0 %1665
    %v1669 = vadd.f32 %v1585, %v1664
    %v1670 = vadd.f32 %v1586, %v1666
    %s1671 = sld [smem:[#allocation6 + $0x68]]
    %v1672 = vstv %s1671
    %v1673 = vmul.f32 %v1507, %v1672
    %v1674 = vmul.f32 %v1508, %v1672
    %1677 = vrot.lane.b32.xlu0 %v1673, 126
    %v1678 = vpop.permute.xlu0 %1677
    %1679 = vrot.lane.b32.xlu0 %v1674, 126
    %v1680 = vpop.permute.xlu0 %1679
    %v1683 = vadd.f32 %v1599, %v1678
    %v1684 = vadd.f32 %v1600, %v1680
    %s1685 = sld [smem:[#allocation6 + $0x83]]
    %v1686 = vstv %s1685
    %v1687 = vmul.f32 %v1507, %v1686
    %v1688 = vmul.f32 %v1508, %v1686
    %1691 = vrot.lane.b32.xlu0 %v1687, 126
    %v1692 = vpop.permute.xlu0 %1691
    %1693 = vrot.lane.b32.xlu0 %v1688, 126
    %v1694 = vpop.permute.xlu0 %1693
    %v1697 = vadd.f32 %v1613, %v1692
    %v1698 = vadd.f32 %v1614, %v1694
    %s1699 = sld [smem:[#allocation6 + $0x9e]]
    %v1700 = vstv %s1699
    %v1701 = vmul.f32 %v1507, %v1700
    %v1702 = vmul.f32 %v1508, %v1700
    %1705 = vrot.lane.b32.xlu0 %v1701, 126
    %v1706 = vpop.permute.xlu0 %1705
    %1707 = vrot.lane.b32.xlu0 %v1702, 126
    %v1708 = vpop.permute.xlu0 %1707
    %v1711 = vadd.f32 %v1627, %v1706
    %v1712 = vadd.f32 %v1628, %v1708
    %v1713 = vld [vmem:[%s1300 + $0x2] sm:$0xff]
    %v1714 = vld [vmem:[%s1300 + $0xa] sm:$0x3f]
    %s1715 = sld [smem:[#allocation6 + $0x18]]
    %v1716 = vstv %s1715
    %v1717 = vmul.f32 %v1713, %v1716
    %v1718 = vmul.f32 %v1714, %v1716
    %v1719 = vadd.f32 %v1641, %v1717
    %v1720 = vadd.f32 %v1642, %v1718
    %s1721 = sld [smem:[#allocation6 + $0x33]]
    %v1722 = vstv %s1721
    %v1723 = vmul.f32 %v1713, %v1722
    %v1724 = vmul.f32 %v1714, %v1722
    %v1725 = vadd.f32 %v1655, %v1723
    %v1726 = vadd.f32 %v1656, %v1724
    %s1727 = sld [smem:[#allocation6 + $0x4e]]
    %v1728 = vstv %s1727
    %v1729 = vmul.f32 %v1713, %v1728
    %v1730 = vmul.f32 %v1714, %v1728
    %v1731 = vadd.f32 %v1669, %v1729
    %v1732 = vadd.f32 %v1670, %v1730
    %s1733 = sld [smem:[#allocation6 + $0x69]]
    %v1734 = vstv %s1733
    %v1735 = vmul.f32 %v1713, %v1734
    %v1736 = vmul.f32 %v1714, %v1734
    %v1737 = vadd.f32 %v1683, %v1735
    %v1738 = vadd.f32 %v1684, %v1736
    %s1739 = sld [smem:[#allocation6 + $0x84]]
    %v1740 = vstv %s1739
    %v1741 = vmul.f32 %v1713, %v1740
    %v1742 = vmul.f32 %v1714, %v1740
    %v1743 = vadd.f32 %v1697, %v1741
    %v1744 = vadd.f32 %v1698, %v1742
    %s1745 = sld [smem:[#allocation6 + $0x9f]]
    %v1746 = vstv %s1745
    %v1747 = vmul.f32 %v1713, %v1746
    %v1748 = vmul.f32 %v1714, %v1746
    %v1749 = vadd.f32 %v1711, %v1747
    %v1750 = vadd.f32 %v1712, %v1748
    %s1751 = sld [smem:[#allocation6 + $0x19]]
    %v1752 = vstv %s1751
    %v1753 = vmul.f32 %v1713, %v1752
    %v1754 = vmul.f32 %v1714, %v1752
    %1757 = vrot.lane.b32.xlu0 %v1753, 127
    %v1758 = vpop.permute.xlu0 %1757
    %1759 = vrot.lane.b32.xlu0 %v1754, 127
    %v1760 = vpop.permute.xlu0 %1759
    %v1763 = vadd.f32 %v1719, %v1758
    %v1764 = vadd.f32 %v1720, %v1760
    %s1765 = sld [smem:[#allocation6 + $0x34]]
    %v1766 = vstv %s1765
    %v1767 = vmul.f32 %v1713, %v1766
    %v1768 = vmul.f32 %v1714, %v1766
    %1771 = vrot.lane.b32.xlu0 %v1767, 127
    %v1772 = vpop.permute.xlu0 %1771
    %1773 = vrot.lane.b32.xlu0 %v1768, 127
    %v1774 = vpop.permute.xlu0 %1773
    %v1777 = vadd.f32 %v1725, %v1772
    %v1778 = vadd.f32 %v1726, %v1774
    %s1779 = sld [smem:[#allocation6 + $0x4f]]
    %v1780 = vstv %s1779
    %v1781 = vmul.f32 %v1713, %v1780
    %v1782 = vmul.f32 %v1714, %v1780
    %1785 = vrot.lane.b32.xlu0 %v1781, 127
    %v1786 = vpop.permute.xlu0 %1785
    %1787 = vrot.lane.b32.xlu0 %v1782, 127
    %v1788 = vpop.permute.xlu0 %1787
    %v1791 = vadd.f32 %v1731, %v1786
    %v1792 = vadd.f32 %v1732, %v1788
    %s1793 = sld [smem:[#allocation6 + $0x6a]]
    %v1794 = vstv %s1793
    %v1795 = vmul.f32 %v1713, %v1794
    %v1796 = vmul.f32 %v1714, %v1794
    %1799 = vrot.lane.b32.xlu0 %v1795, 127
    %v1800 = vpop.permute.xlu0 %1799
    %1801 = vrot.lane.b32.xlu0 %v1796, 127
    %v1802 = vpop.permute.xlu0 %1801
    %v1805 = vadd.f32 %v1737, %v1800
    %v1806 = vadd.f32 %v1738, %v1802
    %s1807 = sld [smem:[#allocation6 + $0x85]]
    %v1808 = vstv %s1807
    %v1809 = vmul.f32 %v1713, %v1808
    %v1810 = vmul.f32 %v1714, %v1808
    %1813 = vrot.lane.b32.xlu0 %v1809, 127
    %v1814 = vpop.permute.xlu0 %1813
    %1815 = vrot.lane.b32.xlu0 %v1810, 127
    %v1816 = vpop.permute.xlu0 %1815
    %v1819 = vadd.f32 %v1743, %v1814
    %v1820 = vadd.f32 %v1744, %v1816
    %s1821 = sld [smem:[#allocation6 + $0xa0]]
    %v1822 = vstv %s1821
    %v1823 = vmul.f32 %v1713, %v1822
    %v1824 = vmul.f32 %v1714, %v1822
    %1827 = vrot.lane.b32.xlu0 %v1823, 127
    %v1828 = vpop.permute.xlu0 %1827
    %1829 = vrot.lane.b32.xlu0 %v1824, 127
    %v1830 = vpop.permute.xlu0 %1829
    %v1833 = vadd.f32 %v1749, %v1828
    %v1834 = vadd.f32 %v1750, %v1830
    %s1835 = sld [smem:[#allocation6 + $0x1a]]
    %v1836 = vstv %s1835
    %v1837 = vmul.f32 %v1713, %v1836
    %v1838 = vmul.f32 %v1714, %v1836
    %1841 = vrot.lane.b32.xlu0 %v1837, 126
    %v1842 = vpop.permute.xlu0 %1841
    %1843 = vrot.lane.b32.xlu0 %v1838, 126
    %v1844 = vpop.permute.xlu0 %1843
    %v1847 = vadd.f32 %v1763, %v1842
    %v1848 = vadd.f32 %v1764, %v1844
    %s1849 = sld [smem:[#allocation6 + $0x35]]
    %v1850 = vstv %s1849
    %v1851 = vmul.f32 %v1713, %v1850
    %v1852 = vmul.f32 %v1714, %v1850
    %1855 = vrot.lane.b32.xlu0 %v1851, 126
    %v1856 = vpop.permute.xlu0 %1855
    %1857 = vrot.lane.b32.xlu0 %v1852, 126
    %v1858 = vpop.permute.xlu0 %1857
    %v1861 = vadd.f32 %v1777, %v1856
    %v1862 = vadd.f32 %v1778, %v1858
    %s1863 = sld [smem:[#allocation6 + $0x50]]
    %v1864 = vstv %s1863
    %v1865 = vmul.f32 %v1713, %v1864
    %v1866 = vmul.f32 %v1714, %v1864
    %1869 = vrot.lane.b32.xlu0 %v1865, 126
    %v1870 = vpop.permute.xlu0 %1869
    %1871 = vrot.lane.b32.xlu0 %v1866, 126
    %v1872 = vpop.permute.xlu0 %1871
    %v1875 = vadd.f32 %v1791, %v1870
    %v1876 = vadd.f32 %v1792, %v1872
    %s1877 = sld [smem:[#allocation6 + $0x6b]]
    %v1878 = vstv %s1877
    %v1879 = vmul.f32 %v1713, %v1878
    %v1880 = vmul.f32 %v1714, %v1878
    %1883 = vrot.lane.b32.xlu0 %v1879, 126
    %v1884 = vpop.permute.xlu0 %1883
    %1885 = vrot.lane.b32.xlu0 %v1880, 126
    %v1886 = vpop.permute.xlu0 %1885
    %v1889 = vadd.f32 %v1805, %v1884
    %v1890 = vadd.f32 %v1806, %v1886
    %s1891 = sld [smem:[#allocation6 + $0x86]]
    %v1892 = vstv %s1891
    %v1893 = vmul.f32 %v1713, %v1892
    %v1894 = vmul.f32 %v1714, %v1892
    %1897 = vrot.lane.b32.xlu0 %v1893, 126
    %v1898 = vpop.permute.xlu0 %1897
    %1899 = vrot.lane.b32.xlu0 %v1894, 126
    %v1900 = vpop.permute.xlu0 %1899
    %v1903 = vadd.f32 %v1819, %v1898
    %v1904 = vadd.f32 %v1820, %v1900
    %s1905 = sld [smem:[#allocation6 + $0xa1]]
    %v1906 = vstv %s1905
    %v1907 = vmul.f32 %v1713, %v1906
    %v1908 = vmul.f32 %v1714, %v1906
    %1911 = vrot.lane.b32.xlu0 %v1907, 126
    %v1912 = vpop.permute.xlu0 %1911
    %1913 = vrot.lane.b32.xlu0 %v1908, 126
    %v1914 = vpop.permute.xlu0 %1913
    %v1917 = vadd.f32 %v1833, %v1912
    %v1918 = vadd.f32 %v1834, %v1914
    %vm1919 = vcmask 113664
    %1920 = vst.msk [vmem:[%s3] sm:$0xff] %vm1919, %v1847
    %vm1921 = vcmask 111616
    %1922 = vst.msk [vmem:[%s3 + $0x8] sm:$0x3f] %vm1921, %v1848
    %s1923 = scalar_lea.vmem %s3, 16
    %1924 = vst.msk [vmem:[%s1923] sm:$0xff] %vm1919, %v1861
    %1925 = vst.msk [vmem:[%s1923 + $0x8] sm:$0x3f] %vm1921, %v1862
    %s1926 = scalar_lea.vmem %s3, 32
    %1927 = vst.msk [vmem:[%s1926] sm:$0xff] %vm1919, %v1875
    %1928 = vst.msk [vmem:[%s1926 + $0x8] sm:$0x3f] %vm1921, %v1876
    %s1929 = scalar_lea.vmem %s3, 48
    %1930 = vst.msk [vmem:[%s1929] sm:$0xff] %vm1919, %v1889
    %1931 = vst.msk [vmem:[%s1929 + $0x8] sm:$0x3f] %vm1921, %v1890
    %s1932 = scalar_lea.vmem %s3, 64
    %1933 = vst.msk [vmem:[%s1932] sm:$0xff] %vm1919, %v1903
    %1934 = vst.msk [vmem:[%s1932 + $0x8] sm:$0x3f] %vm1921, %v1904
    %s1935 = scalar_lea.vmem %s3, 80
    %1936 = vst.msk [vmem:[%s1935] sm:$0xff] %vm1919, %v1917
    %1937 = vst.msk [vmem:[%s1935 + $0x8] sm:$0x3f] %vm1921, %v1918
    %s1938 = sld [smem:[#allocation7]]
    %v1939 = vstv %s1938
    %s1940 = sld [smem:[#allocation7 + $0x1]]
    %v1941 = vstv %s1940
    %s1942 = sld [smem:[#allocation7 + $0x2]]
    %v1943 = vstv %s1942
    %s1944 = sld [smem:[#allocation7 + $0x3]]
    %v1945 = vstv %s1944
    %s1946 = sld [smem:[#allocation7 + $0x4]]
    %v1947 = vstv %s1946
    %s1948 = sld [smem:[#allocation7 + $0x5]]
    %v1949 = vstv %s1948
    %s1950 = scalar_lea.vmem [#allocation2], 48
    %v1951 = vld [vmem:[%s1950] sm:$0xff]
    %v1952 = vld [vmem:[%s1950 + $0x8] sm:$0x3f]
    %s1953 = sld [smem:[#allocation6]]
    %v1954 = vstv %s1953
    %v1955 = vmul.f32 %v1951, %v1954
    %v1956 = vmul.f32 %v1952, %v1954
    %v1957 = vadd.f32 %v1939, %v1955
    %v1958 = vadd.f32 %v1939, %v1956
    %s1959 = sld [smem:[#allocation6 + $0x1b]]
    %v1960 = vstv %s1959
    %v1961 = vmul.f32 %v1951, %v1960
    %v1962 = vmul.f32 %v1952, %v1960
    %v1963 = vadd.f32 %v1941, %v1961
    %v1964 = vadd.f32 %v1941, %v1962
    %s1965 = sld [smem:[#allocation6 + $0x36]]
    %v1966 = vstv %s1965
    %v1967 = vmul.f32 %v1951, %v1966
    %v1968 = vmul.f32 %v1952, %v1966
    %v1969 = vadd.f32 %v1943, %v1967
    %v1970 = vadd.f32 %v1943, %v1968
    %s1971 = sld [smem:[#allocation6 + $0x51]]
    %v1972 = vstv %s1971
    %v1973 = vmul.f32 %v1951, %v1972
    %v1974 = vmul.f32 %v1952, %v1972
    %v1975 = vadd.f32 %v1945, %v1973
    %v1976 = vadd.f32 %v1945, %v1974
    %s1977 = sld [smem:[#allocation6 + $0x6c]]
    %v1978 = vstv %s1977
    %v1979 = vmul.f32 %v1951, %v1978
    %v1980 = vmul.f32 %v1952, %v1978
    %v1981 = vadd.f32 %v1947, %v1979
    %v1982 = vadd.f32 %v1947, %v1980
    %s1983 = sld [smem:[#allocation6 + $0x87]]
    %v1984 = vstv %s1983
    %v1985 = vmul.f32 %v1951, %v1984
    %v1986 = vmul.f32 %v1952, %v1984
    %v1987 = vadd.f32 %v1949, %v1985
    %v1988 = vadd.f32 %v1949, %v1986
    %s1989 = sld [smem:[#allocation6 + $0x1]]
    %v1990 = vstv %s1989
    %v1991 = vmul.f32 %v1951, %v1990
    %v1992 = vmul.f32 %v1952, %v1990
    %1995 = vrot.lane.b32.xlu0 %v1991, 127
    %v1996 = vpop.permute.xlu0 %1995
    %1997 = vrot.lane.b32.xlu0 %v1992, 127
    %v1998 = vpop.permute.xlu0 %1997
    %v2001 = vadd.f32 %v1957, %v1996
    %v2002 = vadd.f32 %v1958, %v1998
    %s2003 = sld [smem:[#allocation6 + $0x1c]]
    %v2004 = vstv %s2003
    %v2005 = vmul.f32 %v1951, %v2004
    %v2006 = vmul.f32 %v1952, %v2004
    %2009 = vrot.lane.b32.xlu0 %v2005, 127
    %v2010 = vpop.permute.xlu0 %2009
    %2011 = vrot.lane.b32.xlu0 %v2006, 127
    %v2012 = vpop.permute.xlu0 %2011
    %v2015 = vadd.f32 %v1963, %v2010
    %v2016 = vadd.f32 %v1964, %v2012
    %s2017 = sld [smem:[#allocation6 + $0x37]]
    %v2018 = vstv %s2017
    %v2019 = vmul.f32 %v1951, %v2018
    %v2020 = vmul.f32 %v1952, %v2018
    %2023 = vrot.lane.b32.xlu0 %v2019, 127
    %v2024 = vpop.permute.xlu0 %2023
    %2025 = vrot.lane.b32.xlu0 %v2020, 127
    %v2026 = vpop.permute.xlu0 %2025
    %v2029 = vadd.f32 %v1969, %v2024
    %v2030 = vadd.f32 %v1970, %v2026
    %s2031 = sld [smem:[#allocation6 + $0x52]]
    %v2032 = vstv %s2031
    %v2033 = vmul.f32 %v1951, %v2032
    %v2034 = vmul.f32 %v1952, %v2032
    %2037 = vrot.lane.b32.xlu0 %v2033, 127
    %v2038 = vpop.permute.xlu0 %2037
    %2039 = vrot.lane.b32.xlu0 %v2034, 127
    %v2040 = vpop.permute.xlu0 %2039
    %v2043 = vadd.f32 %v1975, %v2038
    %v2044 = vadd.f32 %v1976, %v2040
    %s2045 = sld [smem:[#allocation6 + $0x6d]]
    %v2046 = vstv %s2045
    %v2047 = vmul.f32 %v1951, %v2046
    %v2048 = vmul.f32 %v1952, %v2046
    %2051 = vrot.lane.b32.xlu0 %v2047, 127
    %v2052 = vpop.permute.xlu0 %2051
    %2053 = vrot.lane.b32.xlu0 %v2048, 127
    %v2054 = vpop.permute.xlu0 %2053
    %v2057 = vadd.f32 %v1981, %v2052
    %v2058 = vadd.f32 %v1982, %v2054
    %s2059 = sld [smem:[#allocation6 + $0x88]]
    %v2060 = vstv %s2059
    %v2061 = vmul.f32 %v1951, %v2060
    %v2062 = vmul.f32 %v1952, %v2060
    %2065 = vrot.lane.b32.xlu0 %v2061, 127
    %v2066 = vpop.permute.xlu0 %2065
    %2067 = vrot.lane.b32.xlu0 %v2062, 127
    %v2068 = vpop.permute.xlu0 %2067
    %v2071 = vadd.f32 %v1987, %v2066
    %v2072 = vadd.f32 %v1988, %v2068
    %s2073 = sld [smem:[#allocation6 + $0x2]]
    %v2074 = vstv %s2073
    %v2075 = vmul.f32 %v1951, %v2074
    %v2076 = vmul.f32 %v1952, %v2074
    %2079 = vrot.lane.b32.xlu0 %v2075, 126
    %v2080 = vpop.permute.xlu0 %2079
    %2081 = vrot.lane.b32.xlu0 %v2076, 126
    %v2082 = vpop.permute.xlu0 %2081
    %v2085 = vadd.f32 %v2001, %v2080
    %v2086 = vadd.f32 %v2002, %v2082
    %s2087 = sld [smem:[#allocation6 + $0x1d]]
    %v2088 = vstv %s2087
    %v2089 = vmul.f32 %v1951, %v2088
    %v2090 = vmul.f32 %v1952, %v2088
    %2093 = vrot.lane.b32.xlu0 %v2089, 126
    %v2094 = vpop.permute.xlu0 %2093
    %2095 = vrot.lane.b32.xlu0 %v2090, 126
    %v2096 = vpop.permute.xlu0 %2095
    %v2099 = vadd.f32 %v2015, %v2094
    %v2100 = vadd.f32 %v2016, %v2096
    %s2101 = sld [smem:[#allocation6 + $0x38]]
    %v2102 = vstv %s2101
    %v2103 = vmul.f32 %v1951, %v2102
    %v2104 = vmul.f32 %v1952, %v2102
    %2107 = vrot.lane.b32.xlu0 %v2103, 126
    %v2108 = vpop.permute.xlu0 %2107
    %2109 = vrot.lane.b32.xlu0 %v2104, 126
    %v2110 = vpop.permute.xlu0 %2109
    %v2113 = vadd.f32 %v2029, %v2108
    %v2114 = vadd.f32 %v2030, %v2110
    %s2115 = sld [smem:[#allocation6 + $0x53]]
    %v2116 = vstv %s2115
    %v2117 = vmul.f32 %v1951, %v2116
    %v2118 = vmul.f32 %v1952, %v2116
    %2121 = vrot.lane.b32.xlu0 %v2117, 126
    %v2122 = vpop.permute.xlu0 %2121
    %2123 = vrot.lane.b32.xlu0 %v2118, 126
    %v2124 = vpop.permute.xlu0 %2123
    %v2127 = vadd.f32 %v2043, %v2122
    %v2128 = vadd.f32 %v2044, %v2124
    %s2129 = sld [smem:[#allocation6 + $0x6e]]
    %v2130 = vstv %s2129
    %v2131 = vmul.f32 %v1951, %v2130
    %v2132 = vmul.f32 %v1952, %v2130
    %2135 = vrot.lane.b32.xlu0 %v2131, 126
    %v2136 = vpop.permute.xlu0 %2135
    %2137 = vrot.lane.b32.xlu0 %v2132, 126
    %v2138 = vpop.permute.xlu0 %2137
    %v2141 = vadd.f32 %v2057, %v2136
    %v2142 = vadd.f32 %v2058, %v2138
    %s2143 = sld [smem:[#allocation6 + $0x89]]
    %v2144 = vstv %s2143
    %v2145 = vmul.f32 %v1951, %v2144
    %v2146 = vmul.f32 %v1952, %v2144
    %2149 = vrot.lane.b32.xlu0 %v2145, 126
    %v2150 = vpop.permute.xlu0 %2149
    %2151 = vrot.lane.b32.xlu0 %v2146, 126
    %v2152 = vpop.permute.xlu0 %2151
    %v2155 = vadd.f32 %v2071, %v2150
    %v2156 = vadd.f32 %v2072, %v2152
    %v2157 = vld [vmem:[%s1950 + $0x1] sm:$0xff]
    %v2158 = vld [vmem:[%s1950 + $0x9] sm:$0x3f]
    %s2159 = sld [smem:[#allocation6 + $0x3]]
    %v2160 = vstv %s2159
    %v2161 = vmul.f32 %v2157, %v2160
    %v2162 = vmul.f32 %v2158, %v2160
    %v2163 = vadd.f32 %v2085, %v2161
    %v2164 = vadd.f32 %v2086, %v2162
    %s2165 = sld [smem:[#allocation6 + $0x1e]]
    %v2166 = vstv %s2165
    %v2167 = vmul.f32 %v2157, %v2166
    %v2168 = vmul.f32 %v2158, %v2166
    %v2169 = vadd.f32 %v2099, %v2167
    %v2170 = vadd.f32 %v2100, %v2168
    %s2171 = sld [smem:[#allocation6 + $0x39]]
    %v2172 = vstv %s2171
    %v2173 = vmul.f32 %v2157, %v2172
    %v2174 = vmul.f32 %v2158, %v2172
    %v2175 = vadd.f32 %v2113, %v2173
    %v2176 = vadd.f32 %v2114, %v2174
    %s2177 = sld [smem:[#allocation6 + $0x54]]
    %v2178 = vstv %s2177
    %v2179 = vmul.f32 %v2157, %v2178
    %v2180 = vmul.f32 %v2158, %v2178
    %v2181 = vadd.f32 %v2127, %v2179
    %v2182 = vadd.f32 %v2128, %v2180
    %s2183 = sld [smem:[#allocation6 + $0x6f]]
    %v2184 = vstv %s2183
    %v2185 = vmul.f32 %v2157, %v2184
    %v2186 = vmul.f32 %v2158, %v2184
    %v2187 = vadd.f32 %v2141, %v2185
    %v2188 = vadd.f32 %v2142, %v2186
    %s2189 = sld [smem:[#allocation6 + $0x8a]]
    %v2190 = vstv %s2189
    %v2191 = vmul.f32 %v2157, %v2190
    %v2192 = vmul.f32 %v2158, %v2190
    %v2193 = vadd.f32 %v2155, %v2191
    %v2194 = vadd.f32 %v2156, %v2192
    %s2195 = sld [smem:[#allocation6 + $0x4]]
    %v2196 = vstv %s2195
    %v2197 = vmul.f32 %v2157, %v2196
    %v2198 = vmul.f32 %v2158, %v2196
    %2201 = vrot.lane.b32.xlu0 %v2197, 127
    %v2202 = vpop.permute.xlu0 %2201
    %2203 = vrot.lane.b32.xlu0 %v2198, 127
    %v2204 = vpop.permute.xlu0 %2203
    %v2207 = vadd.f32 %v2163, %v2202
    %v2208 = vadd.f32 %v2164, %v2204
    %s2209 = sld [smem:[#allocation6 + $0x1f]]
    %v2210 = vstv %s2209
    %v2211 = vmul.f32 %v2157, %v2210
    %v2212 = vmul.f32 %v2158, %v2210
    %2215 = vrot.lane.b32.xlu0 %v2211, 127
    %v2216 = vpop.permute.xlu0 %2215
    %2217 = vrot.lane.b32.xlu0 %v2212, 127
    %v2218 = vpop.permute.xlu0 %2217
    %v2221 = vadd.f32 %v2169, %v2216
    %v2222 = vadd.f32 %v2170, %v2218
    %s2223 = sld [smem:[#allocation6 + $0x3a]]
    %v2224 = vstv %s2223
    %v2225 = vmul.f32 %v2157, %v2224
    %v2226 = vmul.f32 %v2158, %v2224
    %2229 = vrot.lane.b32.xlu0 %v2225, 127
    %v2230 = vpop.permute.xlu0 %2229
    %2231 = vrot.lane.b32.xlu0 %v2226, 127
    %v2232 = vpop.permute.xlu0 %2231
    %v2235 = vadd.f32 %v2175, %v2230
    %v2236 = vadd.f32 %v2176, %v2232
    %s2237 = sld [smem:[#allocation6 + $0x55]]
    %v2238 = vstv %s2237
    %v2239 = vmul.f32 %v2157, %v2238
    %v2240 = vmul.f32 %v2158, %v2238
    %2243 = vrot.lane.b32.xlu0 %v2239, 127
    %v2244 = vpop.permute.xlu0 %2243
    %2245 = vrot.lane.b32.xlu0 %v2240, 127
    %v2246 = vpop.permute.xlu0 %2245
    %v2249 = vadd.f32 %v2181, %v2244
    %v2250 = vadd.f32 %v2182, %v2246
    %s2251 = sld [smem:[#allocation6 + $0x70]]
    %v2252 = vstv %s2251
    %v2253 = vmul.f32 %v2157, %v2252
    %v2254 = vmul.f32 %v2158, %v2252
    %2257 = vrot.lane.b32.xlu0 %v2253, 127
    %v2258 = vpop.permute.xlu0 %2257
    %2259 = vrot.lane.b32.xlu0 %v2254, 127
    %v2260 = vpop.permute.xlu0 %2259
    %v2263 = vadd.f32 %v2187, %v2258
    %v2264 = vadd.f32 %v2188, %v2260
    %s2265 = sld [smem:[#allocation6 + $0x8b]]
    %v2266 = vstv %s2265
    %v2267 = vmul.f32 %v2157, %v2266
    %v2268 = vmul.f32 %v2158, %v2266
    %2271 = vrot.lane.b32.xlu0 %v2267, 127
    %v2272 = vpop.permute.xlu0 %2271
    %2273 = vrot.lane.b32.xlu0 %v2268, 127
    %v2274 = vpop.permute.xlu0 %2273
    %v2277 = vadd.f32 %v2193, %v2272
    %v2278 = vadd.f32 %v2194, %v2274
    %s2279 = sld [smem:[#allocation6 + $0x5]]
    %v2280 = vstv %s2279
    %v2281 = vmul.f32 %v2157, %v2280
    %v2282 = vmul.f32 %v2158, %v2280
    %2285 = vrot.lane.b32.xlu0 %v2281, 126
    %v2286 = vpop.permute.xlu0 %2285
    %2287 = vrot.lane.b32.xlu0 %v2282, 126
    %v2288 = vpop.permute.xlu0 %2287
    %v2291 = vadd.f32 %v2207, %v2286
    %v2292 = vadd.f32 %v2208, %v2288
    %s2293 = sld [smem:[#allocation6 + $0x20]]
    %v2294 = vstv %s2293
    %v2295 = vmul.f32 %v2157, %v2294
    %v2296 = vmul.f32 %v2158, %v2294
    %2299 = vrot.lane.b32.xlu0 %v2295, 126
    %v2300 = vpop.permute.xlu0 %2299
    %2301 = vrot.lane.b32.xlu0 %v2296, 126
    %v2302 = vpop.permute.xlu0 %2301
    %v2305 = vadd.f32 %v2221, %v2300
    %v2306 = vadd.f32 %v2222, %v2302
    %s2307 = sld [smem:[#allocation6 + $0x3b]]
    %v2308 = vstv %s2307
    %v2309 = vmul.f32 %v2157, %v2308
    %v2310 = vmul.f32 %v2158, %v2308
    %2313 = vrot.lane.b32.xlu0 %v2309, 126
    %v2314 = vpop.permute.xlu0 %2313
    %2315 = vrot.lane.b32.xlu0 %v2310, 126
    %v2316 = vpop.permute.xlu0 %2315
    %v2319 = vadd.f32 %v2235, %v2314
    %v2320 = vadd.f32 %v2236, %v2316
    %s2321 = sld [smem:[#allocation6 + $0x56]]
    %v2322 = vstv %s2321
    %v2323 = vmul.f32 %v2157, %v2322
    %v2324 = vmul.f32 %v2158, %v2322
    %2327 = vrot.lane.b32.xlu0 %v2323, 126
    %v2328 = vpop.permute.xlu0 %2327
    %2329 = vrot.lane.b32.xlu0 %v2324, 126
    %v2330 = vpop.permute.xlu0 %2329
    %v2333 = vadd.f32 %v2249, %v2328
    %v2334 = vadd.f32 %v2250, %v2330
    %s2335 = sld [smem:[#allocation6 + $0x71]]
    %v2336 = vstv %s2335
    %v2337 = vmul.f32 %v2157, %v2336
    %v2338 = vmul.f32 %v2158, %v2336
    %2341 = vrot.lane.b32.xlu0 %v2337, 126
    %v2342 = vpop.permute.xlu0 %2341
    %2343 = vrot.lane.b32.xlu0 %v2338, 126
    %v2344 = vpop.permute.xlu0 %2343
    %v2347 = vadd.f32 %v2263, %v2342
    %v2348 = vadd.f32 %v2264, %v2344
    %s2349 = sld [smem:[#allocation6 + $0x8c]]
    %v2350 = vstv %s2349
    %v2351 = vmul.f32 %v2157, %v2350
    %v2352 = vmul.f32 %v2158, %v2350
    %2355 = vrot.lane.b32.xlu0 %v2351, 126
    %v2356 = vpop.permute.xlu0 %2355
    %2357 = vrot.lane.b32.xlu0 %v2352, 126
    %v2358 = vpop.permute.xlu0 %2357
    %v2361 = vadd.f32 %v2277, %v2356
    %v2362 = vadd.f32 %v2278, %v2358
    %v2363 = vld [vmem:[%s1950 + $0x2] sm:$0xff]
    %v2364 = vld [vmem:[%s1950 + $0xa] sm:$0x3f]
    %s2365 = sld [smem:[#allocation6 + $0x6]]
    %v2366 = vstv %s2365
    %v2367 = vmul.f32 %v2363, %v2366
    %v2368 = vmul.f32 %v2364, %v2366
    %v2369 = vadd.f32 %v2291, %v2367
    %v2370 = vadd.f32 %v2292, %v2368
    %s2371 = sld [smem:[#allocation6 + $0x21]]
    %v2372 = vstv %s2371
    %v2373 = vmul.f32 %v2363, %v2372
    %v2374 = vmul.f32 %v2364, %v2372
    %v2375 = vadd.f32 %v2305, %v2373
    %v2376 = vadd.f32 %v2306, %v2374
    %s2377 = sld [smem:[#allocation6 + $0x3c]]
    %v2378 = vstv %s2377
    %v2379 = vmul.f32 %v2363, %v2378
    %v2380 = vmul.f32 %v2364, %v2378
    %v2381 = vadd.f32 %v2319, %v2379
    %v2382 = vadd.f32 %v2320, %v2380
    %s2383 = sld [smem:[#allocation6 + $0x57]]
    %v2384 = vstv %s2383
    %v2385 = vmul.f32 %v2363, %v2384
    %v2386 = vmul.f32 %v2364, %v2384
    %v2387 = vadd.f32 %v2333, %v2385
    %v2388 = vadd.f32 %v2334, %v2386
    %s2389 = sld [smem:[#allocation6 + $0x72]]
    %v2390 = vstv %s2389
    %v2391 = vmul.f32 %v2363, %v2390
    %v2392 = vmul.f32 %v2364, %v2390
    %v2393 = vadd.f32 %v2347, %v2391
    %v2394 = vadd.f32 %v2348, %v2392
    %s2395 = sld [smem:[#allocation6 + $0x8d]]
    %v2396 = vstv %s2395
    %v2397 = vmul.f32 %v2363, %v2396
    %v2398 = vmul.f32 %v2364, %v2396
    %v2399 = vadd.f32 %v2361, %v2397
    %v2400 = vadd.f32 %v2362, %v2398
    %s2401 = sld [smem:[#allocation6 + $0x7]]
    %v2402 = vstv %s2401
    %v2403 = vmul.f32 %v2363, %v2402
    %v2404 = vmul.f32 %v2364, %v2402
    %2407 = vrot.lane.b32.xlu0 %v2403, 127
    %v2408 = vpop.permute.xlu0 %2407
    %2409 = vrot.lane.b32.xlu0 %v2404, 127
    %v2410 = vpop.permute.xlu0 %2409
    %v2413 = vadd.f32 %v2369, %v2408
    %v2414 = vadd.f32 %v2370, %v2410
    %s2415 = sld [smem:[#allocation6 + $0x22]]
    %v2416 = vstv %s2415
    %v2417 = vmul.f32 %v2363, %v2416
    %v2418 = vmul.f32 %v2364, %v2416
    %2421 = vrot.lane.b32.xlu0 %v2417, 127
    %v2422 = vpop.permute.xlu0 %2421
    %2423 = vrot.lane.b32.xlu0 %v2418, 127
    %v2424 = vpop.permute.xlu0 %2423
    %v2427 = vadd.f32 %v2375, %v2422
    %v2428 = vadd.f32 %v2376, %v2424
    %s2429 = sld [smem:[#allocation6 + $0x3d]]
    %v2430 = vstv %s2429
    %v2431 = vmul.f32 %v2363, %v2430
    %v2432 = vmul.f32 %v2364, %v2430
    %2435 = vrot.lane.b32.xlu0 %v2431, 127
    %v2436 = vpop.permute.xlu0 %2435
    %2437 = vrot.lane.b32.xlu0 %v2432, 127
    %v2438 = vpop.permute.xlu0 %2437
    %v2441 = vadd.f32 %v2381, %v2436
    %v2442 = vadd.f32 %v2382, %v2438
    %s2443 = sld [smem:[#allocation6 + $0x58]]
    %v2444 = vstv %s2443
    %v2445 = vmul.f32 %v2363, %v2444
    %v2446 = vmul.f32 %v2364, %v2444
    %2449 = vrot.lane.b32.xlu0 %v2445, 127
    %v2450 = vpop.permute.xlu0 %2449
    %2451 = vrot.lane.b32.xlu0 %v2446, 127
    %v2452 = vpop.permute.xlu0 %2451
    %v2455 = vadd.f32 %v2387, %v2450
    %v2456 = vadd.f32 %v2388, %v2452
    %s2457 = sld [smem:[#allocation6 + $0x73]]
    %v2458 = vstv %s2457
    %v2459 = vmul.f32 %v2363, %v2458
    %v2460 = vmul.f32 %v2364, %v2458
    %2463 = vrot.lane.b32.xlu0 %v2459, 127
    %v2464 = vpop.permute.xlu0 %2463
    %2465 = vrot.lane.b32.xlu0 %v2460, 127
    %v2466 = vpop.permute.xlu0 %2465
    %v2469 = vadd.f32 %v2393, %v2464
    %v2470 = vadd.f32 %v2394, %v2466
    %s2471 = sld [smem:[#allocation6 + $0x8e]]
    %v2472 = vstv %s2471
    %v2473 = vmul.f32 %v2363, %v2472
    %v2474 = vmul.f32 %v2364, %v2472
    %2477 = vrot.lane.b32.xlu0 %v2473, 127
    %v2478 = vpop.permute.xlu0 %2477
    %2479 = vrot.lane.b32.xlu0 %v2474, 127
    %v2480 = vpop.permute.xlu0 %2479
    %v2483 = vadd.f32 %v2399, %v2478
    %v2484 = vadd.f32 %v2400, %v2480
    %s2485 = sld [smem:[#allocation6 + $0x8]]
    %v2486 = vstv %s2485
    %v2487 = vmul.f32 %v2363, %v2486
    %v2488 = vmul.f32 %v2364, %v2486
    %2491 = vrot.lane.b32.xlu0 %v2487, 126
    %v2492 = vpop.permute.xlu0 %2491
    %2493 = vrot.lane.b32.xlu0 %v2488, 126
    %v2494 = vpop.permute.xlu0 %2493
    %v2497 = vadd.f32 %v2413, %v2492
    %v2498 = vadd.f32 %v2414, %v2494
    %s2499 = sld [smem:[#allocation6 + $0x23]]
    %v2500 = vstv %s2499
    %v2501 = vmul.f32 %v2363, %v2500
    %v2502 = vmul.f32 %v2364, %v2500
    %2505 = vrot.lane.b32.xlu0 %v2501, 126
    %v2506 = vpop.permute.xlu0 %2505
    %2507 = vrot.lane.b32.xlu0 %v2502, 126
    %v2508 = vpop.permute.xlu0 %2507
    %v2511 = vadd.f32 %v2427, %v2506
    %v2512 = vadd.f32 %v2428, %v2508
    %s2513 = sld [smem:[#allocation6 + $0x3e]]
    %v2514 = vstv %s2513
    %v2515 = vmul.f32 %v2363, %v2514
    %v2516 = vmul.f32 %v2364, %v2514
    %2519 = vrot.lane.b32.xlu0 %v2515, 126
    %v2520 = vpop.permute.xlu0 %2519
    %2521 = vrot.lane.b32.xlu0 %v2516, 126
    %v2522 = vpop.permute.xlu0 %2521
    %v2525 = vadd.f32 %v2441, %v2520
    %v2526 = vadd.f32 %v2442, %v2522
    %s2527 = sld [smem:[#allocation6 + $0x59]]
    %v2528 = vstv %s2527
    %v2529 = vmul.f32 %v2363, %v2528
    %v2530 = vmul.f32 %v2364, %v2528
    %2533 = vrot.lane.b32.xlu0 %v2529, 126
    %v2534 = vpop.permute.xlu0 %2533
    %2535 = vrot.lane.b32.xlu0 %v2530, 126
    %v2536 = vpop.permute.xlu0 %2535
    %v2539 = vadd.f32 %v2455, %v2534
    %v2540 = vadd.f32 %v2456, %v2536
    %s2541 = sld [smem:[#allocation6 + $0x74]]
    %v2542 = vstv %s2541
    %v2543 = vmul.f32 %v2363, %v2542
    %v2544 = vmul.f32 %v2364, %v2542
    %2547 = vrot.lane.b32.xlu0 %v2543, 126
    %v2548 = vpop.permute.xlu0 %2547
    %2549 = vrot.lane.b32.xlu0 %v2544, 126
    %v2550 = vpop.permute.xlu0 %2549
    %v2553 = vadd.f32 %v2469, %v2548
    %v2554 = vadd.f32 %v2470, %v2550
    %s2555 = sld [smem:[#allocation6 + $0x8f]]
    %v2556 = vstv %s2555
    %v2557 = vmul.f32 %v2363, %v2556
    %v2558 = vmul.f32 %v2364, %v2556
    %2561 = vrot.lane.b32.xlu0 %v2557, 126
    %v2562 = vpop.permute.xlu0 %2561
    %2563 = vrot.lane.b32.xlu0 %v2558, 126
    %v2564 = vpop.permute.xlu0 %2563
    %v2567 = vadd.f32 %v2483, %v2562
    %v2568 = vadd.f32 %v2484, %v2564
    %s2569 = scalar_lea.vmem [#allocation2], 64
    %v2570 = vld [vmem:[%s2569] sm:$0xff]
    %v2571 = vld [vmem:[%s2569 + $0x8] sm:$0x3f]
    %s2572 = sld [smem:[#allocation6 + $0x9]]
    %v2573 = vstv %s2572
    %v2574 = vmul.f32 %v2570, %v2573
    %v2575 = vmul.f32 %v2571, %v2573
    %v2576 = vadd.f32 %v2497, %v2574
    %v2577 = vadd.f32 %v2498, %v2575
    %s2578 = sld [smem:[#allocation6 + $0x24]]
    %v2579 = vstv %s2578
    %v2580 = vmul.f32 %v2570, %v2579
    %v2581 = vmul.f32 %v2571, %v2579
    %v2582 = vadd.f32 %v2511, %v2580
    %v2583 = vadd.f32 %v2512, %v2581
    %s2584 = sld [smem:[#allocation6 + $0x3f]]
    %v2585 = vstv %s2584
    %v2586 = vmul.f32 %v2570, %v2585
    %v2587 = vmul.f32 %v2571, %v2585
    %v2588 = vadd.f32 %v2525, %v2586
    %v2589 = vadd.f32 %v2526, %v2587
    %s2590 = sld [smem:[#allocation6 + $0x5a]]
    %v2591 = vstv %s2590
    %v2592 = vmul.f32 %v2570, %v2591
    %v2593 = vmul.f32 %v2571, %v2591
    %v2594 = vadd.f32 %v2539, %v2592
    %v2595 = vadd.f32 %v2540, %v2593
    %s2596 = sld [smem:[#allocation6 + $0x75]]
    %v2597 = vstv %s2596
    %v2598 = vmul.f32 %v2570, %v2597
    %v2599 = vmul.f32 %v2571, %v2597
    %v2600 = vadd.f32 %v2553, %v2598
    %v2601 = vadd.f32 %v2554, %v2599
    %s2602 = sld [smem:[#allocation6 + $0x90]]
    %v2603 = vstv %s2602
    %v2604 = vmul.f32 %v2570, %v2603
    %v2605 = vmul.f32 %v2571, %v2603
    %v2606 = vadd.f32 %v2567, %v2604
    %v2607 = vadd.f32 %v2568, %v2605
    %s2608 = sld [smem:[#allocation6 + $0xa]]
    %v2609 = vstv %s2608
    %v2610 = vmul.f32 %v2570, %v2609
    %v2611 = vmul.f32 %v2571, %v2609
    %2614 = vrot.lane.b32.xlu0 %v2610, 127
    %v2615 = vpop.permute.xlu0 %2614
    %2616 = vrot.lane.b32.xlu0 %v2611, 127
    %v2617 = vpop.permute.xlu0 %2616
    %v2620 = vadd.f32 %v2576, %v2615
    %v2621 = vadd.f32 %v2577, %v2617
    %s2622 = sld [smem:[#allocation6 + $0x25]]
    %v2623 = vstv %s2622
    %v2624 = vmul.f32 %v2570, %v2623
    %v2625 = vmul.f32 %v2571, %v2623
    %2628 = vrot.lane.b32.xlu0 %v2624, 127
    %v2629 = vpop.permute.xlu0 %2628
    %2630 = vrot.lane.b32.xlu0 %v2625, 127
    %v2631 = vpop.permute.xlu0 %2630
    %v2634 = vadd.f32 %v2582, %v2629
    %v2635 = vadd.f32 %v2583, %v2631
    %s2636 = sld [smem:[#allocation6 + $0x40]]
    %v2637 = vstv %s2636
    %v2638 = vmul.f32 %v2570, %v2637
    %v2639 = vmul.f32 %v2571, %v2637
    %2642 = vrot.lane.b32.xlu0 %v2638, 127
    %v2643 = vpop.permute.xlu0 %2642
    %2644 = vrot.lane.b32.xlu0 %v2639, 127
    %v2645 = vpop.permute.xlu0 %2644
    %v2648 = vadd.f32 %v2588, %v2643
    %v2649 = vadd.f32 %v2589, %v2645
    %s2650 = sld [smem:[#allocation6 + $0x5b]]
    %v2651 = vstv %s2650
    %v2652 = vmul.f32 %v2570, %v2651
    %v2653 = vmul.f32 %v2571, %v2651
    %2656 = vrot.lane.b32.xlu0 %v2652, 127
    %v2657 = vpop.permute.xlu0 %2656
    %2658 = vrot.lane.b32.xlu0 %v2653, 127
    %v2659 = vpop.permute.xlu0 %2658
    %v2662 = vadd.f32 %v2594, %v2657
    %v2663 = vadd.f32 %v2595, %v2659
    %s2664 = sld [smem:[#allocation6 + $0x76]]
    %v2665 = vstv %s2664
    %v2666 = vmul.f32 %v2570, %v2665
    %v2667 = vmul.f32 %v2571, %v2665
    %2670 = vrot.lane.b32.xlu0 %v2666, 127
    %v2671 = vpop.permute.xlu0 %2670
    %2672 = vrot.lane.b32.xlu0 %v2667, 127
    %v2673 = vpop.permute.xlu0 %2672
    %v2676 = vadd.f32 %v2600, %v2671
    %v2677 = vadd.f32 %v2601, %v2673
    %s2678 = sld [smem:[#allocation6 + $0x91]]
    %v2679 = vstv %s2678
    %v2680 = vmul.f32 %v2570, %v2679
    %v2681 = vmul.f32 %v2571, %v2679
    %2684 = vrot.lane.b32.xlu0 %v2680, 127
    %v2685 = vpop.permute.xlu0 %2684
    %2686 = vrot.lane.b32.xlu0 %v2681, 127
    %v2687 = vpop.permute.xlu0 %2686
    %v2690 = vadd.f32 %v2606, %v2685
    %v2691 = vadd.f32 %v2607, %v2687
    %s2692 = sld [smem:[#allocation6 + $0xb]]
    %v2693 = vstv %s2692
    %v2694 = vmul.f32 %v2570, %v2693
    %v2695 = vmul.f32 %v2571, %v2693
    %2698 = vrot.lane.b32.xlu0 %v2694, 126
    %v2699 = vpop.permute.xlu0 %2698
    %2700 = vrot.lane.b32.xlu0 %v2695, 126
    %v2701 = vpop.permute.xlu0 %2700
    %v2704 = vadd.f32 %v2620, %v2699
    %v2705 = vadd.f32 %v2621, %v2701
    %s2706 = sld [smem:[#allocation6 + $0x26]]
    %v2707 = vstv %s2706
    %v2708 = vmul.f32 %v2570, %v2707
    %v2709 = vmul.f32 %v2571, %v2707
    %2712 = vrot.lane.b32.xlu0 %v2708, 126
    %v2713 = vpop.permute.xlu0 %2712
    %2714 = vrot.lane.b32.xlu0 %v2709, 126
    %v2715 = vpop.permute.xlu0 %2714
    %v2718 = vadd.f32 %v2634, %v2713
    %v2719 = vadd.f32 %v2635, %v2715
    %s2720 = sld [smem:[#allocation6 + $0x41]]
    %v2721 = vstv %s2720
    %v2722 = vmul.f32 %v2570, %v2721
    %v2723 = vmul.f32 %v2571, %v2721
    %2726 = vrot.lane.b32.xlu0 %v2722, 126
    %v2727 = vpop.permute.xlu0 %2726
    %2728 = vrot.lane.b32.xlu0 %v2723, 126
    %v2729 = vpop.permute.xlu0 %2728
    %v2732 = vadd.f32 %v2648, %v2727
    %v2733 = vadd.f32 %v2649, %v2729
    %s2734 = sld [smem:[#allocation6 + $0x5c]]
    %v2735 = vstv %s2734
    %v2736 = vmul.f32 %v2570, %v2735
    %v2737 = vmul.f32 %v2571, %v2735
    %2740 = vrot.lane.b32.xlu0 %v2736, 126
    %v2741 = vpop.permute.xlu0 %2740
    %2742 = vrot.lane.b32.xlu0 %v2737, 126
    %v2743 = vpop.permute.xlu0 %2742
    %v2746 = vadd.f32 %v2662, %v2741
    %v2747 = vadd.f32 %v2663, %v2743
    %s2748 = sld [smem:[#allocation6 + $0x77]]
    %v2749 = vstv %s2748
    %v2750 = vmul.f32 %v2570, %v2749
    %v2751 = vmul.f32 %v2571, %v2749
    %2754 = vrot.lane.b32.xlu0 %v2750, 126
    %v2755 = vpop.permute.xlu0 %2754
    %2756 = vrot.lane.b32.xlu0 %v2751, 126
    %v2757 = vpop.permute.xlu0 %2756
    %v2760 = vadd.f32 %v2676, %v2755
    %v2761 = vadd.f32 %v2677, %v2757
    %s2762 = sld [smem:[#allocation6 + $0x92]]
    %v2763 = vstv %s2762
    %v2764 = vmul.f32 %v2570, %v2763
    %v2765 = vmul.f32 %v2571, %v2763
    %2768 = vrot.lane.b32.xlu0 %v2764, 126
    %v2769 = vpop.permute.xlu0 %2768
    %2770 = vrot.lane.b32.xlu0 %v2765, 126
    %v2771 = vpop.permute.xlu0 %2770
    %v2774 = vadd.f32 %v2690, %v2769
    %v2775 = vadd.f32 %v2691, %v2771
    %v2776 = vld [vmem:[%s2569 + $0x1] sm:$0xff]
    %v2777 = vld [vmem:[%s2569 + $0x9] sm:$0x3f]
    %s2778 = sld [smem:[#allocation6 + $0xc]]
    %v2779 = vstv %s2778
    %v2780 = vmul.f32 %v2776, %v2779
    %v2781 = vmul.f32 %v2777, %v2779
    %v2782 = vadd.f32 %v2704, %v2780
    %v2783 = vadd.f32 %v2705, %v2781
    %s2784 = sld [smem:[#allocation6 + $0x27]]
    %v2785 = vstv %s2784
    %v2786 = vmul.f32 %v2776, %v2785
    %v2787 = vmul.f32 %v2777, %v2785
    %v2788 = vadd.f32 %v2718, %v2786
    %v2789 = vadd.f32 %v2719, %v2787
    %s2790 = sld [smem:[#allocation6 + $0x42]]
    %v2791 = vstv %s2790
    %v2792 = vmul.f32 %v2776, %v2791
    %v2793 = vmul.f32 %v2777, %v2791
    %v2794 = vadd.f32 %v2732, %v2792
    %v2795 = vadd.f32 %v2733, %v2793
    %s2796 = sld [smem:[#allocation6 + $0x5d]]
    %v2797 = vstv %s2796
    %v2798 = vmul.f32 %v2776, %v2797
    %v2799 = vmul.f32 %v2777, %v2797
    %v2800 = vadd.f32 %v2746, %v2798
    %v2801 = vadd.f32 %v2747, %v2799
    %s2802 = sld [smem:[#allocation6 + $0x78]]
    %v2803 = vstv %s2802
    %v2804 = vmul.f32 %v2776, %v2803
    %v2805 = vmul.f32 %v2777, %v2803
    %v2806 = vadd.f32 %v2760, %v2804
    %v2807 = vadd.f32 %v2761, %v2805
    %s2808 = sld [smem:[#allocation6 + $0x93]]
    %v2809 = vstv %s2808
    %v2810 = vmul.f32 %v2776, %v2809
    %v2811 = vmul.f32 %v2777, %v2809
    %v2812 = vadd.f32 %v2774, %v2810
    %v2813 = vadd.f32 %v2775, %v2811
    %s2814 = sld [smem:[#allocation6 + $0xd]]
    %v2815 = vstv %s2814
    %v2816 = vmul.f32 %v2776, %v2815
    %v2817 = vmul.f32 %v2777, %v2815
    %2820 = vrot.lane.b32.xlu0 %v2816, 127
    %v2821 = vpop.permute.xlu0 %2820
    %2822 = vrot.lane.b32.xlu0 %v2817, 127
    %v2823 = vpop.permute.xlu0 %2822
    %v2826 = vadd.f32 %v2782, %v2821
    %v2827 = vadd.f32 %v2783, %v2823
    %s2828 = sld [smem:[#allocation6 + $0x28]]
    %v2829 = vstv %s2828
    %v2830 = vmul.f32 %v2776, %v2829
    %v2831 = vmul.f32 %v2777, %v2829
    %2834 = vrot.lane.b32.xlu0 %v2830, 127
    %v2835 = vpop.permute.xlu0 %2834
    %2836 = vrot.lane.b32.xlu0 %v2831, 127
    %v2837 = vpop.permute.xlu0 %2836
    %v2840 = vadd.f32 %v2788, %v2835
    %v2841 = vadd.f32 %v2789, %v2837
    %s2842 = sld [smem:[#allocation6 + $0x43]]
    %v2843 = vstv %s2842
    %v2844 = vmul.f32 %v2776, %v2843
    %v2845 = vmul.f32 %v2777, %v2843
    %2848 = vrot.lane.b32.xlu0 %v2844, 127
    %v2849 = vpop.permute.xlu0 %2848
    %2850 = vrot.lane.b32.xlu0 %v2845, 127
    %v2851 = vpop.permute.xlu0 %2850
    %v2854 = vadd.f32 %v2794, %v2849
    %v2855 = vadd.f32 %v2795, %v2851
    %s2856 = sld [smem:[#allocation6 + $0x5e]]
    %v2857 = vstv %s2856
    %v2858 = vmul.f32 %v2776, %v2857
    %v2859 = vmul.f32 %v2777, %v2857
    %2862 = vrot.lane.b32.xlu0 %v2858, 127
    %v2863 = vpop.permute.xlu0 %2862
    %2864 = vrot.lane.b32.xlu0 %v2859, 127
    %v2865 = vpop.permute.xlu0 %2864
    %v2868 = vadd.f32 %v2800, %v2863
    %v2869 = vadd.f32 %v2801, %v2865
    %s2870 = sld [smem:[#allocation6 + $0x79]]
    %v2871 = vstv %s2870
    %v2872 = vmul.f32 %v2776, %v2871
    %v2873 = vmul.f32 %v2777, %v2871
    %2876 = vrot.lane.b32.xlu0 %v2872, 127
    %v2877 = vpop.permute.xlu0 %2876
    %2878 = vrot.lane.b32.xlu0 %v2873, 127
    %v2879 = vpop.permute.xlu0 %2878
    %v2882 = vadd.f32 %v2806, %v2877
    %v2883 = vadd.f32 %v2807, %v2879
    %s2884 = sld [smem:[#allocation6 + $0x94]]
    %v2885 = vstv %s2884
    %v2886 = vmul.f32 %v2776, %v2885
    %v2887 = vmul.f32 %v2777, %v2885
    %2890 = vrot.lane.b32.xlu0 %v2886, 127
    %v2891 = vpop.permute.xlu0 %2890
    %2892 = vrot.lane.b32.xlu0 %v2887, 127
    %v2893 = vpop.permute.xlu0 %2892
    %v2896 = vadd.f32 %v2812, %v2891
    %v2897 = vadd.f32 %v2813, %v2893
    %s2898 = sld [smem:[#allocation6 + $0xe]]
    %v2899 = vstv %s2898
    %v2900 = vmul.f32 %v2776, %v2899
    %v2901 = vmul.f32 %v2777, %v2899
    %2904 = vrot.lane.b32.xlu0 %v2900, 126
    %v2905 = vpop.permute.xlu0 %2904
    %2906 = vrot.lane.b32.xlu0 %v2901, 126
    %v2907 = vpop.permute.xlu0 %2906
    %v2910 = vadd.f32 %v2826, %v2905
    %v2911 = vadd.f32 %v2827, %v2907
    %s2912 = sld [smem:[#allocation6 + $0x29]]
    %v2913 = vstv %s2912
    %v2914 = vmul.f32 %v2776, %v2913
    %v2915 = vmul.f32 %v2777, %v2913
    %2918 = vrot.lane.b32.xlu0 %v2914, 126
    %v2919 = vpop.permute.xlu0 %2918
    %2920 = vrot.lane.b32.xlu0 %v2915, 126
    %v2921 = vpop.permute.xlu0 %2920
    %v2924 = vadd.f32 %v2840, %v2919
    %v2925 = vadd.f32 %v2841, %v2921
    %s2926 = sld [smem:[#allocation6 + $0x44]]
    %v2927 = vstv %s2926
    %v2928 = vmul.f32 %v2776, %v2927
    %v2929 = vmul.f32 %v2777, %v2927
    %2932 = vrot.lane.b32.xlu0 %v2928, 126
    %v2933 = vpop.permute.xlu0 %2932
    %2934 = vrot.lane.b32.xlu0 %v2929, 126
    %v2935 = vpop.permute.xlu0 %2934
    %v2938 = vadd.f32 %v2854, %v2933
    %v2939 = vadd.f32 %v2855, %v2935
    %s2940 = sld [smem:[#allocation6 + $0x5f]]
    %v2941 = vstv %s2940
    %v2942 = vmul.f32 %v2776, %v2941
    %v2943 = vmul.f32 %v2777, %v2941
    %2946 = vrot.lane.b32.xlu0 %v2942, 126
    %v2947 = vpop.permute.xlu0 %2946
    %2948 = vrot.lane.b32.xlu0 %v2943, 126
    %v2949 = vpop.permute.xlu0 %2948
    %v2952 = vadd.f32 %v2868, %v2947
    %v2953 = vadd.f32 %v2869, %v2949
    %s2954 = sld [smem:[#allocation6 + $0x7a]]
    %v2955 = vstv %s2954
    %v2956 = vmul.f32 %v2776, %v2955
    %v2957 = vmul.f32 %v2777, %v2955
    %2960 = vrot.lane.b32.xlu0 %v2956, 126
    %v2961 = vpop.permute.xlu0 %2960
    %2962 = vrot.lane.b32.xlu0 %v2957, 126
    %v2963 = vpop.permute.xlu0 %2962
    %v2966 = vadd.f32 %v2882, %v2961
    %v2967 = vadd.f32 %v2883, %v2963
    %s2968 = sld [smem:[#allocation6 + $0x95]]
    %v2969 = vstv %s2968
    %v2970 = vmul.f32 %v2776, %v2969
    %v2971 = vmul.f32 %v2777, %v2969
    %2974 = vrot.lane.b32.xlu0 %v2970, 126
    %v2975 = vpop.permute.xlu0 %2974
    %2976 = vrot.lane.b32.xlu0 %v2971, 126
    %v2977 = vpop.permute.xlu0 %2976
    %v2980 = vadd.f32 %v2896, %v2975
    %v2981 = vadd.f32 %v2897, %v2977
    %v2982 = vld [vmem:[%s2569 + $0x2] sm:$0xff]
    %v2983 = vld [vmem:[%s2569 + $0xa] sm:$0x3f]
    %s2984 = sld [smem:[#allocation6 + $0xf]]
    %v2985 = vstv %s2984
    %v2986 = vmul.f32 %v2982, %v2985
    %v2987 = vmul.f32 %v2983, %v2985
    %v2988 = vadd.f32 %v2910, %v2986
    %v2989 = vadd.f32 %v2911, %v2987
    %s2990 = sld [smem:[#allocation6 + $0x2a]]
    %v2991 = vstv %s2990
    %v2992 = vmul.f32 %v2982, %v2991
    %v2993 = vmul.f32 %v2983, %v2991
    %v2994 = vadd.f32 %v2924, %v2992
    %v2995 = vadd.f32 %v2925, %v2993
    %s2996 = sld [smem:[#allocation6 + $0x45]]
    %v2997 = vstv %s2996
    %v2998 = vmul.f32 %v2982, %v2997
    %v2999 = vmul.f32 %v2983, %v2997
    %v3000 = vadd.f32 %v2938, %v2998
    %v3001 = vadd.f32 %v2939, %v2999
    %s3002 = sld [smem:[#allocation6 + $0x60]]
    %v3003 = vstv %s3002
    %v3004 = vmul.f32 %v2982, %v3003
    %v3005 = vmul.f32 %v2983, %v3003
    %v3006 = vadd.f32 %v2952, %v3004
    %v3007 = vadd.f32 %v2953, %v3005
    %s3008 = sld [smem:[#allocation6 + $0x7b]]
    %v3009 = vstv %s3008
    %v3010 = vmul.f32 %v2982, %v3009
    %v3011 = vmul.f32 %v2983, %v3009
    %v3012 = vadd.f32 %v2966, %v3010
    %v3013 = vadd.f32 %v2967, %v3011
    %s3014 = sld [smem:[#allocation6 + $0x96]]
    %v3015 = vstv %s3014
    %v3016 = vmul.f32 %v2982, %v3015
    %v3017 = vmul.f32 %v2983, %v3015
    %v3018 = vadd.f32 %v2980, %v3016
    %v3019 = vadd.f32 %v2981, %v3017
    %s3020 = sld [smem:[#allocation6 + $0x10]]
    %v3021 = vstv %s3020
    %v3022 = vmul.f32 %v2982, %v3021
    %v3023 = vmul.f32 %v2983, %v3021
    %3026 = vrot.lane.b32.xlu0 %v3022, 127
    %v3027 = vpop.permute.xlu0 %3026
    %3028 = vrot.lane.b32.xlu0 %v3023, 127
    %v3029 = vpop.permute.xlu0 %3028
    %v3032 = vadd.f32 %v2988, %v3027
    %v3033 = vadd.f32 %v2989, %v3029
    %s3034 = sld [smem:[#allocation6 + $0x2b]]
    %v3035 = vstv %s3034
    %v3036 = vmul.f32 %v2982, %v3035
    %v3037 = vmul.f32 %v2983, %v3035
    %3040 = vrot.lane.b32.xlu0 %v3036, 127
    %v3041 = vpop.permute.xlu0 %3040
    %3042 = vrot.lane.b32.xlu0 %v3037, 127
    %v3043 = vpop.permute.xlu0 %3042
    %v3046 = vadd.f32 %v2994, %v3041
    %v3047 = vadd.f32 %v2995, %v3043
    %s3048 = sld [smem:[#allocation6 + $0x46]]
    %v3049 = vstv %s3048
    %v3050 = vmul.f32 %v2982, %v3049
    %v3051 = vmul.f32 %v2983, %v3049
    %3054 = vrot.lane.b32.xlu0 %v3050, 127
    %v3055 = vpop.permute.xlu0 %3054
    %3056 = vrot.lane.b32.xlu0 %v3051, 127
    %v3057 = vpop.permute.xlu0 %3056
    %v3060 = vadd.f32 %v3000, %v3055
    %v3061 = vadd.f32 %v3001, %v3057
    %s3062 = sld [smem:[#allocation6 + $0x61]]
    %v3063 = vstv %s3062
    %v3064 = vmul.f32 %v2982, %v3063
    %v3065 = vmul.f32 %v2983, %v3063
    %3068 = vrot.lane.b32.xlu0 %v3064, 127
    %v3069 = vpop.permute.xlu0 %3068
    %3070 = vrot.lane.b32.xlu0 %v3065, 127
    %v3071 = vpop.permute.xlu0 %3070
    %v3074 = vadd.f32 %v3006, %v3069
    %v3075 = vadd.f32 %v3007, %v3071
    %s3076 = sld [smem:[#allocation6 + $0x7c]]
    %v3077 = vstv %s3076
    %v3078 = vmul.f32 %v2982, %v3077
    %v3079 = vmul.f32 %v2983, %v3077
    %3082 = vrot.lane.b32.xlu0 %v3078, 127
    %v3083 = vpop.permute.xlu0 %3082
    %3084 = vrot.lane.b32.xlu0 %v3079, 127
    %v3085 = vpop.permute.xlu0 %3084
    %v3088 = vadd.f32 %v3012, %v3083
    %v3089 = vadd.f32 %v3013, %v3085
    %s3090 = sld [smem:[#allocation6 + $0x97]]
    %v3091 = vstv %s3090
    %v3092 = vmul.f32 %v2982, %v3091
    %v3093 = vmul.f32 %v2983, %v3091
    %3096 = vrot.lane.b32.xlu0 %v3092, 127
    %v3097 = vpop.permute.xlu0 %3096
    %3098 = vrot.lane.b32.xlu0 %v3093, 127
    %v3099 = vpop.permute.xlu0 %3098
    %v3102 = vadd.f32 %v3018, %v3097
    %v3103 = vadd.f32 %v3019, %v3099
    %s3104 = sld [smem:[#allocation6 + $0x11]]
    %v3105 = vstv %s3104
    %v3106 = vmul.f32 %v2982, %v3105
    %v3107 = vmul.f32 %v2983, %v3105
    %3110 = vrot.lane.b32.xlu0 %v3106, 126
    %v3111 = vpop.permute.xlu0 %3110
    %3112 = vrot.lane.b32.xlu0 %v3107, 126
    %v3113 = vpop.permute.xlu0 %3112
    %v3116 = vadd.f32 %v3032, %v3111
    %v3117 = vadd.f32 %v3033, %v3113
    %s3118 = sld [smem:[#allocation6 + $0x2c]]
    %v3119 = vstv %s3118
    %v3120 = vmul.f32 %v2982, %v3119
    %v3121 = vmul.f32 %v2983, %v3119
    %3124 = vrot.lane.b32.xlu0 %v3120, 126
    %v3125 = vpop.permute.xlu0 %3124
    %3126 = vrot.lane.b32.xlu0 %v3121, 126
    %v3127 = vpop.permute.xlu0 %3126
    %v3130 = vadd.f32 %v3046, %v3125
    %v3131 = vadd.f32 %v3047, %v3127
    %s3132 = sld [smem:[#allocation6 + $0x47]]
    %v3133 = vstv %s3132
    %v3134 = vmul.f32 %v2982, %v3133
    %v3135 = vmul.f32 %v2983, %v3133
    %3138 = vrot.lane.b32.xlu0 %v3134, 126
    %v3139 = vpop.permute.xlu0 %3138
    %3140 = vrot.lane.b32.xlu0 %v3135, 126
    %v3141 = vpop.permute.xlu0 %3140
    %v3144 = vadd.f32 %v3060, %v3139
    %v3145 = vadd.f32 %v3061, %v3141
    %s3146 = sld [smem:[#allocation6 + $0x62]]
    %v3147 = vstv %s3146
    %v3148 = vmul.f32 %v2982, %v3147
    %v3149 = vmul.f32 %v2983, %v3147
    %3152 = vrot.lane.b32.xlu0 %v3148, 126
    %v3153 = vpop.permute.xlu0 %3152
    %3154 = vrot.lane.b32.xlu0 %v3149, 126
    %v3155 = vpop.permute.xlu0 %3154
    %v3158 = vadd.f32 %v3074, %v3153
    %v3159 = vadd.f32 %v3075, %v3155
    %s3160 = sld [smem:[#allocation6 + $0x7d]]
    %v3161 = vstv %s3160
    %v3162 = vmul.f32 %v2982, %v3161
    %v3163 = vmul.f32 %v2983, %v3161
    %3166 = vrot.lane.b32.xlu0 %v3162, 126
    %v3167 = vpop.permute.xlu0 %3166
    %3168 = vrot.lane.b32.xlu0 %v3163, 126
    %v3169 = vpop.permute.xlu0 %3168
    %v3172 = vadd.f32 %v3088, %v3167
    %v3173 = vadd.f32 %v3089, %v3169
    %s3174 = sld [smem:[#allocation6 + $0x98]]
    %v3175 = vstv %s3174
    %v3176 = vmul.f32 %v2982, %v3175
    %v3177 = vmul.f32 %v2983, %v3175
    %3180 = vrot.lane.b32.xlu0 %v3176, 126
    %v3181 = vpop.permute.xlu0 %3180
    %3182 = vrot.lane.b32.xlu0 %v3177, 126
    %v3183 = vpop.permute.xlu0 %3182
    %v3186 = vadd.f32 %v3102, %v3181
    %v3187 = vadd.f32 %v3103, %v3183
    %s3188 = scalar_lea.vmem [#allocation2], 80
    %v3189 = vld [vmem:[%s3188] sm:$0xff]
    %v3190 = vld [vmem:[%s3188 + $0x8] sm:$0x3f]
    %s3191 = sld [smem:[#allocation6 + $0x12]]
    %v3192 = vstv %s3191
    %v3193 = vmul.f32 %v3189, %v3192
    %v3194 = vmul.f32 %v3190, %v3192
    %v3195 = vadd.f32 %v3116, %v3193
    %v3196 = vadd.f32 %v3117, %v3194
    %s3197 = sld [smem:[#allocation6 + $0x2d]]
    %v3198 = vstv %s3197
    %v3199 = vmul.f32 %v3189, %v3198
    %v3200 = vmul.f32 %v3190, %v3198
    %v3201 = vadd.f32 %v3130, %v3199
    %v3202 = vadd.f32 %v3131, %v3200
    %s3203 = sld [smem:[#allocation6 + $0x48]]
    %v3204 = vstv %s3203
    %v3205 = vmul.f32 %v3189, %v3204
    %v3206 = vmul.f32 %v3190, %v3204
    %v3207 = vadd.f32 %v3144, %v3205
    %v3208 = vadd.f32 %v3145, %v3206
    %s3209 = sld [smem:[#allocation6 + $0x63]]
    %v3210 = vstv %s3209
    %v3211 = vmul.f32 %v3189, %v3210
    %v3212 = vmul.f32 %v3190, %v3210
    %v3213 = vadd.f32 %v3158, %v3211
    %v3214 = vadd.f32 %v3159, %v3212
    %s3215 = sld [smem:[#allocation6 + $0x7e]]
    %v3216 = vstv %s3215
    %v3217 = vmul.f32 %v3189, %v3216
    %v3218 = vmul.f32 %v3190, %v3216
    %v3219 = vadd.f32 %v3172, %v3217
    %v3220 = vadd.f32 %v3173, %v3218
    %s3221 = sld [smem:[#allocation6 + $0x99]]
    %v3222 = vstv %s3221
    %v3223 = vmul.f32 %v3189, %v3222
    %v3224 = vmul.f32 %v3190, %v3222
    %v3225 = vadd.f32 %v3186, %v3223
    %v3226 = vadd.f32 %v3187, %v3224
    %s3227 = sld [smem:[#allocation6 + $0x13]]
    %v3228 = vstv %s3227
    %v3229 = vmul.f32 %v3189, %v3228
    %v3230 = vmul.f32 %v3190, %v3228
    %3233 = vrot.lane.b32.xlu0 %v3229, 127
    %v3234 = vpop.permute.xlu0 %3233
    %3235 = vrot.lane.b32.xlu0 %v3230, 127
    %v3236 = vpop.permute.xlu0 %3235
    %v3239 = vadd.f32 %v3195, %v3234
    %v3240 = vadd.f32 %v3196, %v3236
    %s3241 = sld [smem:[#allocation6 + $0x2e]]
    %v3242 = vstv %s3241
    %v3243 = vmul.f32 %v3189, %v3242
    %v3244 = vmul.f32 %v3190, %v3242
    %3247 = vrot.lane.b32.xlu0 %v3243, 127
    %v3248 = vpop.permute.xlu0 %3247
    %3249 = vrot.lane.b32.xlu0 %v3244, 127
    %v3250 = vpop.permute.xlu0 %3249
    %v3253 = vadd.f32 %v3201, %v3248
    %v3254 = vadd.f32 %v3202, %v3250
    %s3255 = sld [smem:[#allocation6 + $0x49]]
    %v3256 = vstv %s3255
    %v3257 = vmul.f32 %v3189, %v3256
    %v3258 = vmul.f32 %v3190, %v3256
    %3261 = vrot.lane.b32.xlu0 %v3257, 127
    %v3262 = vpop.permute.xlu0 %3261
    %3263 = vrot.lane.b32.xlu0 %v3258, 127
    %v3264 = vpop.permute.xlu0 %3263
    %v3267 = vadd.f32 %v3207, %v3262
    %v3268 = vadd.f32 %v3208, %v3264
    %s3269 = sld [smem:[#allocation6 + $0x64]]
    %v3270 = vstv %s3269
    %v3271 = vmul.f32 %v3189, %v3270
    %v3272 = vmul.f32 %v3190, %v3270
    %3275 = vrot.lane.b32.xlu0 %v3271, 127
    %v3276 = vpop.permute.xlu0 %3275
    %3277 = vrot.lane.b32.xlu0 %v3272, 127
    %v3278 = vpop.permute.xlu0 %3277
    %v3281 = vadd.f32 %v3213, %v3276
    %v3282 = vadd.f32 %v3214, %v3278
    %s3283 = sld [smem:[#allocation6 + $0x7f]]
    %v3284 = vstv %s3283
    %v3285 = vmul.f32 %v3189, %v3284
    %v3286 = vmul.f32 %v3190, %v3284
    %3289 = vrot.lane.b32.xlu0 %v3285, 127
    %v3290 = vpop.permute.xlu0 %3289
    %3291 = vrot.lane.b32.xlu0 %v3286, 127
    %v3292 = vpop.permute.xlu0 %3291
    %v3295 = vadd.f32 %v3219, %v3290
    %v3296 = vadd.f32 %v3220, %v3292
    %s3297 = sld [smem:[#allocation6 + $0x9a]]
    %v3298 = vstv %s3297
    %v3299 = vmul.f32 %v3189, %v3298
    %v3300 = vmul.f32 %v3190, %v3298
    %3303 = vrot.lane.b32.xlu0 %v3299, 127
    %v3304 = vpop.permute.xlu0 %3303
    %3305 = vrot.lane.b32.xlu0 %v3300, 127
    %v3306 = vpop.permute.xlu0 %3305
    %v3309 = vadd.f32 %v3225, %v3304
    %v3310 = vadd.f32 %v3226, %v3306
    %s3311 = sld [smem:[#allocation6 + $0x14]]
    %v3312 = vstv %s3311
    %v3313 = vmul.f32 %v3189, %v3312
    %v3314 = vmul.f32 %v3190, %v3312
    %3317 = vrot.lane.b32.xlu0 %v3313, 126
    %v3318 = vpop.permute.xlu0 %3317
    %3319 = vrot.lane.b32.xlu0 %v3314, 126
    %v3320 = vpop.permute.xlu0 %3319
    %v3323 = vadd.f32 %v3239, %v3318
    %v3324 = vadd.f32 %v3240, %v3320
    %s3325 = sld [smem:[#allocation6 + $0x2f]]
    %v3326 = vstv %s3325
    %v3327 = vmul.f32 %v3189, %v3326
    %v3328 = vmul.f32 %v3190, %v3326
    %3331 = vrot.lane.b32.xlu0 %v3327, 126
    %v3332 = vpop.permute.xlu0 %3331
    %3333 = vrot.lane.b32.xlu0 %v3328, 126
    %v3334 = vpop.permute.xlu0 %3333
    %v3337 = vadd.f32 %v3253, %v3332
    %v3338 = vadd.f32 %v3254, %v3334
    %s3339 = sld [smem:[#allocation6 + $0x4a]]
    %v3340 = vstv %s3339
    %v3341 = vmul.f32 %v3189, %v3340
    %v3342 = vmul.f32 %v3190, %v3340
    %3345 = vrot.lane.b32.xlu0 %v3341, 126
    %v3346 = vpop.permute.xlu0 %3345
    %3347 = vrot.lane.b32.xlu0 %v3342, 126
    %v3348 = vpop.permute.xlu0 %3347
    %v3351 = vadd.f32 %v3267, %v3346
    %v3352 = vadd.f32 %v3268, %v3348
    %s3353 = sld [smem:[#allocation6 + $0x65]]
    %v3354 = vstv %s3353
    %v3355 = vmul.f32 %v3189, %v3354
    %v3356 = vmul.f32 %v3190, %v3354
    %3359 = vrot.lane.b32.xlu0 %v3355, 126
    %v3360 = vpop.permute.xlu0 %3359
    %3361 = vrot.lane.b32.xlu0 %v3356, 126
    %v3362 = vpop.permute.xlu0 %3361
    %v3365 = vadd.f32 %v3281, %v3360
    %v3366 = vadd.f32 %v3282, %v3362
    %s3367 = sld [smem:[#allocation6 + $0x80]]
    %v3368 = vstv %s3367
    %v3369 = vmul.f32 %v3189, %v3368
    %v3370 = vmul.f32 %v3190, %v3368
    %3373 = vrot.lane.b32.xlu0 %v3369, 126
    %v3374 = vpop.permute.xlu0 %3373
    %3375 = vrot.lane.b32.xlu0 %v3370, 126
    %v3376 = vpop.permute.xlu0 %3375
    %v3379 = vadd.f32 %v3295, %v3374
    %v3380 = vadd.f32 %v3296, %v3376
    %s3381 = sld [smem:[#allocation6 + $0x9b]]
    %v3382 = vstv %s3381
    %v3383 = vmul.f32 %v3189, %v3382
    %v3384 = vmul.f32 %v3190, %v3382
    %3387 = vrot.lane.b32.xlu0 %v3383, 126
    %v3388 = vpop.permute.xlu0 %3387
    %3389 = vrot.lane.b32.xlu0 %v3384, 126
    %v3390 = vpop.permute.xlu0 %3389
    %v3393 = vadd.f32 %v3309, %v3388
    %v3394 = vadd.f32 %v3310, %v3390
    %v3395 = vld [vmem:[%s3188 + $0x1] sm:$0xff]
    %v3396 = vld [vmem:[%s3188 + $0x9] sm:$0x3f]
    %s3397 = sld [smem:[#allocation6 + $0x15]]
    %v3398 = vstv %s3397
    %v3399 = vmul.f32 %v3395, %v3398
    %v3400 = vmul.f32 %v3396, %v3398
    %v3401 = vadd.f32 %v3323, %v3399
    %v3402 = vadd.f32 %v3324, %v3400
    %s3403 = sld [smem:[#allocation6 + $0x30]]
    %v3404 = vstv %s3403
    %v3405 = vmul.f32 %v3395, %v3404
    %v3406 = vmul.f32 %v3396, %v3404
    %v3407 = vadd.f32 %v3337, %v3405
    %v3408 = vadd.f32 %v3338, %v3406
    %s3409 = sld [smem:[#allocation6 + $0x4b]]
    %v3410 = vstv %s3409
    %v3411 = vmul.f32 %v3395, %v3410
    %v3412 = vmul.f32 %v3396, %v3410
    %v3413 = vadd.f32 %v3351, %v3411
    %v3414 = vadd.f32 %v3352, %v3412
    %s3415 = sld [smem:[#allocation6 + $0x66]]
    %v3416 = vstv %s3415
    %v3417 = vmul.f32 %v3395, %v3416
    %v3418 = vmul.f32 %v3396, %v3416
    %v3419 = vadd.f32 %v3365, %v3417
    %v3420 = vadd.f32 %v3366, %v3418
    %s3421 = sld [smem:[#allocation6 + $0x81]]
    %v3422 = vstv %s3421
    %v3423 = vmul.f32 %v3395, %v3422
    %v3424 = vmul.f32 %v3396, %v3422
    %v3425 = vadd.f32 %v3379, %v3423
    %v3426 = vadd.f32 %v3380, %v3424
    %s3427 = sld [smem:[#allocation6 + $0x9c]]
    %v3428 = vstv %s3427
    %v3429 = vmul.f32 %v3395, %v3428
    %v3430 = vmul.f32 %v3396, %v3428
    %v3431 = vadd.f32 %v3393, %v3429
    %v3432 = vadd.f32 %v3394, %v3430
    %s3433 = sld [smem:[#allocation6 + $0x16]]
    %v3434 = vstv %s3433
    %v3435 = vmul.f32 %v3395, %v3434
    %v3436 = vmul.f32 %v3396, %v3434
    %3439 = vrot.lane.b32.xlu0 %v3435, 127
    %v3440 = vpop.permute.xlu0 %3439
    %3441 = vrot.lane.b32.xlu0 %v3436, 127
    %v3442 = vpop.permute.xlu0 %3441
    %v3445 = vadd.f32 %v3401, %v3440
    %v3446 = vadd.f32 %v3402, %v3442
    %s3447 = sld [smem:[#allocation6 + $0x31]]
    %v3448 = vstv %s3447
    %v3449 = vmul.f32 %v3395, %v3448
    %v3450 = vmul.f32 %v3396, %v3448
    %3453 = vrot.lane.b32.xlu0 %v3449, 127
    %v3454 = vpop.permute.xlu0 %3453
    %3455 = vrot.lane.b32.xlu0 %v3450, 127
    %v3456 = vpop.permute.xlu0 %3455
    %v3459 = vadd.f32 %v3407, %v3454
    %v3460 = vadd.f32 %v3408, %v3456
    %s3461 = sld [smem:[#allocation6 + $0x4c]]
    %v3462 = vstv %s3461
    %v3463 = vmul.f32 %v3395, %v3462
    %v3464 = vmul.f32 %v3396, %v3462
    %3467 = vrot.lane.b32.xlu0 %v3463, 127
    %v3468 = vpop.permute.xlu0 %3467
    %3469 = vrot.lane.b32.xlu0 %v3464, 127
    %v3470 = vpop.permute.xlu0 %3469
    %v3473 = vadd.f32 %v3413, %v3468
    %v3474 = vadd.f32 %v3414, %v3470
    %s3475 = sld [smem:[#allocation6 + $0x67]]
    %v3476 = vstv %s3475
    %v3477 = vmul.f32 %v3395, %v3476
    %v3478 = vmul.f32 %v3396, %v3476
    %3481 = vrot.lane.b32.xlu0 %v3477, 127
    %v3482 = vpop.permute.xlu0 %3481
    %3483 = vrot.lane.b32.xlu0 %v3478, 127
    %v3484 = vpop.permute.xlu0 %3483
    %v3487 = vadd.f32 %v3419, %v3482
    %v3488 = vadd.f32 %v3420, %v3484
    %s3489 = sld [smem:[#allocation6 + $0x82]]
    %v3490 = vstv %s3489
    %v3491 = vmul.f32 %v3395, %v3490
    %v3492 = vmul.f32 %v3396, %v3490
    %3495 = vrot.lane.b32.xlu0 %v3491, 127
    %v3496 = vpop.permute.xlu0 %3495
    %3497 = vrot.lane.b32.xlu0 %v3492, 127
    %v3498 = vpop.permute.xlu0 %3497
    %v3501 = vadd.f32 %v3425, %v3496
    %v3502 = vadd.f32 %v3426, %v3498
    %s3503 = sld [smem:[#allocation6 + $0x9d]]
    %v3504 = vstv %s3503
    %v3505 = vmul.f32 %v3395, %v3504
    %v3506 = vmul.f32 %v3396, %v3504
    %3509 = vrot.lane.b32.xlu0 %v3505, 127
    %v3510 = vpop.permute.xlu0 %3509
    %3511 = vrot.lane.b32.xlu0 %v3506, 127
    %v3512 = vpop.permute.xlu0 %3511
    %v3515 = vadd.f32 %v3431, %v3510
    %v3516 = vadd.f32 %v3432, %v3512
    %s3517 = sld [smem:[#allocation6 + $0x17]]
    %v3518 = vstv %s3517
    %v3519 = vmul.f32 %v3395, %v3518
    %v3520 = vmul.f32 %v3396, %v3518
    %3523 = vrot.lane.b32.xlu0 %v3519, 126
    %v3524 = vpop.permute.xlu0 %3523
    %3525 = vrot.lane.b32.xlu0 %v3520, 126
    %v3526 = vpop.permute.xlu0 %3525
    %v3529 = vadd.f32 %v3445, %v3524
    %v3530 = vadd.f32 %v3446, %v3526
    %s3531 = sld [smem:[#allocation6 + $0x32]]
    %v3532 = vstv %s3531
    %v3533 = vmul.f32 %v3395, %v3532
    %v3534 = vmul.f32 %v3396, %v3532
    %3537 = vrot.lane.b32.xlu0 %v3533, 126
    %v3538 = vpop.permute.xlu0 %3537
    %3539 = vrot.lane.b32.xlu0 %v3534, 126
    %v3540 = vpop.permute.xlu0 %3539
    %v3543 = vadd.f32 %v3459, %v3538
    %v3544 = vadd.f32 %v3460, %v3540
    %s3545 = sld [smem:[#allocation6 + $0x4d]]
    %v3546 = vstv %s3545
    %v3547 = vmul.f32 %v3395, %v3546
    %v3548 = vmul.f32 %v3396, %v3546
    %3551 = vrot.lane.b32.xlu0 %v3547, 126
    %v3552 = vpop.permute.xlu0 %3551
    %3553 = vrot.lane.b32.xlu0 %v3548, 126
    %v3554 = vpop.permute.xlu0 %3553
    %v3557 = vadd.f32 %v3473, %v3552
    %v3558 = vadd.f32 %v3474, %v3554
    %s3559 = sld [smem:[#allocation6 + $0x68]]
    %v3560 = vstv %s3559
    %v3561 = vmul.f32 %v3395, %v3560
    %v3562 = vmul.f32 %v3396, %v3560
    %3565 = vrot.lane.b32.xlu0 %v3561, 126
    %v3566 = vpop.permute.xlu0 %3565
    %3567 = vrot.lane.b32.xlu0 %v3562, 126
    %v3568 = vpop.permute.xlu0 %3567
    %v3571 = vadd.f32 %v3487, %v3566
    %v3572 = vadd.f32 %v3488, %v3568
    %s3573 = sld [smem:[#allocation6 + $0x83]]
    %v3574 = vstv %s3573
    %v3575 = vmul.f32 %v3395, %v3574
    %v3576 = vmul.f32 %v3396, %v3574
    %3579 = vrot.lane.b32.xlu0 %v3575, 126
    %v3580 = vpop.permute.xlu0 %3579
    %3581 = vrot.lane.b32.xlu0 %v3576, 126
    %v3582 = vpop.permute.xlu0 %3581
    %v3585 = vadd.f32 %v3501, %v3580
    %v3586 = vadd.f32 %v3502, %v3582
    %s3587 = sld [smem:[#allocation6 + $0x9e]]
    %v3588 = vstv %s3587
    %v3589 = vmul.f32 %v3395, %v3588
    %v3590 = vmul.f32 %v3396, %v3588
    %3593 = vrot.lane.b32.xlu0 %v3589, 126
    %v3594 = vpop.permute.xlu0 %3593
    %3595 = vrot.lane.b32.xlu0 %v3590, 126
    %v3596 = vpop.permute.xlu0 %3595
    %v3599 = vadd.f32 %v3515, %v3594
    %v3600 = vadd.f32 %v3516, %v3596
    %v3601 = vld [vmem:[%s3188 + $0x2] sm:$0xff]
    %v3602 = vld [vmem:[%s3188 + $0xa] sm:$0x3f]
    %s3603 = sld [smem:[#allocation6 + $0x18]]
    %v3604 = vstv %s3603
    %v3605 = vmul.f32 %v3601, %v3604
    %v3606 = vmul.f32 %v3602, %v3604
    %v3607 = vadd.f32 %v3529, %v3605
    %v3608 = vadd.f32 %v3530, %v3606
    %s3609 = sld [smem:[#allocation6 + $0x33]]
    %v3610 = vstv %s3609
    %v3611 = vmul.f32 %v3601, %v3610
    %v3612 = vmul.f32 %v3602, %v3610
    %v3613 = vadd.f32 %v3543, %v3611
    %v3614 = vadd.f32 %v3544, %v3612
    %s3615 = sld [smem:[#allocation6 + $0x4e]]
    %v3616 = vstv %s3615
    %v3617 = vmul.f32 %v3601, %v3616
    %v3618 = vmul.f32 %v3602, %v3616
    %v3619 = vadd.f32 %v3557, %v3617
    %v3620 = vadd.f32 %v3558, %v3618
    %s3621 = sld [smem:[#allocation6 + $0x69]]
    %v3622 = vstv %s3621
    %v3623 = vmul.f32 %v3601, %v3622
    %v3624 = vmul.f32 %v3602, %v3622
    %v3625 = vadd.f32 %v3571, %v3623
    %v3626 = vadd.f32 %v3572, %v3624
    %s3627 = sld [smem:[#allocation6 + $0x84]]
    %v3628 = vstv %s3627
    %v3629 = vmul.f32 %v3601, %v3628
    %v3630 = vmul.f32 %v3602, %v3628
    %v3631 = vadd.f32 %v3585, %v3629
    %v3632 = vadd.f32 %v3586, %v3630
    %s3633 = sld [smem:[#allocation6 + $0x9f]]
    %v3634 = vstv %s3633
    %v3635 = vmul.f32 %v3601, %v3634
    %v3636 = vmul.f32 %v3602, %v3634
    %v3637 = vadd.f32 %v3599, %v3635
    %v3638 = vadd.f32 %v3600, %v3636
    %s3639 = sld [smem:[#allocation6 + $0x19]]
    %v3640 = vstv %s3639
    %v3641 = vmul.f32 %v3601, %v3640
    %v3642 = vmul.f32 %v3602, %v3640
    %3645 = vrot.lane.b32.xlu0 %v3641, 127
    %v3646 = vpop.permute.xlu0 %3645
    %3647 = vrot.lane.b32.xlu0 %v3642, 127
    %v3648 = vpop.permute.xlu0 %3647
    %v3651 = vadd.f32 %v3607, %v3646
    %v3652 = vadd.f32 %v3608, %v3648
    %s3653 = sld [smem:[#allocation6 + $0x34]]
    %v3654 = vstv %s3653
    %v3655 = vmul.f32 %v3601, %v3654
    %v3656 = vmul.f32 %v3602, %v3654
    %3659 = vrot.lane.b32.xlu0 %v3655, 127
    %v3660 = vpop.permute.xlu0 %3659
    %3661 = vrot.lane.b32.xlu0 %v3656, 127
    %v3662 = vpop.permute.xlu0 %3661
    %v3665 = vadd.f32 %v3613, %v3660
    %v3666 = vadd.f32 %v3614, %v3662
    %s3667 = sld [smem:[#allocation6 + $0x4f]]
    %v3668 = vstv %s3667
    %v3669 = vmul.f32 %v3601, %v3668
    %v3670 = vmul.f32 %v3602, %v3668
    %3673 = vrot.lane.b32.xlu0 %v3669, 127
    %v3674 = vpop.permute.xlu0 %3673
    %3675 = vrot.lane.b32.xlu0 %v3670, 127
    %v3676 = vpop.permute.xlu0 %3675
    %v3679 = vadd.f32 %v3619, %v3674
    %v3680 = vadd.f32 %v3620, %v3676
    %s3681 = sld [smem:[#allocation6 + $0x6a]]
    %v3682 = vstv %s3681
    %v3683 = vmul.f32 %v3601, %v3682
    %v3684 = vmul.f32 %v3602, %v3682
    %3687 = vrot.lane.b32.xlu0 %v3683, 127
    %v3688 = vpop.permute.xlu0 %3687
    %3689 = vrot.lane.b32.xlu0 %v3684, 127
    %v3690 = vpop.permute.xlu0 %3689
    %v3693 = vadd.f32 %v3625, %v3688
    %v3694 = vadd.f32 %v3626, %v3690
    %s3695 = sld [smem:[#allocation6 + $0x85]]
    %v3696 = vstv %s3695
    %v3697 = vmul.f32 %v3601, %v3696
    %v3698 = vmul.f32 %v3602, %v3696
    %3701 = vrot.lane.b32.xlu0 %v3697, 127
    %v3702 = vpop.permute.xlu0 %3701
    %3703 = vrot.lane.b32.xlu0 %v3698, 127
    %v3704 = vpop.permute.xlu0 %3703
    %v3707 = vadd.f32 %v3631, %v3702
    %v3708 = vadd.f32 %v3632, %v3704
    %s3709 = sld [smem:[#allocation6 + $0xa0]]
    %v3710 = vstv %s3709
    %v3711 = vmul.f32 %v3601, %v3710
    %v3712 = vmul.f32 %v3602, %v3710
    %3715 = vrot.lane.b32.xlu0 %v3711, 127
    %v3716 = vpop.permute.xlu0 %3715
    %3717 = vrot.lane.b32.xlu0 %v3712, 127
    %v3718 = vpop.permute.xlu0 %3717
    %v3721 = vadd.f32 %v3637, %v3716
    %v3722 = vadd.f32 %v3638, %v3718
    %s3723 = sld [smem:[#allocation6 + $0x1a]]
    %v3724 = vstv %s3723
    %v3725 = vmul.f32 %v3601, %v3724
    %v3726 = vmul.f32 %v3602, %v3724
    %3729 = vrot.lane.b32.xlu0 %v3725, 126
    %v3730 = vpop.permute.xlu0 %3729
    %3731 = vrot.lane.b32.xlu0 %v3726, 126
    %v3732 = vpop.permute.xlu0 %3731
    %v3735 = vadd.f32 %v3651, %v3730
    %v3736 = vadd.f32 %v3652, %v3732
    %s3737 = sld [smem:[#allocation6 + $0x35]]
    %v3738 = vstv %s3737
    %v3739 = vmul.f32 %v3601, %v3738
    %v3740 = vmul.f32 %v3602, %v3738
    %3743 = vrot.lane.b32.xlu0 %v3739, 126
    %v3744 = vpop.permute.xlu0 %3743
    %3745 = vrot.lane.b32.xlu0 %v3740, 126
    %v3746 = vpop.permute.xlu0 %3745
    %v3749 = vadd.f32 %v3665, %v3744
    %v3750 = vadd.f32 %v3666, %v3746
    %s3751 = sld [smem:[#allocation6 + $0x50]]
    %v3752 = vstv %s3751
    %v3753 = vmul.f32 %v3601, %v3752
    %v3754 = vmul.f32 %v3602, %v3752
    %3757 = vrot.lane.b32.xlu0 %v3753, 126
    %v3758 = vpop.permute.xlu0 %3757
    %3759 = vrot.lane.b32.xlu0 %v3754, 126
    %v3760 = vpop.permute.xlu0 %3759
    %v3763 = vadd.f32 %v3679, %v3758
    %v3764 = vadd.f32 %v3680, %v3760
    %s3765 = sld [smem:[#allocation6 + $0x6b]]
    %v3766 = vstv %s3765
    %v3767 = vmul.f32 %v3601, %v3766
    %v3768 = vmul.f32 %v3602, %v3766
    %3771 = vrot.lane.b32.xlu0 %v3767, 126
    %v3772 = vpop.permute.xlu0 %3771
    %3773 = vrot.lane.b32.xlu0 %v3768, 126
    %v3774 = vpop.permute.xlu0 %3773
    %v3777 = vadd.f32 %v3693, %v3772
    %v3778 = vadd.f32 %v3694, %v3774
    %s3779 = sld [smem:[#allocation6 + $0x86]]
    %v3780 = vstv %s3779
    %v3781 = vmul.f32 %v3601, %v3780
    %v3782 = vmul.f32 %v3602, %v3780
    %3785 = vrot.lane.b32.xlu0 %v3781, 126
    %v3786 = vpop.permute.xlu0 %3785
    %3787 = vrot.lane.b32.xlu0 %v3782, 126
    %v3788 = vpop.permute.xlu0 %3787
    %v3791 = vadd.f32 %v3707, %v3786
    %v3792 = vadd.f32 %v3708, %v3788
    %s3793 = sld [smem:[#allocation6 + $0xa1]]
    %v3794 = vstv %s3793
    %v3795 = vmul.f32 %v3601, %v3794
    %v3796 = vmul.f32 %v3602, %v3794
    %3799 = vrot.lane.b32.xlu0 %v3795, 126
    %v3800 = vpop.permute.xlu0 %3799
    %3801 = vrot.lane.b32.xlu0 %v3796, 126
    %v3802 = vpop.permute.xlu0 %3801
    %v3805 = vadd.f32 %v3721, %v3800
    %v3806 = vadd.f32 %v3722, %v3802
    %s3807 = scalar_lea.vmem %s3, 96
    %3808 = vst.msk [vmem:[%s3807] sm:$0xff] %vm1919, %v3735
    %3809 = vst.msk [vmem:[%s3807 + $0x8] sm:$0x3f] %vm1921, %v3736
    %s3810 = scalar_lea.vmem %s3, 112
    %3811 = vst.msk [vmem:[%s3810] sm:$0xff] %vm1919, %v3749
    %3812 = vst.msk [vmem:[%s3810 + $0x8] sm:$0x3f] %vm1921, %v3750
    %s3813 = scalar_lea.vmem %s3, 128
    %3814 = vst.msk [vmem:[%s3813] sm:$0xff] %vm1919, %v3763
    %3815 = vst.msk [vmem:[%s3813 + $0x8] sm:$0x3f] %vm1921, %v3764
    %s3816 = scalar_lea.vmem %s3, 144
    %3817 = vst.msk [vmem:[%s3816] sm:$0xff] %vm1919, %v3777
    %3818 = vst.msk [vmem:[%s3816 + $0x8] sm:$0x3f] %vm1921, %v3778
    %s3819 = scalar_lea.vmem %s3, 160
    %3820 = vst.msk [vmem:[%s3819] sm:$0xff] %vm1919, %v3791
    %3821 = vst.msk [vmem:[%s3819 + $0x8] sm:$0x3f] %vm1921, %v3792
    %s3822 = scalar_lea.vmem %s3, 176
    %3823 = vst.msk [vmem:[%s3822] sm:$0xff] %vm1919, %v3805
    %3824 = vst.msk [vmem:[%s3822 + $0x8] sm:$0x3f] %vm1921, %v3806
    // Predicated region
    $region26: #{tpu_custom_call.1} parent=1 // pred_check
      _
    $region27: #{tpu_custom_call.1} parent=1 // pred_check_branch
      %3826 = sbr.rel (0) target = $region29
    $region28: #{tpu_custom_call.1} parent=1 // pred_region
      _
    $region29: #{tpu_custom_call.1} parent=1 // pred_fallthru
      _
    // Predicated region
    $region30: #{tpu_custom_call.1} parent=1 // pred_check
      _
    $region31: #{tpu_custom_call.1} parent=1 // pred_check_branch
      %3828 = sbr.rel (0) target = $region33
    $region32: #{tpu_custom_call.1} parent=1 // pred_region
      _
    $region33: #{tpu_custom_call.1} parent=1 // pred_fallthru
      _
    %3829 = vsyncpa [#allocation3], 1
    %3830 = vsyncpa [#allocation4], 1
    %3831 = vsyncpa [#allocation5], 1

</llo_original>
